<compile_context>
chip_gen: v6e
topology: v6e:2x2x1
jax: 0.10.0
libtpu: 0.0.40
codegen_flags: <defaults>
</compile_context>

<pallas_src>
import functools

import jax
import jax.numpy as jnp
from jax.experimental import pallas as pl
from jax.experimental.pallas import tpu as pltpu


def _attention_kernel(x_ref, wqkv_ref, wproj_ref, bproj_ref, o_ref,
                      *, num_heads, scale):
    # x_ref    : (block_b, N, C)   bf16
    # wqkv_ref : (C, 3C)           bf16
    # wproj_ref: (C, C)            bf16
    # bproj_ref: (1, C)            f32
    # o_ref    : (block_b, N, C)   x.dtype
    block_b, N, C = x_ref.shape
    H = num_heads
    hd = C // H
    R = block_b * N                                    # rows fed to the MXU

    # Tall 2-D LHS for the projection GEMMs (leading-axis concat only).
    if block_b == 1:
        x2d = x_ref[0]
    else:
        x2d = jnp.concatenate([x_ref[b] for b in range(block_b)], axis=0)

    # --- QKV projection: one tall MXU GEMM (f32 accumulation), cast to bf16
    # --- once so all later head-regrouping copies move 2-byte data.
    qkv = jnp.dot(x2d, wqkv_ref[...],
                  preferred_element_type=jnp.float32).astype(jnp.bfloat16)

    # Torch semantics: qkv.reshape(B, N, 3, H, hd).permute(2, 0, 3, 1, 4)
    # => along the 3C axis the order is [q | k | v] (each width C), and within
    # each C the head index is the outer factor.  Build head-batched
    # (block_b*H, N, hd) operands from static slices + a leading-axis stack
    # (no lane->sublane reshapes, no 4-D transposes).
    def gather_heads(col0):
        parts = []
        for b in range(block_b):
            rows = slice(b * N, (b + 1) * N)
            for h in range(H):
                cols = slice(col0 + h * hd, col0 + (h + 1) * hd)
                parts.append(qkv[rows, cols])
        return jnp.stack(parts, axis=0)                # (block_b*H, N, hd) bf16

    # Fold the softmax scale into q: O(R*C) bf16 multiply instead of an
    # O(N^2) f32 pass over the score matrix.
    q = gather_heads(0 * C) * jnp.asarray(scale, dtype=jnp.bfloat16)
    k = gather_heads(1 * C)
    v = gather_heads(2 * C)

    # --- batched attention over all (batch, head) pairs at once ---
    s = jnp.einsum('bnd,bmd->bnm', q, k,
                   preferred_element_type=jnp.float32)            # (BH,N,N) f32
    s = s - jnp.max(s, axis=-1, keepdims=True)
    e = jnp.exp(s)                                                 # f32
    l = jnp.sum(e, axis=-1, keepdims=True)                         # (BH,N,1) f32
    o = jnp.einsum('bnm,bmd->bnd', e.astype(jnp.bfloat16), v,
                   preferred_element_type=jnp.float32)             # (BH,N,hd) f32
    # Normalize AFTER the PV matmul: O(N*hd) elementwise instead of O(N^2);
    # safe for approx reciprocal since the max-subtracted sum is >= 1.
    o = (o * pl.reciprocal(l, approx=True)).astype(jnp.bfloat16)

    # --- merge heads (lane-axis concat, bf16) + output projection ---
    row_blocks = []
    for b in range(block_b):
        row_blocks.append(
            jnp.concatenate([o[b * H + h] for h in range(H)], axis=-1))  # (N, C)
    merged = row_blocks[0] if block_b == 1 else jnp.concatenate(row_blocks, axis=0)

    out = jnp.dot(merged, wproj_ref[...],
                  preferred_element_type=jnp.float32) + bproj_ref[...]   # (R, C)
    for b in range(block_b):
        o_ref[b] = out[b * N:(b + 1) * N, :].astype(o_ref.dtype)


def _vmem_capacity_bytes():
    try:
        return int(pltpu.get_tpu_info().vmem_capacity_bytes)
    except Exception:
        return 64 * 1024 * 1024     # assume the smallest (v7x) if probing fails


def _per_step_vmem_bytes(block_b, N, C, H, out_itemsize):
    hd = C // H
    R = block_b * N
    weights = (C * 3 * C + C * C) * 2 + C * 4          # single-buffered bf16 W + f32 bias
    x_io = 2 * R * C * 2 + 2 * R * C * out_itemsize    # double-buffered x / out blocks
    qkv = R * 3 * C * (4 + 2)                          # f32 GEMM result + bf16 copy
    heads = 3 * R * C * 2                              # stacked bf16 q / k / v
    scores = block_b * H * N * N * (4 + 2)             # f32 exp scores + bf16 p
    pv = block_b * H * N * hd * 4 + R * C * 2          # f32 PV output + bf16 merged
    return weights + x_io + qkv + heads + scores + pv


def _choose_block_b(B, N, C, H, out_itemsize, vmem_budget, target_rows):
    """Batch elements per grid step.

    Bigger blocks amortize the ~0.35 us per-grid-step overhead and give the
    MXU a taller LHS for the projection GEMMs, but the block must fit the VMEM
    budget and -- whenever B >= 2 -- the grid must keep >= 2 steps so
    dimension_semantics=("parallel",) can spread work over both v7x
    TensorCores.
    """
    cap = 1 if B == 1 else B // 2
    best = 1
    for cand in range(1, cap + 1):
        if B % cand:
            continue
        if cand * N > max(target_rows, N):
            break
        if _per_step_vmem_bytes(cand, N, C, H, out_itemsize) > vmem_budget:
            break
        best = cand
    return best


def attention_pallas(x, w_qkv, w_proj, b_proj, *, num_heads, scale,
                     block_b=None, single_buffer_weights=True):
    B, N, C = x.shape
    assert C % num_heads == 0
    H = num_heads
    hd = C // H

    vmem_cap = _vmem_capacity_bytes()
    # ~40 MiB budget on 64-MiB-VMEM v7x, ~80 MiB on 128-MiB v5e/v6e.
    vmem_budget = min((vmem_cap * 5) // 8, 96 * 1024 * 1024)
    # Larger batch blocks on the 128-MiB parts (v5e/v6e); conservative on v7x.
    target_rows = 512 if vmem_cap >= 96 * 1024 * 1024 else 256
    out_itemsize = jnp.dtype(x.dtype).itemsize

    if block_b is None:
        block_b = _choose_block_b(B, N, C, H, out_itemsize,
                                  vmem_budget, target_rows)
    assert B % block_b == 0
    grid_b = B // block_b

    # bf16 MXU operands (cast once in the wrapper: halves weight/activation
    # DMA bytes); accumulation stays f32, bias stays f32.
    xb = x.astype(jnp.bfloat16)
    wqkv_b = w_qkv.astype(jnp.bfloat16)
    wproj_b = w_proj.astype(jnp.bfloat16)
    bproj2d = b_proj.reshape(1, C).astype(jnp.float32)

    def const_spec(shape):
        # Constant index_map: the block never changes across grid steps, so
        # double-buffering it only burns VMEM -> request a single buffer.
        index_map = lambda b, _n=len(shape): (0,) * _n
        if single_buffer_weights:
            return pl.BlockSpec(shape, index_map, pipeline_mode=pl.Buffered(1))
        return pl.BlockSpec(shape, index_map)

    flops = B * (2 * N * C * (3 * C)          # QKV projection
                 + 2 * H * N * N * hd * 2     # q@k^T and attn@v
                 + 2 * N * C * C)             # output projection
    transcendentals = B * H * N * N           # exp in softmax
    bytes_accessed = (xb.size * 2 + wqkv_b.size * 2 + wproj_b.size * 2
                      + bproj2d.size * 4 + B * N * C * out_itemsize)

    kernel = functools.partial(_attention_kernel,
                               num_heads=num_heads, scale=scale)

    return pl.pallas_call(
        kernel,
        out_shape=jax.ShapeDtypeStruct((B, N, C), x.dtype),
        grid_spec=pltpu.PrefetchScalarGridSpec(
            num_scalar_prefetch=0,
            grid=(grid_b,),
            in_specs=[
                pl.BlockSpec((block_b, N, C), lambda b: (b, 0, 0)),   # x
                const_spec((C, 3 * C)),                               # W_qkv
                const_spec((C, C)),                                   # W_proj
                const_spec((1, C)),                                   # b_proj
            ],
            out_specs=pl.BlockSpec((block_b, N, C), lambda b: (b, 0, 0)),
        ),
        compiler_params=pltpu.CompilerParams(
            dimension_semantics=("parallel",),
            vmem_limit_bytes=vmem_budget,
        ),
        cost_estimate=pl.CostEstimate(
            flops=flops,
            transcendentals=transcendentals,
            bytes_accessed=bytes_accessed,
        ),
    )(xb, wqkv_b, wproj_b, bproj2d)


def attention_reference(x, w_qkv, w_proj, b_proj, *, num_heads, scale):
    """Pure-JAX f32 reference mirroring the PyTorch forward exactly."""
    B, N, C = x.shape
    hd = C // num_heads
    qkv = jnp.einsum('bnc,cd->bnd', x, w_qkv)                  # (B, N, 3C)
    qkv = qkv.reshape(B, N, 3, num_heads, hd).transpose(2, 0, 3, 1, 4)
    q, k, v = qkv[0], qkv[1], qkv[2]                           # (B, H, N, hd)
    attn = jnp.einsum('bhnd,bhmd->bhnm', q, k) * scale
    attn = jax.nn.softmax(attn, axis=-1)
    out = jnp.einsum('bhnm,bhmd->bhnd', attn, v)               # (B, H, N, hd)
    out = out.transpose(0, 2, 1, 3).reshape(B, N, C)
    return jnp.einsum('bnc,cd->bnd', out, w_proj) + b_proj


if __name__ == "__main__":
    # Small shapes consistent with the module: dim divisible by num_heads.
    B, N, C = 2, 16, 64
    NUM_HEADS = 8
    HEAD_DIM = C // NUM_HEADS
    SCALE = HEAD_DIM ** (-0.5)           # qk_scale=None -> head_dim**-0.5

    key = jax.random.PRNGKey(0)
    kx, kqkv, kproj, kb = jax.random.split(key, 4)

    x = jax.random.normal(kx, (B, N, C), dtype=jnp.float32)
    # qkv_bias=False -> no bias on the QKV projection (module default).
    w_qkv = jax.random.normal(kqkv, (C, 3 * C), dtype=jnp.float32) * 0.02
    w_proj = jax.random.normal(kproj, (C, C), dtype=jnp.float32) * 0.02
    b_proj = jax.random.normal(kb, (C,), dtype=jnp.float32) * 0.02

    # TODO(synk): attn_drop / proj_drop are identity (p=0.0); stochastic
    # dropout (training mode) is not implemented in the kernel.

    ref = attention_reference(x, w_qkv, w_proj, b_proj,
                              num_heads=NUM_HEADS, scale=SCALE)

    def run_and_check(single_buffer_weights):
        out = attention_pallas(x, w_qkv, w_proj, b_proj,
                               num_heads=NUM_HEADS, scale=SCALE,
                               single_buffer_weights=single_buffer_weights)
        out = jax.block_until_ready(out)
        assert out.shape == (B, N, C)
        # bf16 matmul operands (f32 accumulation) + approx reciprocal -> loosen
        # tolerance relative to the pure-f32 reference.
        assert jnp.allclose(out, ref, atol=2e-2, rtol=2e-2), "mismatch vs reference"
        return out

    try:
        out = run_and_check(single_buffer_weights=True)
    except Exception:
        # This JAX build rejects pipeline_mode=pl.Buffered(1) on input specs;
        # fall back to default (double-buffered) weight BlockSpecs.
        out = run_and_check(single_buffer_weights=False)

    print("KERNEL_OK")
</pallas_src>

<mosaic_0001>
module attributes {stable_mosaic.version = 11 : i64} {
  func.func @_attention_kernel(%arg0: i32, %arg1: memref<1x16x64xbf16, #tpu.memory_space<vmem>>, %arg2: memref<64x192xbf16, #tpu.memory_space<vmem>>, %arg3: memref<64x64xbf16, #tpu.memory_space<vmem>>, %arg4: memref<1x64xf32, #tpu.memory_space<vmem>>, %arg5: memref<1x16x64xf32, #tpu.memory_space<vmem>>) attributes {dimension_semantics = [#tpu.dimension_semantics<parallel>], iteration_bounds = array<i64: 2>, scalar_prefetch = 0 : i64, scratch_operands = 0 : i64, tpu.core_type = #tpu.core_type<tc>, window_params = [{transform_indices = @transform_0, window_bounds = array<i64: 1, 16, 64>}, {pipeline_mode = #tpu.pipeline_mode<synchronous>, transform_indices = @transform_1, window_bounds = array<i64: 64, 192>}, {pipeline_mode = #tpu.pipeline_mode<synchronous>, transform_indices = @transform_2, window_bounds = array<i64: 64, 64>}, {pipeline_mode = #tpu.pipeline_mode<synchronous>, transform_indices = @transform_3, window_bounds = array<i64: 1, 64>}, {transform_indices = @transform_4, window_bounds = array<i64: 1, 16, 64>}]} {
    %c0 = arith.constant 0 : index
    %c0_0 = arith.constant 0 : index
    %c0_1 = arith.constant 0 : index
    %0 = vector.load %arg1[%c0, %c0_0, %c0_1] : memref<1x16x64xbf16, #tpu.memory_space<vmem>>, vector<1x16x64xbf16>
    %1 = vector.shape_cast %0 : vector<1x16x64xbf16> to vector<16x64xbf16>
    %c0_2 = arith.constant 0 : index
    %c0_3 = arith.constant 0 : index
    %2 = vector.load %arg2[%c0_2, %c0_3] : memref<64x192xbf16, #tpu.memory_space<vmem>>, vector<64x192xbf16>
    %cst = arith.constant dense<0.000000e+00> : vector<16x192xf32>
    %3 = tpu.matmul %1, %2, %cst {dimension_numbers = #tpu.dot_dimension_numbers<[1], [0], [0], [1], [0, 0, 1, 1], [], []>} : vector<16x64xbf16>, vector<64x192xbf16>, vector<16x192xf32> -> vector<16x192xf32>
    %4 = arith.truncf %3 : vector<16x192xf32> to vector<16x192xbf16>
    %5 = vector.extract_strided_slice %4 {offsets = [0, 0], sizes = [16, 8], strides = [1, 1]} : vector<16x192xbf16> to vector<16x8xbf16>
    %6 = vector.extract_strided_slice %4 {offsets = [0, 8], sizes = [16, 8], strides = [1, 1]} : vector<16x192xbf16> to vector<16x8xbf16>
    %7 = vector.extract_strided_slice %4 {offsets = [0, 16], sizes = [16, 8], strides = [1, 1]} : vector<16x192xbf16> to vector<16x8xbf16>
    %8 = vector.extract_strided_slice %4 {offsets = [0, 24], sizes = [16, 8], strides = [1, 1]} : vector<16x192xbf16> to vector<16x8xbf16>
    %9 = vector.extract_strided_slice %4 {offsets = [0, 32], sizes = [16, 8], strides = [1, 1]} : vector<16x192xbf16> to vector<16x8xbf16>
    %10 = vector.extract_strided_slice %4 {offsets = [0, 40], sizes = [16, 8], strides = [1, 1]} : vector<16x192xbf16> to vector<16x8xbf16>
    %11 = vector.extract_strided_slice %4 {offsets = [0, 48], sizes = [16, 8], strides = [1, 1]} : vector<16x192xbf16> to vector<16x8xbf16>
    %12 = vector.extract_strided_slice %4 {offsets = [0, 56], sizes = [16, 8], strides = [1, 1]} : vector<16x192xbf16> to vector<16x8xbf16>
    %13 = vector.shape_cast %5 : vector<16x8xbf16> to vector<1x16x8xbf16>
    %14 = vector.shape_cast %6 : vector<16x8xbf16> to vector<1x16x8xbf16>
    %15 = vector.shape_cast %7 : vector<16x8xbf16> to vector<1x16x8xbf16>
    %16 = vector.shape_cast %8 : vector<16x8xbf16> to vector<1x16x8xbf16>
    %17 = vector.shape_cast %9 : vector<16x8xbf16> to vector<1x16x8xbf16>
    %18 = vector.shape_cast %10 : vector<16x8xbf16> to vector<1x16x8xbf16>
    %19 = vector.shape_cast %11 : vector<16x8xbf16> to vector<1x16x8xbf16>
    %20 = vector.shape_cast %12 : vector<16x8xbf16> to vector<1x16x8xbf16>
    %21 = tpu.concatenate %13, %14, %15, %16, %17, %18, %19, %20 in 0 : vector<1x16x8xbf16>, vector<1x16x8xbf16>, vector<1x16x8xbf16>, vector<1x16x8xbf16>, vector<1x16x8xbf16>, vector<1x16x8xbf16>, vector<1x16x8xbf16>, vector<1x16x8xbf16> -> vector<8x16x8xbf16>
    %cst_4 = arith.constant 3.535160e-01 : bf16
    %22 = vector.broadcast %cst_4 : bf16 to vector<8x16x8xbf16>
    %23 = arith.mulf %21, %22 : vector<8x16x8xbf16>
    %24 = vector.extract_strided_slice %4 {offsets = [0, 64], sizes = [16, 8], strides = [1, 1]} : vector<16x192xbf16> to vector<16x8xbf16>
    %25 = vector.extract_strided_slice %4 {offsets = [0, 72], sizes = [16, 8], strides = [1, 1]} : vector<16x192xbf16> to vector<16x8xbf16>
    %26 = vector.extract_strided_slice %4 {offsets = [0, 80], sizes = [16, 8], strides = [1, 1]} : vector<16x192xbf16> to vector<16x8xbf16>
    %27 = vector.extract_strided_slice %4 {offsets = [0, 88], sizes = [16, 8], strides = [1, 1]} : vector<16x192xbf16> to vector<16x8xbf16>
    %28 = vector.extract_strided_slice %4 {offsets = [0, 96], sizes = [16, 8], strides = [1, 1]} : vector<16x192xbf16> to vector<16x8xbf16>
    %29 = vector.extract_strided_slice %4 {offsets = [0, 104], sizes = [16, 8], strides = [1, 1]} : vector<16x192xbf16> to vector<16x8xbf16>
    %30 = vector.extract_strided_slice %4 {offsets = [0, 112], sizes = [16, 8], strides = [1, 1]} : vector<16x192xbf16> to vector<16x8xbf16>
    %31 = vector.extract_strided_slice %4 {offsets = [0, 120], sizes = [16, 8], strides = [1, 1]} : vector<16x192xbf16> to vector<16x8xbf16>
    %32 = vector.shape_cast %24 : vector<16x8xbf16> to vector<1x16x8xbf16>
    %33 = vector.shape_cast %25 : vector<16x8xbf16> to vector<1x16x8xbf16>
    %34 = vector.shape_cast %26 : vector<16x8xbf16> to vector<1x16x8xbf16>
    %35 = vector.shape_cast %27 : vector<16x8xbf16> to vector<1x16x8xbf16>
    %36 = vector.shape_cast %28 : vector<16x8xbf16> to vector<1x16x8xbf16>
    %37 = vector.shape_cast %29 : vector<16x8xbf16> to vector<1x16x8xbf16>
    %38 = vector.shape_cast %30 : vector<16x8xbf16> to vector<1x16x8xbf16>
    %39 = vector.shape_cast %31 : vector<16x8xbf16> to vector<1x16x8xbf16>
    %40 = tpu.concatenate %32, %33, %34, %35, %36, %37, %38, %39 in 0 : vector<1x16x8xbf16>, vector<1x16x8xbf16>, vector<1x16x8xbf16>, vector<1x16x8xbf16>, vector<1x16x8xbf16>, vector<1x16x8xbf16>, vector<1x16x8xbf16>, vector<1x16x8xbf16> -> vector<8x16x8xbf16>
    %41 = vector.extract_strided_slice %4 {offsets = [0, 128], sizes = [16, 8], strides = [1, 1]} : vector<16x192xbf16> to vector<16x8xbf16>
    %42 = vector.extract_strided_slice %4 {offsets = [0, 136], sizes = [16, 8], strides = [1, 1]} : vector<16x192xbf16> to vector<16x8xbf16>
    %43 = vector.extract_strided_slice %4 {offsets = [0, 144], sizes = [16, 8], strides = [1, 1]} : vector<16x192xbf16> to vector<16x8xbf16>
    %44 = vector.extract_strided_slice %4 {offsets = [0, 152], sizes = [16, 8], strides = [1, 1]} : vector<16x192xbf16> to vector<16x8xbf16>
    %45 = vector.extract_strided_slice %4 {offsets = [0, 160], sizes = [16, 8], strides = [1, 1]} : vector<16x192xbf16> to vector<16x8xbf16>
    %46 = vector.extract_strided_slice %4 {offsets = [0, 168], sizes = [16, 8], strides = [1, 1]} : vector<16x192xbf16> to vector<16x8xbf16>
    %47 = vector.extract_strided_slice %4 {offsets = [0, 176], sizes = [16, 8], strides = [1, 1]} : vector<16x192xbf16> to vector<16x8xbf16>
    %48 = vector.extract_strided_slice %4 {offsets = [0, 184], sizes = [16, 8], strides = [1, 1]} : vector<16x192xbf16> to vector<16x8xbf16>
    %49 = vector.shape_cast %41 : vector<16x8xbf16> to vector<1x16x8xbf16>
    %50 = vector.shape_cast %42 : vector<16x8xbf16> to vector<1x16x8xbf16>
    %51 = vector.shape_cast %43 : vector<16x8xbf16> to vector<1x16x8xbf16>
    %52 = vector.shape_cast %44 : vector<16x8xbf16> to vector<1x16x8xbf16>
    %53 = vector.shape_cast %45 : vector<16x8xbf16> to vector<1x16x8xbf16>
    %54 = vector.shape_cast %46 : vector<16x8xbf16> to vector<1x16x8xbf16>
    %55 = vector.shape_cast %47 : vector<16x8xbf16> to vector<1x16x8xbf16>
    %56 = vector.shape_cast %48 : vector<16x8xbf16> to vector<1x16x8xbf16>
    %57 = tpu.concatenate %49, %50, %51, %52, %53, %54, %55, %56 in 0 : vector<1x16x8xbf16>, vector<1x16x8xbf16>, vector<1x16x8xbf16>, vector<1x16x8xbf16>, vector<1x16x8xbf16>, vector<1x16x8xbf16>, vector<1x16x8xbf16>, vector<1x16x8xbf16> -> vector<8x16x8xbf16>
    "tpu.trace_start"() <{level = 10 : i32, message = "bnd,bmd->bnm"}> : () -> ()
    %cst_5 = arith.constant dense<0.000000e+00> : vector<8x16x16xf32>
    %58 = tpu.matmul %23, %40, %cst_5 {dimension_numbers = #tpu.dot_dimension_numbers<[2], [2], [1], [1], [0, 0, 0, 1, 1, 1], [0], [0]>} : vector<8x16x8xbf16>, vector<8x16x8xbf16>, vector<8x16x16xf32> -> vector<8x16x16xf32>
    "tpu.trace_stop"() : () -> ()
    %cst_6 = arith.constant dense<0xFF800000> : vector<8x16xf32>
    %59 = vector.multi_reduction <maximumf>, %58, %cst_6 [2] : vector<8x16x16xf32> to vector<8x16xf32>
    %60 = vector.shape_cast %59 : vector<8x16xf32> to vector<8x16x1xf32>
    %61 = vector.broadcast %60 : vector<8x16x1xf32> to vector<8x16x16xf32>
    %62 = arith.subf %58, %61 : vector<8x16x16xf32>
    %63 = math.exp %62 : vector<8x16x16xf32>
    %cst_7 = arith.constant dense<0.000000e+00> : vector<8x16xf32>
    %64 = vector.multi_reduction <add>, %63, %cst_7 [2] : vector<8x16x16xf32> to vector<8x16xf32>
    %65 = vector.shape_cast %64 : vector<8x16xf32> to vector<8x16x1xf32>
    %66 = arith.truncf %63 : vector<8x16x16xf32> to vector<8x16x16xbf16>
    "tpu.trace_start"() <{level = 10 : i32, message = "bnm,bmd->bnd"}> : () -> ()
    %cst_8 = arith.constant dense<0.000000e+00> : vector<8x16x8xf32>
    %67 = tpu.matmul %66, %57, %cst_8 {dimension_numbers = #tpu.dot_dimension_numbers<[2], [1], [1], [2], [0, 0, 0, 1, 1, 2], [0], [0]>} : vector<8x16x16xbf16>, vector<8x16x8xbf16>, vector<8x16x8xf32> -> vector<8x16x8xf32>
    "tpu.trace_stop"() : () -> ()
    %68 = tpu.reciprocal %65 {approx = true} : vector<8x16x1xf32> -> vector<8x16x1xf32>
    %69 = vector.broadcast %68 : vector<8x16x1xf32> to vector<8x16x8xf32>
    %70 = arith.mulf %67, %69 : vector<8x16x8xf32>
    %71 = arith.truncf %70 : vector<8x16x8xf32> to vector<8x16x8xbf16>
    %72 = vector.extract_strided_slice %71 {offsets = [0, 0, 0], sizes = [1, 16, 8], strides = [1, 1, 1]} : vector<8x16x8xbf16> to vector<1x16x8xbf16>
    %73 = vector.shape_cast %72 : vector<1x16x8xbf16> to vector<16x8xbf16>
    %74 = vector.extract_strided_slice %71 {offsets = [1, 0, 0], sizes = [1, 16, 8], strides = [1, 1, 1]} : vector<8x16x8xbf16> to vector<1x16x8xbf16>
    %75 = vector.shape_cast %74 : vector<1x16x8xbf16> to vector<16x8xbf16>
    %76 = vector.extract_strided_slice %71 {offsets = [2, 0, 0], sizes = [1, 16, 8], strides = [1, 1, 1]} : vector<8x16x8xbf16> to vector<1x16x8xbf16>
    %77 = vector.shape_cast %76 : vector<1x16x8xbf16> to vector<16x8xbf16>
    %78 = vector.extract_strided_slice %71 {offsets = [3, 0, 0], sizes = [1, 16, 8], strides = [1, 1, 1]} : vector<8x16x8xbf16> to vector<1x16x8xbf16>
    %79 = vector.shape_cast %78 : vector<1x16x8xbf16> to vector<16x8xbf16>
    %80 = vector.extract_strided_slice %71 {offsets = [4, 0, 0], sizes = [1, 16, 8], strides = [1, 1, 1]} : vector<8x16x8xbf16> to vector<1x16x8xbf16>
    %81 = vector.shape_cast %80 : vector<1x16x8xbf16> to vector<16x8xbf16>
    %82 = vector.extract_strided_slice %71 {offsets = [5, 0, 0], sizes = [1, 16, 8], strides = [1, 1, 1]} : vector<8x16x8xbf16> to vector<1x16x8xbf16>
    %83 = vector.shape_cast %82 : vector<1x16x8xbf16> to vector<16x8xbf16>
    %84 = vector.extract_strided_slice %71 {offsets = [6, 0, 0], sizes = [1, 16, 8], strides = [1, 1, 1]} : vector<8x16x8xbf16> to vector<1x16x8xbf16>
    %85 = vector.shape_cast %84 : vector<1x16x8xbf16> to vector<16x8xbf16>
    %86 = vector.extract_strided_slice %71 {offsets = [7, 0, 0], sizes = [1, 16, 8], strides = [1, 1, 1]} : vector<8x16x8xbf16> to vector<1x16x8xbf16>
    %87 = vector.shape_cast %86 : vector<1x16x8xbf16> to vector<16x8xbf16>
    %88 = tpu.concatenate %73, %75, %77, %79, %81, %83, %85, %87 in 1 : vector<16x8xbf16>, vector<16x8xbf16>, vector<16x8xbf16>, vector<16x8xbf16>, vector<16x8xbf16>, vector<16x8xbf16>, vector<16x8xbf16>, vector<16x8xbf16> -> vector<16x64xbf16>
    %c0_9 = arith.constant 0 : index
    %c0_10 = arith.constant 0 : index
    %89 = vector.load %arg3[%c0_9, %c0_10] : memref<64x64xbf16, #tpu.memory_space<vmem>>, vector<64x64xbf16>
    %cst_11 = arith.constant dense<0.000000e+00> : vector<16x64xf32>
    %90 = tpu.matmul %88, %89, %cst_11 {dimension_numbers = #tpu.dot_dimension_numbers<[1], [0], [0], [1], [0, 0, 1, 1], [], []>} : vector<16x64xbf16>, vector<64x64xbf16>, vector<16x64xf32> -> vector<16x64xf32>
    %c0_12 = arith.constant 0 : index
    %c0_13 = arith.constant 0 : index
    %91 = vector.load %arg4[%c0_12, %c0_13] : memref<1x64xf32, #tpu.memory_space<vmem>>, vector<1x64xf32>
    %92 = vector.broadcast %91 : vector<1x64xf32> to vector<16x64xf32>
    %93 = arith.addf %90, %92 : vector<16x64xf32>
    %c0_14 = arith.constant 0 : index
    %c0_15 = arith.constant 0 : index
    %c0_16 = arith.constant 0 : index
    %94 = vector.load %arg5[%c0_14, %c0_15, %c0_16] : memref<1x16x64xf32, #tpu.memory_space<vmem>>, vector<1x16x64xf32>
    %95 = vector.shape_cast %94 : vector<1x16x64xf32> to vector<16x64xf32>
    %96 = vector.shape_cast %93 : vector<16x64xf32> to vector<1x16x64xf32>
    tpu.vector_store %arg5[%c0_14, %c0_15, %c0_16], %96 {strides = array<i32>} : memref<1x16x64xf32, #tpu.memory_space<vmem>>, vector<1x16x64xf32>,
    return
  }
  func.func @transform_0(%arg0: i32) -> (i32, i32, i32) {
    %c0_i32 = arith.constant 0 : i32
    %c0_i32_0 = arith.constant 0 : i32
    %c0_i32_1 = arith.constant 0 : i32
    return %arg0, %c0_i32, %c0_i32_0 : i32, i32, i32
  }
  func.func @transform_1(%arg0: i32) -> (i32, i32) {
    %c0_i32 = arith.constant 0 : i32
    %c0_i32_0 = arith.constant 0 : i32
    %c0_i32_1 = arith.constant 0 : i32
    return %c0_i32, %c0_i32_0 : i32, i32
  }
  func.func @transform_2(%arg0: i32) -> (i32, i32) {
    %c0_i32 = arith.constant 0 : i32
    %c0_i32_0 = arith.constant 0 : i32
    %c0_i32_1 = arith.constant 0 : i32
    return %c0_i32, %c0_i32_0 : i32, i32
  }
  func.func @transform_3(%arg0: i32) -> (i32, i32) {
    %c0_i32 = arith.constant 0 : i32
    %c0_i32_0 = arith.constant 0 : i32
    %c0_i32_1 = arith.constant 0 : i32
    return %c0_i32, %c0_i32_0 : i32, i32
  }
  func.func @transform_4(%arg0: i32) -> (i32, i32, i32) {
    %c0_i32 = arith.constant 0 : i32
    %c0_i32_0 = arith.constant 0 : i32
    %c0_i32_1 = arith.constant 0 : i32
    return %arg0, %c0_i32, %c0_i32_0 : i32, i32, i32
  }
}

module attributes {stable_mosaic.version = 11 : i64} {
  func.func @_attention_kernel(%arg0: i32, %arg1: memref<1x16x64xbf16, #tpu.memory_space<vmem>>, %arg2: memref<64x192xbf16, #tpu.memory_space<vmem>>, %arg3: memref<64x64xbf16, #tpu.memory_space<vmem>>, %arg4: memref<1x64xf32, #tpu.memory_space<vmem>>, %arg5: memref<1x16x64xf32, #tpu.memory_space<vmem>>) attributes {dimension_semantics = [#tpu.dimension_semantics<parallel>], iteration_bounds = array<i64: 2>, scalar_prefetch = 0 : i64, scratch_operands = 0 : i64, tpu.core_type = #tpu.core_type<tc>, window_params = [{transform_indices = @transform_0, window_bounds = array<i64: 1, 16, 64>}, {pipeline_mode = #tpu.pipeline_mode<synchronous>, transform_indices = @transform_1, window_bounds = array<i64: 64, 192>}, {pipeline_mode = #tpu.pipeline_mode<synchronous>, transform_indices = @transform_2, window_bounds = array<i64: 64, 64>}, {pipeline_mode = #tpu.pipeline_mode<synchronous>, transform_indices = @transform_3, window_bounds = array<i64: 1, 64>}, {transform_indices = @transform_4, window_bounds = array<i64: 1, 16, 64>}]} {
    %c0 = arith.constant 0 : index
    %c0_0 = arith.constant 0 : index
    %c0_1 = arith.constant 0 : index
    %0 = vector.load %arg1[%c0, %c0_0, %c0_1] : memref<1x16x64xbf16, #tpu.memory_space<vmem>>, vector<1x16x64xbf16>
    %1 = vector.shape_cast %0 : vector<1x16x64xbf16> to vector<16x64xbf16>
    %c0_2 = arith.constant 0 : index
    %c0_3 = arith.constant 0 : index
    %2 = vector.load %arg2[%c0_2, %c0_3] : memref<64x192xbf16, #tpu.memory_space<vmem>>, vector<64x192xbf16>
    %cst = arith.constant dense<0.000000e+00> : vector<16x192xf32>
    %3 = tpu.matmul %1, %2, %cst {dimension_numbers = #tpu.dot_dimension_numbers<[1], [0], [0], [1], [0, 0, 1, 1], [], []>} : vector<16x64xbf16>, vector<64x192xbf16>, vector<16x192xf32> -> vector<16x192xf32>
    %4 = arith.truncf %3 : vector<16x192xf32> to vector<16x192xbf16>
    %5 = vector.extract_strided_slice %4 {offsets = [0, 0], sizes = [16, 8], strides = [1, 1]} : vector<16x192xbf16> to vector<16x8xbf16>
    %6 = vector.extract_strided_slice %4 {offsets = [0, 8], sizes = [16, 8], strides = [1, 1]} : vector<16x192xbf16> to vector<16x8xbf16>
    %7 = vector.extract_strided_slice %4 {offsets = [0, 16], sizes = [16, 8], strides = [1, 1]} : vector<16x192xbf16> to vector<16x8xbf16>
    %8 = vector.extract_strided_slice %4 {offsets = [0, 24], sizes = [16, 8], strides = [1, 1]} : vector<16x192xbf16> to vector<16x8xbf16>
    %9 = vector.extract_strided_slice %4 {offsets = [0, 32], sizes = [16, 8], strides = [1, 1]} : vector<16x192xbf16> to vector<16x8xbf16>
    %10 = vector.extract_strided_slice %4 {offsets = [0, 40], sizes = [16, 8], strides = [1, 1]} : vector<16x192xbf16> to vector<16x8xbf16>
    %11 = vector.extract_strided_slice %4 {offsets = [0, 48], sizes = [16, 8], strides = [1, 1]} : vector<16x192xbf16> to vector<16x8xbf16>
    %12 = vector.extract_strided_slice %4 {offsets = [0, 56], sizes = [16, 8], strides = [1, 1]} : vector<16x192xbf16> to vector<16x8xbf16>
    %13 = vector.shape_cast %5 : vector<16x8xbf16> to vector<1x16x8xbf16>
    %14 = vector.shape_cast %6 : vector<16x8xbf16> to vector<1x16x8xbf16>
    %15 = vector.shape_cast %7 : vector<16x8xbf16> to vector<1x16x8xbf16>
    %16 = vector.shape_cast %8 : vector<16x8xbf16> to vector<1x16x8xbf16>
    %17 = vector.shape_cast %9 : vector<16x8xbf16> to vector<1x16x8xbf16>
    %18 = vector.shape_cast %10 : vector<16x8xbf16> to vector<1x16x8xbf16>
    %19 = vector.shape_cast %11 : vector<16x8xbf16> to vector<1x16x8xbf16>
    %20 = vector.shape_cast %12 : vector<16x8xbf16> to vector<1x16x8xbf16>
    %21 = tpu.concatenate %13, %14, %15, %16, %17, %18, %19, %20 in 0 : vector<1x16x8xbf16>, vector<1x16x8xbf16>, vector<1x16x8xbf16>, vector<1x16x8xbf16>, vector<1x16x8xbf16>, vector<1x16x8xbf16>, vector<1x16x8xbf16>, vector<1x16x8xbf16> -> vector<8x16x8xbf16>
    %cst_4 = arith.constant 3.535160e-01 : bf16
    %22 = vector.broadcast %cst_4 : bf16 to vector<8x16x8xbf16>
    %23 = arith.mulf %21, %22 : vector<8x16x8xbf16>
    %24 = vector.extract_strided_slice %4 {offsets = [0, 64], sizes = [16, 8], strides = [1, 1]} : vector<16x192xbf16> to vector<16x8xbf16>
    %25 = vector.extract_strided_slice %4 {offsets = [0, 72], sizes = [16, 8], strides = [1, 1]} : vector<16x192xbf16> to vector<16x8xbf16>
    %26 = vector.extract_strided_slice %4 {offsets = [0, 80], sizes = [16, 8], strides = [1, 1]} : vector<16x192xbf16> to vector<16x8xbf16>
    %27 = vector.extract_strided_slice %4 {offsets = [0, 88], sizes = [16, 8], strides = [1, 1]} : vector<16x192xbf16> to vector<16x8xbf16>
    %28 = vector.extract_strided_slice %4 {offsets = [0, 96], sizes = [16, 8], strides = [1, 1]} : vector<16x192xbf16> to vector<16x8xbf16>
    %29 = vector.extract_strided_slice %4 {offsets = [0, 104], sizes = [16, 8], strides = [1, 1]} : vector<16x192xbf16> to vector<16x8xbf16>
    %30 = vector.extract_strided_slice %4 {offsets = [0, 112], sizes = [16, 8], strides = [1, 1]} : vector<16x192xbf16> to vector<16x8xbf16>
    %31 = vector.extract_strided_slice %4 {offsets = [0, 120], sizes = [16, 8], strides = [1, 1]} : vector<16x192xbf16> to vector<16x8xbf16>
    %32 = vector.shape_cast %24 : vector<16x8xbf16> to vector<1x16x8xbf16>
    %33 = vector.shape_cast %25 : vector<16x8xbf16> to vector<1x16x8xbf16>
    %34 = vector.shape_cast %26 : vector<16x8xbf16> to vector<1x16x8xbf16>
    %35 = vector.shape_cast %27 : vector<16x8xbf16> to vector<1x16x8xbf16>
    %36 = vector.shape_cast %28 : vector<16x8xbf16> to vector<1x16x8xbf16>
    %37 = vector.shape_cast %29 : vector<16x8xbf16> to vector<1x16x8xbf16>
    %38 = vector.shape_cast %30 : vector<16x8xbf16> to vector<1x16x8xbf16>
    %39 = vector.shape_cast %31 : vector<16x8xbf16> to vector<1x16x8xbf16>
    %40 = tpu.concatenate %32, %33, %34, %35, %36, %37, %38, %39 in 0 : vector<1x16x8xbf16>, vector<1x16x8xbf16>, vector<1x16x8xbf16>, vector<1x16x8xbf16>, vector<1x16x8xbf16>, vector<1x16x8xbf16>, vector<1x16x8xbf16>, vector<1x16x8xbf16> -> vector<8x16x8xbf16>
    %41 = vector.extract_strided_slice %4 {offsets = [0, 128], sizes = [16, 8], strides = [1, 1]} : vector<16x192xbf16> to vector<16x8xbf16>
    %42 = vector.extract_strided_slice %4 {offsets = [0, 136], sizes = [16, 8], strides = [1, 1]} : vector<16x192xbf16> to vector<16x8xbf16>
    %43 = vector.extract_strided_slice %4 {offsets = [0, 144], sizes = [16, 8], strides = [1, 1]} : vector<16x192xbf16> to vector<16x8xbf16>
    %44 = vector.extract_strided_slice %4 {offsets = [0, 152], sizes = [16, 8], strides = [1, 1]} : vector<16x192xbf16> to vector<16x8xbf16>
    %45 = vector.extract_strided_slice %4 {offsets = [0, 160], sizes = [16, 8], strides = [1, 1]} : vector<16x192xbf16> to vector<16x8xbf16>
    %46 = vector.extract_strided_slice %4 {offsets = [0, 168], sizes = [16, 8], strides = [1, 1]} : vector<16x192xbf16> to vector<16x8xbf16>
    %47 = vector.extract_strided_slice %4 {offsets = [0, 176], sizes = [16, 8], strides = [1, 1]} : vector<16x192xbf16> to vector<16x8xbf16>
    %48 = vector.extract_strided_slice %4 {offsets = [0, 184], sizes = [16, 8], strides = [1, 1]} : vector<16x192xbf16> to vector<16x8xbf16>
    %49 = vector.shape_cast %41 : vector<16x8xbf16> to vector<1x16x8xbf16>
    %50 = vector.shape_cast %42 : vector<16x8xbf16> to vector<1x16x8xbf16>
    %51 = vector.shape_cast %43 : vector<16x8xbf16> to vector<1x16x8xbf16>
    %52 = vector.shape_cast %44 : vector<16x8xbf16> to vector<1x16x8xbf16>
    %53 = vector.shape_cast %45 : vector<16x8xbf16> to vector<1x16x8xbf16>
    %54 = vector.shape_cast %46 : vector<16x8xbf16> to vector<1x16x8xbf16>
    %55 = vector.shape_cast %47 : vector<16x8xbf16> to vector<1x16x8xbf16>
    %56 = vector.shape_cast %48 : vector<16x8xbf16> to vector<1x16x8xbf16>
    %57 = tpu.concatenate %49, %50, %51, %52, %53, %54, %55, %56 in 0 : vector<1x16x8xbf16>, vector<1x16x8xbf16>, vector<1x16x8xbf16>, vector<1x16x8xbf16>, vector<1x16x8xbf16>, vector<1x16x8xbf16>, vector<1x16x8xbf16>, vector<1x16x8xbf16> -> vector<8x16x8xbf16>
    "tpu.trace_start"() <{level = 10 : i32, message = "bnd,bmd->bnm"}> : () -> ()
    %cst_5 = arith.constant dense<0.000000e+00> : vector<8x16x16xf32>
    %58 = tpu.matmul %23, %40, %cst_5 {dimension_numbers = #tpu.dot_dimension_numbers<[2], [2], [1], [1], [0, 0, 0, 1, 1, 1], [0], [0]>} : vector<8x16x8xbf16>, vector<8x16x8xbf16>, vector<8x16x16xf32> -> vector<8x16x16xf32>
    "tpu.trace_stop"() : () -> ()
    %cst_6 = arith.constant dense<0xFF800000> : vector<8x16xf32>
    %59 = vector.multi_reduction <maximumf>, %58, %cst_6 [2] : vector<8x16x16xf32> to vector<8x16xf32>
    %60 = vector.shape_cast %59 : vector<8x16xf32> to vector<8x16x1xf32>
    %61 = vector.broadcast %60 : vector<8x16x1xf32> to vector<8x16x16xf32>
    %62 = arith.subf %58, %61 : vector<8x16x16xf32>
    %63 = math.exp %62 : vector<8x16x16xf32>
    %cst_7 = arith.constant dense<0.000000e+00> : vector<8x16xf32>
    %64 = vector.multi_reduction <add>, %63, %cst_7 [2] : vector<8x16x16xf32> to vector<8x16xf32>
    %65 = vector.shape_cast %64 : vector<8x16xf32> to vector<8x16x1xf32>
    %66 = arith.truncf %63 : vector<8x16x16xf32> to vector<8x16x16xbf16>
    "tpu.trace_start"() <{level = 10 : i32, message = "bnm,bmd->bnd"}> : () -> ()
    %cst_8 = arith.constant dense<0.000000e+00> : vector<8x16x8xf32>
    %67 = tpu.matmul %66, %57, %cst_8 {dimension_numbers = #tpu.dot_dimension_numbers<[2], [1], [1], [2], [0, 0, 0, 1, 1, 2], [0], [0]>} : vector<8x16x16xbf16>, vector<8x16x8xbf16>, vector<8x16x8xf32> -> vector<8x16x8xf32>
    "tpu.trace_stop"() : () -> ()
    %68 = tpu.reciprocal %65 {approx = true} : vector<8x16x1xf32> -> vector<8x16x1xf32>
    %69 = vector.broadcast %68 : vector<8x16x1xf32> to vector<8x16x8xf32>
    %70 = arith.mulf %67, %69 : vector<8x16x8xf32>
    %71 = arith.truncf %70 : vector<8x16x8xf32> to vector<8x16x8xbf16>
    %72 = vector.extract_strided_slice %71 {offsets = [0, 0, 0], sizes = [1, 16, 8], strides = [1, 1, 1]} : vector<8x16x8xbf16> to vector<1x16x8xbf16>
    %73 = vector.shape_cast %72 : vector<1x16x8xbf16> to vector<16x8xbf16>
    %74 = vector.extract_strided_slice %71 {offsets = [1, 0, 0], sizes = [1, 16, 8], strides = [1, 1, 1]} : vector<8x16x8xbf16> to vector<1x16x8xbf16>
    %75 = vector.shape_cast %74 : vector<1x16x8xbf16> to vector<16x8xbf16>
    %76 = vector.extract_strided_slice %71 {offsets = [2, 0, 0], sizes = [1, 16, 8], strides = [1, 1, 1]} : vector<8x16x8xbf16> to vector<1x16x8xbf16>
    %77 = vector.shape_cast %76 : vector<1x16x8xbf16> to vector<16x8xbf16>
    %78 = vector.extract_strided_slice %71 {offsets = [3, 0, 0], sizes = [1, 16, 8], strides = [1, 1, 1]} : vector<8x16x8xbf16> to vector<1x16x8xbf16>
    %79 = vector.shape_cast %78 : vector<1x16x8xbf16> to vector<16x8xbf16>
    %80 = vector.extract_strided_slice %71 {offsets = [4, 0, 0], sizes = [1, 16, 8], strides = [1, 1, 1]} : vector<8x16x8xbf16> to vector<1x16x8xbf16>
    %81 = vector.shape_cast %80 : vector<1x16x8xbf16> to vector<16x8xbf16>
    %82 = vector.extract_strided_slice %71 {offsets = [5, 0, 0], sizes = [1, 16, 8], strides = [1, 1, 1]} : vector<8x16x8xbf16> to vector<1x16x8xbf16>
    %83 = vector.shape_cast %82 : vector<1x16x8xbf16> to vector<16x8xbf16>
    %84 = vector.extract_strided_slice %71 {offsets = [6, 0, 0], sizes = [1, 16, 8], strides = [1, 1, 1]} : vector<8x16x8xbf16> to vector<1x16x8xbf16>
    %85 = vector.shape_cast %84 : vector<1x16x8xbf16> to vector<16x8xbf16>
    %86 = vector.extract_strided_slice %71 {offsets = [7, 0, 0], sizes = [1, 16, 8], strides = [1, 1, 1]} : vector<8x16x8xbf16> to vector<1x16x8xbf16>
    %87 = vector.shape_cast %86 : vector<1x16x8xbf16> to vector<16x8xbf16>
    %88 = tpu.concatenate %73, %75, %77, %79, %81, %83, %85, %87 in 1 : vector<16x8xbf16>, vector<16x8xbf16>, vector<16x8xbf16>, vector<16x8xbf16>, vector<16x8xbf16>, vector<16x8xbf16>, vector<16x8xbf16>, vector<16x8xbf16> -> vector<16x64xbf16>
    %c0_9 = arith.constant 0 : index
    %c0_10 = arith.constant 0 : index
    %89 = vector.load %arg3[%c0_9, %c0_10] : memref<64x64xbf16, #tpu.memory_space<vmem>>, vector<64x64xbf16>
    %cst_11 = arith.constant dense<0.000000e+00> : vector<16x64xf32>
    %90 = tpu.matmul %88, %89, %cst_11 {dimension_numbers = #tpu.dot_dimension_numbers<[1], [0], [0], [1], [0, 0, 1, 1], [], []>} : vector<16x64xbf16>, vector<64x64xbf16>, vector<16x64xf32> -> vector<16x64xf32>
    %c0_12 = arith.constant 0 : index
    %c0_13 = arith.constant 0 : index
    %91 = vector.load %arg4[%c0_12, %c0_13] : memref<1x64xf32, #tpu.memory_space<vmem>>, vector<1x64xf32>
    %92 = vector.broadcast %91 : vector<1x64xf32> to vector<16x64xf32>
    %93 = arith.addf %90, %92 : vector<16x64xf32>
    %c0_14 = arith.constant 0 : index
    %c0_15 = arith.constant 0 : index
    %c0_16 = arith.constant 0 : index
    %94 = vector.load %arg5[%c0_14, %c0_15, %c0_16] : memref<1x16x64xf32, #tpu.memory_space<vmem>>, vector<1x16x64xf32>
    %95 = vector.shape_cast %94 : vector<1x16x64xf32> to vector<16x64xf32>
    %96 = vector.shape_cast %93 : vector<16x64xf32> to vector<1x16x64xf32>
    tpu.vector_store %arg5[%c0_14, %c0_15, %c0_16], %96 {strides = array<i32>} : memref<1x16x64xf32, #tpu.memory_space<vmem>>, vector<1x16x64xf32>,
    return
  }
  func.func @transform_0(%arg0: i32) -> (i32, i32, i32) {
    %c0_i32 = arith.constant 0 : i32
    %c0_i32_0 = arith.constant 0 : i32
    %c0_i32_1 = arith.constant 0 : i32
    return %arg0, %c0_i32, %c0_i32_0 : i32, i32, i32
  }
  func.func @transform_1(%arg0: i32) -> (i32, i32) {
    %c0_i32 = arith.constant 0 : i32
    %c0_i32_0 = arith.constant 0 : i32
    %c0_i32_1 = arith.constant 0 : i32
    return %c0_i32, %c0_i32_0 : i32, i32
  }
  func.func @transform_2(%arg0: i32) -> (i32, i32) {
    %c0_i32 = arith.constant 0 : i32
    %c0_i32_0 = arith.constant 0 : i32
    %c0_i32_1 = arith.constant 0 : i32
    return %c0_i32, %c0_i32_0 : i32, i32
  }
  func.func @transform_3(%arg0: i32) -> (i32, i32) {
    %c0_i32 = arith.constant 0 : i32
    %c0_i32_0 = arith.constant 0 : i32
    %c0_i32_1 = arith.constant 0 : i32
    return %c0_i32, %c0_i32_0 : i32, i32
  }
  func.func @transform_4(%arg0: i32) -> (i32, i32, i32) {
    %c0_i32 = arith.constant 0 : i32
    %c0_i32_0 = arith.constant 0 : i32
    %c0_i32_1 = arith.constant 0 : i32
    return %arg0, %c0_i32, %c0_i32_0 : i32, i32, i32
  }
}

</mosaic_0001>

<llo_original>
// kernel: tpu_custom_call.1
$region0: #{tpu_custom_call.1}
  #allocation0 [shape = 'u32[]', space=smem, size = 0x4, offset = 0x4, fixed_abs, tag = 'smem constant byte address 0x4 - core index']
  #allocation1 [shape = 'u32[144,128]{1,0:T(1,128)}', space=vmem, size = 0x12000, scoped, tag = 'internal scratch']
  %s0 = inlined_call_operand.hbm [shape: bf16[2,16,64], index: 0, kind: input, shape index: {}]
  %s1 = inlined_call_operand.hbm [shape: bf16[64,192], index: 1, kind: input, shape index: {}]
  %s2 = inlined_call_operand.hbm [shape: bf16[64,64], index: 2, kind: input, shape index: {}]
  %s3 = inlined_call_operand.vmem [shape: f32[1,64], index: 3, kind: input, shape index: {}]
  %s4 = inlined_call_operand.hbm [shape: f32[2,16,64], index: 4, kind: output, shape index: {}]
  %s5 = sld [smem:[#allocation0]]
  $region61: #{tpu_custom_call.1} parent=0
    _
  %s7 = ssub.s32 1, %s5
  %s8 = scalar_select 0, %s7, %s5
  $region1: #{tpu_custom_call.1} parent=0
    #allocation2 [shape = 'u8[8192]{0}', space=vmem, size = 0x2000, scoped, tag = 'input window, operand 0']
    #allocation3 [shape = 's32[2]{0}', space=sflag, size = 0x8, scoped, tag = 'scoped memory for tpu_custom_call.1']
    #allocation4 [shape = 's32[2]{0}', space=sflag, size = 0x8, scoped, tag = 'scoped memory for tpu_custom_call.1']
    #allocation5 [shape = 'u8[32768]{0}', space=vmem, size = 0x8000, scoped, tag = 'input window, operand 1, single buffered']
    #allocation6 [shape = 's32[1]{0}', space=sflag, size = 0x4, scoped, tag = 'scoped memory for tpu_custom_call.1']
    #allocation7 [shape = 'u8[16384]{0}', space=vmem, size = 0x4000, scoped, tag = 'input window, operand 2, single buffered']
    #allocation8 [shape = 'u8[16384]{0}', space=vmem, size = 0x4000, scoped, tag = 'output window, operand 0']
    %9 = vsyncpa [#allocation3], 0
    %s10 = scalar_lea.sflag [#allocation3], 1
    %11 = vsyncpa %s10, 0
    %12 = vsyncpa [#allocation6], 0
    %13 = vsyncpa [#allocation4], 0
    %s14 = scalar_lea.sflag [#allocation4], 1
    %15 = vsyncpa %s14, 0
    loop: start=0, step=1, limit=4
    $region2: #{tpu_custom_call.1} parent=1 // loop_pre_header
      _
    $region3: #{tpu_custom_call.1} parent=1 // loop_header
      %s17 = sphi 0, %s21
      %p18 = scmp.ge.s32.totalorder %s17, 4
      %s27 = sphi 0, %s29
      %s30 = sphi 0, %s27
      %s31 = sphi 0, %s30
      %s47 = sphi 0, %s31
      %s51 = sphi 0, %s51
      %s53 = sphi 0, %s51
      %s54 = sphi 0, %s53
      %s68 = sphi 0, %s54
      %s72 = sphi 0, %s72
      %s74 = sphi 0, %s72
      %s75 = sphi 0, %s74
      %s89 = sphi 0, %s75
      %s93 = sphi 0, %s93
      %s95 = sphi 0, %s93
      %s96 = sphi 0, %s95
      %s110 = sphi 0, %s96
      %s116 = sphi 0, %s118
      %s119 = sphi 0, %s116
      %s120 = sphi 0, %s119
      %s136 = sphi 0, %s120
    $region4: #{tpu_custom_call.1} parent=1 // loop_header_branch
      %20 = sbr.rel (%p18) target = $region8
    $region5: #{tpu_custom_call.1} parent=1 // loop_body
      %s22 = ssub.s32 %s17, 1
      %s23 = ssub.s32 %s17, 2
      %s24 = sadd.s32 %s17, 1
      %s25 = ssub.s32 %s17, %s24
      %p26 = scmp.eq.s32.totalorder %s25, 0
      %s28 = sadd.s32 %s27, 1
      %s29 = scalar_select %p26, %s27, %s28
      %p32 = pneg %p26
      %p33 = scmp.eq.s32.totalorder %s17, 1
      %p34 = por %p32, %p33
      %p35 = scmp.ne.s32.totalorder %s27, %s30
      %p36 = scmp.eq.s32.totalorder %s17, 0
      %p37 = por %p35, %p36
      %p38 = scmp.ne.s32.totalorder %s27, %s30
      %p39 = scmp.eq.s32.totalorder %s22, 1
      %p40 = por %p38, %p39
      %p41 = scmp.ne.s32.totalorder %s30, %s31
      %p42 = scmp.eq.s32.totalorder %s22, 0
      %p43 = por %p41, %p42
      %p44 = scmp.ne.s32.totalorder %s30, %s31
      %p45 = scmp.eq.s32.totalorder %s23, 1
      %p46 = por %p44, %p45
      %p48 = scmp.ne.s32.totalorder %s31, %s47
      %p49 = scmp.eq.s32.totalorder %s23, 0
      %p50 = por %p48, %p49
      %s52 = sadd.s32 %s51, 1
      %p55 = scmp.eq.s32.totalorder %s17, 1
      %p56 = scmp.ne.s32.totalorder %s51, %s53
      %p57 = scmp.eq.s32.totalorder %s17, 0
      %p58 = por %p56, %p57
      %p59 = scmp.ne.s32.totalorder %s51, %s53
      %p60 = scmp.eq.s32.totalorder %s22, 1
      %p61 = por %p59, %p60
      %p62 = scmp.ne.s32.totalorder %s53, %s54
      %p63 = scmp.eq.s32.totalorder %s22, 0
      %p64 = por %p62, %p63
      %p65 = scmp.ne.s32.totalorder %s53, %s54
      %p66 = scmp.eq.s32.totalorder %s23, 1
      %p67 = por %p65, %p66
      %p69 = scmp.ne.s32.totalorder %s54, %s68
      %p70 = scmp.eq.s32.totalorder %s23, 0
      %p71 = por %p69, %p70
      %s73 = sadd.s32 %s72, 1
      %p76 = scmp.eq.s32.totalorder %s17, 1
      %p77 = scmp.ne.s32.totalorder %s72, %s74
      %p78 = scmp.eq.s32.totalorder %s17, 0
      %p79 = por %p77, %p78
      %p80 = scmp.ne.s32.totalorder %s72, %s74
      %p81 = scmp.eq.s32.totalorder %s22, 1
      %p82 = por %p80, %p81
      %p83 = scmp.ne.s32.totalorder %s74, %s75
      %p84 = scmp.eq.s32.totalorder %s22, 0
      %p85 = por %p83, %p84
      %p86 = scmp.ne.s32.totalorder %s74, %s75
      %p87 = scmp.eq.s32.totalorder %s23, 1
      %p88 = por %p86, %p87
      %p90 = scmp.ne.s32.totalorder %s75, %s89
      %p91 = scmp.eq.s32.totalorder %s23, 0
      %p92 = por %p90, %p91
      %s94 = sadd.s32 %s93, 1
      %p97 = scmp.eq.s32.totalorder %s17, 1
      %p98 = scmp.ne.s32.totalorder %s93, %s95
      %p99 = scmp.eq.s32.totalorder %s17, 0
      %p100 = por %p98, %p99
      %p101 = scmp.ne.s32.totalorder %s93, %s95
      %p102 = scmp.eq.s32.totalorder %s22, 1
      %p103 = por %p101, %p102
      %p104 = scmp.ne.s32.totalorder %s95, %s96
      %p105 = scmp.eq.s32.totalorder %s22, 0
      %p106 = por %p104, %p105
      %p107 = scmp.ne.s32.totalorder %s95, %s96
      %p108 = scmp.eq.s32.totalorder %s23, 1
      %p109 = por %p107, %p108
      %p111 = scmp.ne.s32.totalorder %s96, %s110
      %p112 = scmp.eq.s32.totalorder %s23, 0
      %p113 = por %p111, %p112
      %s114 = ssub.s32 %s17, %s24
      %p115 = scmp.eq.s32.totalorder %s114, 0
      %s117 = sadd.s32 %s116, 1
      %s118 = scalar_select %p115, %s116, %s117
      %p121 = pneg %p115
      %p122 = scmp.eq.s32.totalorder %s17, 1
      %p123 = por %p121, %p122
      %p124 = scmp.ne.s32.totalorder %s116, %s119
      %p125 = scmp.eq.s32.totalorder %s17, 0
      %p126 = por %p124, %p125
      %p127 = scmp.ne.s32.totalorder %s116, %s119
      %p128 = scmp.eq.s32.totalorder %s22, 1
      %p129 = por %p127, %p128
      %p130 = scmp.ne.s32.totalorder %s119, %s120
      %p131 = scmp.eq.s32.totalorder %s22, 0
      %p132 = por %p130, %p131
      %p133 = scmp.ne.s32.totalorder %s119, %s120
      %p134 = scmp.eq.s32.totalorder %s23, 1
      %p135 = por %p133, %p134
      %p137 = scmp.ne.s32.totalorder %s120, %s136
      %p138 = scmp.eq.s32.totalorder %s23, 0
      %p139 = por %p137, %p138
      %p140 = scmp.le.s32.totalorder 1, %s17
      %p141 = scmp.lt.s32.totalorder %s17, 3
      %p142 = pnand %p140, %p141
      %p143 = pneg %p142
      // Predicated region
      $region9: #{tpu_custom_call.1} parent=5 // pred_check
        _
      $region10: #{tpu_custom_call.1} parent=5 // pred_check_branch
        %145 = sbr.rel (%p142) target = $region12
      $region11: #{tpu_custom_call.1} parent=5 // pred_region
        %s146 = ssub.s32 %s17, 1
        // Predicated region
        $region13: #{tpu_custom_call.1} parent=11 // pred_check
          %p147 = pneg %p64
        $region14: #{tpu_custom_call.1} parent=11 // pred_check_branch
          %149 = sbr.rel (%p147) target = $region16
        $region15: #{tpu_custom_call.1} parent=11 // pred_region
          %s151 = ssub.s32 1024, 1024
          %152 = vsyncadd [#allocation6], %s151
          %s153 = sshll.u32 [#allocation5], 4
          %s154 = int_to_ptr.vmem [resolvable:$true] %s153
          %159 = dma.hbm_to_vmem [thread:$0]  %s1, 1024, %s154, [#allocation6], 128, 128, 8
        $region16: #{tpu_custom_call.1} parent=11 // pred_fallthru
          _
        // Predicated region
        $region17: #{tpu_custom_call.1} parent=11 // pred_check
          %p160 = pneg %p85
        $region18: #{tpu_custom_call.1} parent=11 // pred_check_branch
          %162 = sbr.rel (%p160) target = $region20
        $region19: #{tpu_custom_call.1} parent=11 // pred_region
          %s164 = ssub.s32 512, 512
          %165 = vsyncadd [#allocation6], %s164
          %s166 = sshll.u32 [#allocation7], 4
          %s167 = int_to_ptr.vmem [resolvable:$true] %s166
          %172 = dma.hbm_to_vmem [thread:$0]  %s2, 512, %s167, [#allocation6], 64, 64, 4
        $region20: #{tpu_custom_call.1} parent=11 // pred_fallthru
          _
        // Predicated region
        $region21: #{tpu_custom_call.1} parent=11 // pred_check
          %p173 = pneg %p106
        $region22: #{tpu_custom_call.1} parent=11 // pred_check_branch
          %175 = sbr.rel (%p173) target = $region24
        $region23: #{tpu_custom_call.1} parent=11 // pred_region
          _
        $region24: #{tpu_custom_call.1} parent=11 // pred_fallthru
          _
      $region12: #{tpu_custom_call.1} parent=5 // pred_fallthru
        _
      %p176 = scmp.lt.s32.totalorder %s17, 2
      // Predicated region
      $region25: #{tpu_custom_call.1} parent=5 // pred_check
        %p177 = pneg %p176
      $region26: #{tpu_custom_call.1} parent=5 // pred_check_branch
        %179 = sbr.rel (%p177) target = $region28
      $region27: #{tpu_custom_call.1} parent=5 // pred_region
        // Predicated region
        $region29: #{tpu_custom_call.1} parent=27 // pred_check
          %p180 = pneg %p37
        $region30: #{tpu_custom_call.1} parent=27 // pred_check_branch
          %182 = sbr.rel (%p180) target = $region32
        $region31: #{tpu_custom_call.1} parent=27 // pred_region
          %s183 = sand.u32 %s27, 1
          %s184 = scalar_lea.sflag [#allocation3], %s183
          %s185 = sand.u32 %s27, 1
          %s186 = smul.addr %s185, 8
          %s187 = scalar_lea.vmem [#allocation2], %s186
          %s189 = ssub.s32 128, 128
          %190 = vsyncadd %s184, %s189
          %s191 = smul.addr %s17, 2
          %s192 = smul.addr %s191, 64
          %s193 = scalar_lea.hbm %s0, %s192
          %s194 = sshll.u32 %s187, 4
          %s195 = int_to_ptr.vmem [resolvable:$true] %s194
          %200 = dma.hbm_to_vmem [thread:$0]  %s193, 128, %s195, %s184, 64, 64, 4
        $region32: #{tpu_custom_call.1} parent=27 // pred_fallthru
          _
      $region28: #{tpu_custom_call.1} parent=5 // pred_fallthru
        _
      %p201 = scmp.le.s32.totalorder 1, %s17
      %p202 = scmp.lt.s32.totalorder %s17, 3
      %p203 = pnand %p201, %p202
      %p204 = pneg %p203
      // Predicated region
      $region33: #{tpu_custom_call.1} parent=5 // pred_check
        _
      $region34: #{tpu_custom_call.1} parent=5 // pred_check_branch
        %206 = sbr.rel (%p203) target = $region36
      $region35: #{tpu_custom_call.1} parent=5 // pred_region
        %s207 = ssub.s32 %s17, 1
        %s208 = sand.u32 %s30, 1
        %s209 = scalar_lea.sflag [#allocation3], %s208
        %s210 = sand.u32 %s30, 1
        %s211 = smul.addr %s210, 8
        %s212 = scalar_lea.vmem [#allocation2], %s211
        // Predicated region
        $region37: #{tpu_custom_call.1} parent=35 // pred_check
          %p213 = pneg %p43
        $region38: #{tpu_custom_call.1} parent=35 // pred_check_branch
          %215 = sbr.rel (%p213) target = $region40
        $region39: #{tpu_custom_call.1} parent=35 // pred_region
          %216 = dma.done %s209, 128
        $region40: #{tpu_custom_call.1} parent=35 // pred_fallthru
          _
        // Predicated region
        $region41: #{tpu_custom_call.1} parent=35 // pred_check
          %p217 = pneg %p64
        $region42: #{tpu_custom_call.1} parent=35 // pred_check_branch
          %219 = sbr.rel (%p217) target = $region44
        $region43: #{tpu_custom_call.1} parent=35 // pred_region
          %220 = dma.done [#allocation6], 1024
        $region44: #{tpu_custom_call.1} parent=35 // pred_fallthru
          _
        // Predicated region
        $region45: #{tpu_custom_call.1} parent=35 // pred_check
          %p221 = pneg %p85
        $region46: #{tpu_custom_call.1} parent=35 // pred_check_branch
          %223 = sbr.rel (%p221) target = $region48
        $region47: #{tpu_custom_call.1} parent=35 // pred_region
          %224 = dma.done [#allocation6], 512
        $region48: #{tpu_custom_call.1} parent=35 // pred_fallthru
          _
        %s225 = sand.u32 %s30, 1
        %s226 = scalar_lea.sflag [#allocation3], %s225
        %s227 = sand.u32 %s30, 1
        %s228 = smul.addr %s227, 8
        %s229 = scalar_lea.vmem [#allocation2], %s228
        %p230 = pneg %p43
        %p231 = pneg %p40
        %p232 = pneg %p64
        %p233 = pneg %p61
        %p234 = pneg %p85
        %p235 = pneg %p82
        %p236 = pneg %p106
        %p237 = pneg %p103
        %p238 = pneg %p132
        %p239 = pneg %p129
        %s240 = sand.u32 %s119, 1
        %s241 = scalar_lea.sflag [#allocation4], %s240
        %s242 = sand.u32 %s119, 1
        %s243 = smul.addr %s242, 16
        %s244 = scalar_lea.vmem [#allocation8], %s243
        %v247 = vld [vmem:[%s212] sm:$0xf]
        %v248 = vld [vmem:[%s212 + $0x4] sm:$0xf]
        %v249 = vld [vmem:[#allocation5] sm:$0xff]
        %v250 = vld [vmem:[#allocation5 + $0x8] sm:$0xff]
        %v251 = vld [vmem:[#allocation5 + $0x10] sm:$0xff]
        %v252 = vld [vmem:[#allocation5 + $0x18] sm:$0xff]
        %v253 = vld [vmem:[#allocation5 + $0x20] sm:$0xff]
        %v254 = vld [vmem:[#allocation5 + $0x28] sm:$0xff]
        %v255 = vld [vmem:[#allocation5 + $0x30] sm:$0xff]
        %v256 = vld [vmem:[#allocation5 + $0x38] sm:$0xff]
        %v259 = vunpack.c.l.b16 %v247
        %v260 = vunpack.c.l.b16 %v248
        %v261 = vpack.c.b16 %v260, %v259
        %v270 = vunpack.c.l.b16 %v249
        %v271 = vunpack.c.h.b16 %v249
        %v272 = vunpack.c.l.b16 %v250
        %v273 = vunpack.c.h.b16 %v250
        %v274 = vunpack.c.l.b16 %v251
        %v275 = vunpack.c.h.b16 %v251
        %v276 = vunpack.c.l.b16 %v252
        %v277 = vunpack.c.h.b16 %v252
        %v278 = vunpack.c.l.b16 %v253
        %v279 = vunpack.c.h.b16 %v253
        %v280 = vunpack.c.l.b16 %v254
        %v281 = vunpack.c.h.b16 %v254
        %v282 = vunpack.c.l.b16 %v255
        %v283 = vunpack.c.h.b16 %v255
        %v284 = vunpack.c.l.b16 %v256
        %v285 = vunpack.c.h.b16 %v256
        %v286 = vpack.c.b16 %v272, %v270
        %v287 = vpack.c.b16 %v273, %v271
        %v288 = vpack.c.b16 %v276, %v274
        %v289 = vpack.c.b16 %v277, %v275
        %v290 = vpack.c.b16 %v280, %v278
        %v291 = vpack.c.b16 %v281, %v279
        %v292 = vpack.c.b16 %v284, %v282
        %v293 = vpack.c.b16 %v285, %v283
        %vm302 = vcmask 523264
        %v304 = vsel %vm302, %v261, 0
        %306 = vmatprep.subr.bf16.mxu0 0
        %307 = vmatpush1.bf16.msra.mxu0 0
        %308 = vmatprep.subr.bf16.mxu0 0
        %309 = vmatpush1.bf16.msra.mxu0 0
        %310 = vmatprep.subr.bf16.mxu0 0
        %311 = vmatpush1.bf16.msra.mxu0 0
        %312 = vmatprep.subr.bf16.mxu0 0
        %313 = vmatpush1.bf16.msra.mxu0 0
        %314 = vmatprep.subr.bf16.mxu0 %v293
        %315 = vmatpush1.bf16.msra.mxu0 %v292
        %316 = vmatprep.subr.bf16.mxu0 %v291
        %317 = vmatpush1.bf16.msra.mxu0 %v290
        %318 = vmatprep.subr.bf16.mxu0 %v289
        %319 = vmatpush1.bf16.msra.mxu0 %v288
        %320 = vmatprep.subr.bf16.mxu0 %v287
        %321 = vmatpush1.bf16.msra.mxu0 %v286
        %322 = vmatprep.subr.bf16.mxu0 0
        %323 = vmatpush2.bf16.msra.mxu0 0
        %324 = vmatprep.subr.bf16.mxu0 0
        %325 = vmatpush2.bf16.msra.mxu0 0
        %326 = vmatprep.subr.bf16.mxu0 0
        %327 = vmatpush2.bf16.msra.mxu0 0
        %328 = vmatprep.subr.bf16.mxu0 0
        %329 = vmatpush2.bf16.msra.mxu0 0
        %330 = vmatprep.subr.bf16.mxu0 0
        %331 = vmatpush2.bf16.msra.mxu0 0
        %332 = vmatprep.subr.bf16.mxu0 0
        %333 = vmatpush2.bf16.msra.mxu0 0
        %334 = vmatprep.subr.bf16.mxu0 0
        %335 = vmatpush2.bf16.msra.mxu0 0
        %336 = vmatprep.subr.bf16.mxu0 0
        %337 = vmatpush2.bf16.msra.mxu0 0
        %338 = vmatprep.mubr.bf16.mxu0 0
        %339 = vmatmul.mubr.bf16.gmra.mxu0 %v304
        %v340 = vpop.f32.mrf.mxu0
        %v341 = vadd.f32 0.0, %v340
        %v342 = vpop.f32.mrf.mxu0
        %v343 = vadd.f32 0.0, %v342
        %v344 = vpop.f32.mrf.mxu0
        %v345 = vadd.f32 0.0, %v344
        %v346 = vpop.f32.mrf.mxu0
        %v347 = vadd.f32 0.0, %v346
        %348 = vdwg.mxu0
        %v349 = vpack.c.bf16 %v345, %v341
        %v350 = vpack.c.bf16 %v347, %v343
        %352 = vrot.lane.b32.xlu0 %v349, 120
        %v353 = vpop.permute.xlu0 %352
        %355 = vrot.lane.b32.xlu0 %v349, 112
        %v356 = vpop.permute.xlu0 %355
        %358 = vrot.lane.b32.xlu0 %v349, 104
        %v359 = vpop.permute.xlu0 %358
        %361 = vrot.lane.b32.xlu0 %v349, 96
        %v362 = vpop.permute.xlu0 %361
        %364 = vrot.lane.b32.xlu0 %v349, 88
        %v365 = vpop.permute.xlu0 %364
        %367 = vrot.lane.b32.xlu0 %v349, 80
        %v368 = vpop.permute.xlu0 %367
        %370 = vrot.lane.b32.xlu0 %v349, 72
        %v371 = vpop.permute.xlu0 %370
        %v373 = vmul.bf16 %v349, 1052065461
        %v374 = vmul.bf16 %v353, 1052065461
        %v375 = vmul.bf16 %v356, 1052065461
        %v376 = vmul.bf16 %v359, 1052065461
        %v377 = vmul.bf16 %v362, 1052065461
        %v378 = vmul.bf16 %v365, 1052065461
        %v379 = vmul.bf16 %v368, 1052065461
        %v380 = vmul.bf16 %v371, 1052065461
        %382 = vrot.lane.b32.xlu0 %v350, 120
        %v383 = vpop.permute.xlu0 %382
        %385 = vrot.lane.b32.xlu0 %v350, 112
        %v386 = vpop.permute.xlu0 %385
        %388 = vrot.lane.b32.xlu0 %v350, 104
        %v389 = vpop.permute.xlu0 %388
        %391 = vrot.lane.b32.xlu0 %v350, 96
        %v392 = vpop.permute.xlu0 %391
        %394 = vrot.lane.b32.xlu0 %v350, 88
        %v395 = vpop.permute.xlu0 %394
        %397 = vrot.lane.b32.xlu0 %v350, 80
        %v398 = vpop.permute.xlu0 %397
        %400 = vrot.lane.b32.xlu0 %v350, 72
        %v401 = vpop.permute.xlu0 %400
        %403 = vrot.lane.b32.xlu0 %v349, 64
        %v404 = vpop.permute.xlu0 %403
        %vm405 = vcmask 64512
        %v407 = vsel %vm405, %v373, 0
        %v410 = vsel %vm405, %v404, 0
        %412 = vmatprep.subr.bf16.mxu0 0
        %413 = vmatpush1.bf16.xpose.msra.mxu0 0
        %414 = vmatprep.subr.bf16.mxu0 0
        %415 = vmatpush1.bf16.xpose.msra.mxu0 0
        %416 = vmatprep.subr.bf16.mxu0 0
        %417 = vmatpush1.bf16.xpose.msra.mxu0 0
        %418 = vmatprep.subr.bf16.mxu0 0
        %419 = vmatpush1.bf16.xpose.msra.mxu0 0
        %420 = vmatprep.subr.bf16.mxu0 0
        %421 = vmatpush1.bf16.xpose.msra.mxu0 0
        %422 = vmatprep.subr.bf16.mxu0 0
        %423 = vmatpush1.bf16.xpose.msra.mxu0 0
        %424 = vmatprep.subr.bf16.mxu0 0
        %425 = vmatpush1.bf16.xpose.msra.mxu0 0
        %426 = vmatprep.subr.bf16.mxu0 0
        %427 = vmatpush1.bf16.xpose.msra.mxu0 %v410
        %428 = vmatprep.subr.bf16.mxu0 0
        %429 = vmatpush2.bf16.xpose.msra.mxu0 0
        %430 = vmatprep.subr.bf16.mxu0 0
        %431 = vmatpush2.bf16.xpose.msra.mxu0 0
        %432 = vmatprep.subr.bf16.mxu0 0
        %433 = vmatpush2.bf16.xpose.msra.mxu0 0
        %434 = vmatprep.subr.bf16.mxu0 0
        %435 = vmatpush2.bf16.xpose.msra.mxu0 0
        %436 = vmatprep.subr.bf16.mxu0 0
        %437 = vmatpush2.bf16.xpose.msra.mxu0 0
        %438 = vmatprep.subr.bf16.mxu0 0
        %439 = vmatpush2.bf16.xpose.msra.mxu0 0
        %440 = vmatprep.subr.bf16.mxu0 0
        %441 = vmatpush2.bf16.xpose.msra.mxu0 0
        %442 = vmatprep.subr.bf16.mxu0 0
        %443 = vmatpush2.bf16.xpose.msra.mxu0 0
        %444 = vmatprep.mubr.bf16.mxu0 0
        %445 = vmatmul.mubr.bf16.gmra.mxu0 %v407
        %v446 = vpop.f32.mrf.mxu0
        %v447 = vadd.f32 0.0, %v446
        %v448 = vpop.f32.mrf.mxu0
        %v449 = vpop.f32.mrf.mxu0
        %v450 = vadd.f32 0.0, %v449
        %v451 = vpop.f32.mrf.mxu0
        %452 = vdwg.mxu0
        %453 = vrot.lane.b32.xlu0 %v353, 64
        %v454 = vpop.permute.xlu0 %453
        %v456 = vsel %vm405, %v374, 0
        %v459 = vsel %vm405, %v454, 0
        %461 = vmatprep.subr.bf16.mxu0 0
        %462 = vmatpush1.bf16.xpose.msra.mxu0 0
        %463 = vmatprep.subr.bf16.mxu0 0
        %464 = vmatpush1.bf16.xpose.msra.mxu0 0
        %465 = vmatprep.subr.bf16.mxu0 0
        %466 = vmatpush1.bf16.xpose.msra.mxu0 0
        %467 = vmatprep.subr.bf16.mxu0 0
        %468 = vmatpush1.bf16.xpose.msra.mxu0 0
        %469 = vmatprep.subr.bf16.mxu0 0
        %470 = vmatpush1.bf16.xpose.msra.mxu0 0
        %471 = vmatprep.subr.bf16.mxu0 0
        %472 = vmatpush1.bf16.xpose.msra.mxu0 0
        %473 = vmatprep.subr.bf16.mxu0 0
        %474 = vmatpush1.bf16.xpose.msra.mxu0 0
        %475 = vmatprep.subr.bf16.mxu0 0
        %476 = vmatpush1.bf16.xpose.msra.mxu0 %v459
        %477 = vmatprep.subr.bf16.mxu0 0
        %478 = vmatpush2.bf16.xpose.msra.mxu0 0
        %479 = vmatprep.subr.bf16.mxu0 0
        %480 = vmatpush2.bf16.xpose.msra.mxu0 0
        %481 = vmatprep.subr.bf16.mxu0 0
        %482 = vmatpush2.bf16.xpose.msra.mxu0 0
        %483 = vmatprep.subr.bf16.mxu0 0
        %484 = vmatpush2.bf16.xpose.msra.mxu0 0
        %485 = vmatprep.subr.bf16.mxu0 0
        %486 = vmatpush2.bf16.xpose.msra.mxu0 0
        %487 = vmatprep.subr.bf16.mxu0 0
        %488 = vmatpush2.bf16.xpose.msra.mxu0 0
        %489 = vmatprep.subr.bf16.mxu0 0
        %490 = vmatpush2.bf16.xpose.msra.mxu0 0
        %491 = vmatprep.subr.bf16.mxu0 0
        %492 = vmatpush2.bf16.xpose.msra.mxu0 0
        %493 = vmatprep.mubr.bf16.mxu0 0
        %494 = vmatmul.mubr.bf16.gmra.mxu0 %v456
        %v495 = vpop.f32.mrf.mxu0
        %v496 = vadd.f32 0.0, %v495
        %v497 = vpop.f32.mrf.mxu0
        %v498 = vpop.f32.mrf.mxu0
        %v499 = vadd.f32 0.0, %v498
        %v500 = vpop.f32.mrf.mxu0
        %501 = vdwg.mxu0
        %502 = vrot.lane.b32.xlu0 %v356, 64
        %v503 = vpop.permute.xlu0 %502
        %v505 = vsel %vm405, %v375, 0
        %v508 = vsel %vm405, %v503, 0
        %510 = vmatprep.subr.bf16.mxu0 0
        %511 = vmatpush1.bf16.xpose.msra.mxu0 0
        %512 = vmatprep.subr.bf16.mxu0 0
        %513 = vmatpush1.bf16.xpose.msra.mxu0 0
        %514 = vmatprep.subr.bf16.mxu0 0
        %515 = vmatpush1.bf16.xpose.msra.mxu0 0
        %516 = vmatprep.subr.bf16.mxu0 0
        %517 = vmatpush1.bf16.xpose.msra.mxu0 0
        %518 = vmatprep.subr.bf16.mxu0 0
        %519 = vmatpush1.bf16.xpose.msra.mxu0 0
        %520 = vmatprep.subr.bf16.mxu0 0
        %521 = vmatpush1.bf16.xpose.msra.mxu0 0
        %522 = vmatprep.subr.bf16.mxu0 0
        %523 = vmatpush1.bf16.xpose.msra.mxu0 0
        %524 = vmatprep.subr.bf16.mxu0 0
        %525 = vmatpush1.bf16.xpose.msra.mxu0 %v508
        %526 = vmatprep.subr.bf16.mxu0 0
        %527 = vmatpush2.bf16.xpose.msra.mxu0 0
        %528 = vmatprep.subr.bf16.mxu0 0
        %529 = vmatpush2.bf16.xpose.msra.mxu0 0
        %530 = vmatprep.subr.bf16.mxu0 0
        %531 = vmatpush2.bf16.xpose.msra.mxu0 0
        %532 = vmatprep.subr.bf16.mxu0 0
        %533 = vmatpush2.bf16.xpose.msra.mxu0 0
        %534 = vmatprep.subr.bf16.mxu0 0
        %535 = vmatpush2.bf16.xpose.msra.mxu0 0
        %536 = vmatprep.subr.bf16.mxu0 0
        %537 = vmatpush2.bf16.xpose.msra.mxu0 0
        %538 = vmatprep.subr.bf16.mxu0 0
        %539 = vmatpush2.bf16.xpose.msra.mxu0 0
        %540 = vmatprep.subr.bf16.mxu0 0
        %541 = vmatpush2.bf16.xpose.msra.mxu0 0
        %542 = vmatprep.mubr.bf16.mxu0 0
        %543 = vmatmul.mubr.bf16.gmra.mxu0 %v505
        %v544 = vpop.f32.mrf.mxu0
        %v545 = vadd.f32 0.0, %v544
        %v546 = vpop.f32.mrf.mxu0
        %v547 = vpop.f32.mrf.mxu0
        %v548 = vadd.f32 0.0, %v547
        %v549 = vpop.f32.mrf.mxu0
        %550 = vdwg.mxu0
        %551 = vrot.lane.b32.xlu0 %v359, 64
        %v552 = vpop.permute.xlu0 %551
        %v554 = vsel %vm405, %v376, 0
        %v557 = vsel %vm405, %v552, 0
        %559 = vmatprep.subr.bf16.mxu0 0
        %560 = vmatpush1.bf16.xpose.msra.mxu0 0
        %561 = vmatprep.subr.bf16.mxu0 0
        %562 = vmatpush1.bf16.xpose.msra.mxu0 0
        %563 = vmatprep.subr.bf16.mxu0 0
        %564 = vmatpush1.bf16.xpose.msra.mxu0 0
        %565 = vmatprep.subr.bf16.mxu0 0
        %566 = vmatpush1.bf16.xpose.msra.mxu0 0
        %567 = vmatprep.subr.bf16.mxu0 0
        %568 = vmatpush1.bf16.xpose.msra.mxu0 0
        %569 = vmatprep.subr.bf16.mxu0 0
        %570 = vmatpush1.bf16.xpose.msra.mxu0 0
        %571 = vmatprep.subr.bf16.mxu0 0
        %572 = vmatpush1.bf16.xpose.msra.mxu0 0
        %573 = vmatprep.subr.bf16.mxu0 0
        %574 = vmatpush1.bf16.xpose.msra.mxu0 %v557
        %575 = vmatprep.subr.bf16.mxu0 0
        %576 = vmatpush2.bf16.xpose.msra.mxu0 0
        %577 = vmatprep.subr.bf16.mxu0 0
        %578 = vmatpush2.bf16.xpose.msra.mxu0 0
        %579 = vmatprep.subr.bf16.mxu0 0
        %580 = vmatpush2.bf16.xpose.msra.mxu0 0
        %581 = vmatprep.subr.bf16.mxu0 0
        %582 = vmatpush2.bf16.xpose.msra.mxu0 0
        %583 = vmatprep.subr.bf16.mxu0 0
        %584 = vmatpush2.bf16.xpose.msra.mxu0 0
        %585 = vmatprep.subr.bf16.mxu0 0
        %586 = vmatpush2.bf16.xpose.msra.mxu0 0
        %587 = vmatprep.subr.bf16.mxu0 0
        %588 = vmatpush2.bf16.xpose.msra.mxu0 0
        %589 = vmatprep.subr.bf16.mxu0 0
        %590 = vmatpush2.bf16.xpose.msra.mxu0 0
        %591 = vmatprep.mubr.bf16.mxu0 0
        %592 = vmatmul.mubr.bf16.gmra.mxu0 %v554
        %v593 = vpop.f32.mrf.mxu0
        %v594 = vadd.f32 0.0, %v593
        %v595 = vpop.f32.mrf.mxu0
        %v596 = vpop.f32.mrf.mxu0
        %v597 = vadd.f32 0.0, %v596
        %v598 = vpop.f32.mrf.mxu0
        %599 = vdwg.mxu0
        %600 = vrot.lane.b32.xlu0 %v362, 64
        %v601 = vpop.permute.xlu0 %600
        %v603 = vsel %vm405, %v377, 0
        %v606 = vsel %vm405, %v601, 0
        %608 = vmatprep.subr.bf16.mxu0 0
        %609 = vmatpush1.bf16.xpose.msra.mxu0 0
        %610 = vmatprep.subr.bf16.mxu0 0
        %611 = vmatpush1.bf16.xpose.msra.mxu0 0
        %612 = vmatprep.subr.bf16.mxu0 0
        %613 = vmatpush1.bf16.xpose.msra.mxu0 0
        %614 = vmatprep.subr.bf16.mxu0 0
        %615 = vmatpush1.bf16.xpose.msra.mxu0 0
        %616 = vmatprep.subr.bf16.mxu0 0
        %617 = vmatpush1.bf16.xpose.msra.mxu0 0
        %618 = vmatprep.subr.bf16.mxu0 0
        %619 = vmatpush1.bf16.xpose.msra.mxu0 0
        %620 = vmatprep.subr.bf16.mxu0 0
        %621 = vmatpush1.bf16.xpose.msra.mxu0 0
        %622 = vmatprep.subr.bf16.mxu0 0
        %623 = vmatpush1.bf16.xpose.msra.mxu0 %v606
        %624 = vmatprep.subr.bf16.mxu0 0
        %625 = vmatpush2.bf16.xpose.msra.mxu0 0
        %626 = vmatprep.subr.bf16.mxu0 0
        %627 = vmatpush2.bf16.xpose.msra.mxu0 0
        %628 = vmatprep.subr.bf16.mxu0 0
        %629 = vmatpush2.bf16.xpose.msra.mxu0 0
        %630 = vmatprep.subr.bf16.mxu0 0
        %631 = vmatpush2.bf16.xpose.msra.mxu0 0
        %632 = vmatprep.subr.bf16.mxu0 0
        %633 = vmatpush2.bf16.xpose.msra.mxu0 0
        %634 = vmatprep.subr.bf16.mxu0 0
        %635 = vmatpush2.bf16.xpose.msra.mxu0 0
        %636 = vmatprep.subr.bf16.mxu0 0
        %637 = vmatpush2.bf16.xpose.msra.mxu0 0
        %638 = vmatprep.subr.bf16.mxu0 0
        %639 = vmatpush2.bf16.xpose.msra.mxu0 0
        %640 = vmatprep.mubr.bf16.mxu0 0
        %641 = vmatmul.mubr.bf16.gmra.mxu0 %v603
        %v642 = vpop.f32.mrf.mxu0
        %v643 = vadd.f32 0.0, %v642
        %v644 = vpop.f32.mrf.mxu0
        %v645 = vpop.f32.mrf.mxu0
        %v646 = vadd.f32 0.0, %v645
        %v647 = vpop.f32.mrf.mxu0
        %648 = vdwg.mxu0
        %649 = vrot.lane.b32.xlu0 %v365, 64
        %v650 = vpop.permute.xlu0 %649
        %v652 = vsel %vm405, %v378, 0
        %v655 = vsel %vm405, %v650, 0
        %657 = vmatprep.subr.bf16.mxu0 0
        %658 = vmatpush1.bf16.xpose.msra.mxu0 0
        %659 = vmatprep.subr.bf16.mxu0 0
        %660 = vmatpush1.bf16.xpose.msra.mxu0 0
        %661 = vmatprep.subr.bf16.mxu0 0
        %662 = vmatpush1.bf16.xpose.msra.mxu0 0
        %663 = vmatprep.subr.bf16.mxu0 0
        %664 = vmatpush1.bf16.xpose.msra.mxu0 0
        %665 = vmatprep.subr.bf16.mxu0 0
        %666 = vmatpush1.bf16.xpose.msra.mxu0 0
        %667 = vmatprep.subr.bf16.mxu0 0
        %668 = vmatpush1.bf16.xpose.msra.mxu0 0
        %669 = vmatprep.subr.bf16.mxu0 0
        %670 = vmatpush1.bf16.xpose.msra.mxu0 0
        %671 = vmatprep.subr.bf16.mxu0 0
        %672 = vmatpush1.bf16.xpose.msra.mxu0 %v655
        %673 = vmatprep.subr.bf16.mxu0 0
        %674 = vmatpush2.bf16.xpose.msra.mxu0 0
        %675 = vmatprep.subr.bf16.mxu0 0
        %676 = vmatpush2.bf16.xpose.msra.mxu0 0
        %677 = vmatprep.subr.bf16.mxu0 0
        %678 = vmatpush2.bf16.xpose.msra.mxu0 0
        %679 = vmatprep.subr.bf16.mxu0 0
        %680 = vmatpush2.bf16.xpose.msra.mxu0 0
        %681 = vmatprep.subr.bf16.mxu0 0
        %682 = vmatpush2.bf16.xpose.msra.mxu0 0
        %683 = vmatprep.subr.bf16.mxu0 0
        %684 = vmatpush2.bf16.xpose.msra.mxu0 0
        %685 = vmatprep.subr.bf16.mxu0 0
        %686 = vmatpush2.bf16.xpose.msra.mxu0 0
        %687 = vmatprep.subr.bf16.mxu0 0
        %688 = vmatpush2.bf16.xpose.msra.mxu0 0
        %689 = vmatprep.mubr.bf16.mxu0 0
        %690 = vmatmul.mubr.bf16.gmra.mxu0 %v652
        %v691 = vpop.f32.mrf.mxu0
        %v692 = vadd.f32 0.0, %v691
        %v693 = vpop.f32.mrf.mxu0
        %v694 = vpop.f32.mrf.mxu0
        %v695 = vadd.f32 0.0, %v694
        %v696 = vpop.f32.mrf.mxu0
        %697 = vdwg.mxu0
        %698 = vrot.lane.b32.xlu0 %v368, 64
        %v699 = vpop.permute.xlu0 %698
        %v701 = vsel %vm405, %v379, 0
        %v704 = vsel %vm405, %v699, 0
        %706 = vmatprep.subr.bf16.mxu0 0
        %707 = vmatpush1.bf16.xpose.msra.mxu0 0
        %708 = vmatprep.subr.bf16.mxu0 0
        %709 = vmatpush1.bf16.xpose.msra.mxu0 0
        %710 = vmatprep.subr.bf16.mxu0 0
        %711 = vmatpush1.bf16.xpose.msra.mxu0 0
        %712 = vmatprep.subr.bf16.mxu0 0
        %713 = vmatpush1.bf16.xpose.msra.mxu0 0
        %714 = vmatprep.subr.bf16.mxu0 0
        %715 = vmatpush1.bf16.xpose.msra.mxu0 0
        %716 = vmatprep.subr.bf16.mxu0 0
        %717 = vmatpush1.bf16.xpose.msra.mxu0 0
        %718 = vmatprep.subr.bf16.mxu0 0
        %719 = vmatpush1.bf16.xpose.msra.mxu0 0
        %720 = vmatprep.subr.bf16.mxu0 0
        %721 = vmatpush1.bf16.xpose.msra.mxu0 %v704
        %722 = vmatprep.subr.bf16.mxu0 0
        %723 = vmatpush2.bf16.xpose.msra.mxu0 0
        %724 = vmatprep.subr.bf16.mxu0 0
        %725 = vmatpush2.bf16.xpose.msra.mxu0 0
        %726 = vmatprep.subr.bf16.mxu0 0
        %727 = vmatpush2.bf16.xpose.msra.mxu0 0
        %728 = vmatprep.subr.bf16.mxu0 0
        %729 = vmatpush2.bf16.xpose.msra.mxu0 0
        %730 = vmatprep.subr.bf16.mxu0 0
        %731 = vmatpush2.bf16.xpose.msra.mxu0 0
        %732 = vmatprep.subr.bf16.mxu0 0
        %733 = vmatpush2.bf16.xpose.msra.mxu0 0
        %734 = vmatprep.subr.bf16.mxu0 0
        %735 = vmatpush2.bf16.xpose.msra.mxu0 0
        %736 = vmatprep.subr.bf16.mxu0 0
        %737 = vmatpush2.bf16.xpose.msra.mxu0 0
        %738 = vmatprep.mubr.bf16.mxu0 0
        %739 = vmatmul.mubr.bf16.gmra.mxu0 %v701
        %v740 = vpop.f32.mrf.mxu0
        %v741 = vadd.f32 0.0, %v740
        %v742 = vpop.f32.mrf.mxu0
        %v743 = vpop.f32.mrf.mxu0
        %v744 = vadd.f32 0.0, %v743
        %v745 = vpop.f32.mrf.mxu0
        %746 = vdwg.mxu0
        %747 = vrot.lane.b32.xlu0 %v371, 64
        %v748 = vpop.permute.xlu0 %747
        %v750 = vsel %vm405, %v380, 0
        %v753 = vsel %vm405, %v748, 0
        %755 = vmatprep.subr.bf16.mxu0 0
        %756 = vmatpush1.bf16.xpose.msra.mxu0 0
        %757 = vmatprep.subr.bf16.mxu0 0
        %758 = vmatpush1.bf16.xpose.msra.mxu0 0
        %759 = vmatprep.subr.bf16.mxu0 0
        %760 = vmatpush1.bf16.xpose.msra.mxu0 0
        %761 = vmatprep.subr.bf16.mxu0 0
        %762 = vmatpush1.bf16.xpose.msra.mxu0 0
        %763 = vmatprep.subr.bf16.mxu0 0
        %764 = vmatpush1.bf16.xpose.msra.mxu0 0
        %765 = vmatprep.subr.bf16.mxu0 0
        %766 = vmatpush1.bf16.xpose.msra.mxu0 0
        %767 = vmatprep.subr.bf16.mxu0 0
        %768 = vmatpush1.bf16.xpose.msra.mxu0 0
        %769 = vmatprep.subr.bf16.mxu0 0
        %770 = vmatpush1.bf16.xpose.msra.mxu0 %v753
        %771 = vmatprep.subr.bf16.mxu0 0
        %772 = vmatpush2.bf16.xpose.msra.mxu0 0
        %773 = vmatprep.subr.bf16.mxu0 0
        %774 = vmatpush2.bf16.xpose.msra.mxu0 0
        %775 = vmatprep.subr.bf16.mxu0 0
        %776 = vmatpush2.bf16.xpose.msra.mxu0 0
        %777 = vmatprep.subr.bf16.mxu0 0
        %778 = vmatpush2.bf16.xpose.msra.mxu0 0
        %779 = vmatprep.subr.bf16.mxu0 0
        %780 = vmatpush2.bf16.xpose.msra.mxu0 0
        %781 = vmatprep.subr.bf16.mxu0 0
        %782 = vmatpush2.bf16.xpose.msra.mxu0 0
        %783 = vmatprep.subr.bf16.mxu0 0
        %784 = vmatpush2.bf16.xpose.msra.mxu0 0
        %785 = vmatprep.subr.bf16.mxu0 0
        %786 = vmatpush2.bf16.xpose.msra.mxu0 0
        %787 = vmatprep.mubr.bf16.mxu0 0
        %788 = vmatmul.mubr.bf16.gmra.mxu0 %v750
        %v789 = vpop.f32.mrf.mxu0
        %v790 = vadd.f32 0.0, %v789
        %v791 = vpop.f32.mrf.mxu0
        %v792 = vpop.f32.mrf.mxu0
        %v793 = vadd.f32 0.0, %v792
        %v794 = vpop.f32.mrf.mxu0
        %795 = vdwg.mxu0
        %vm796 = vcmask 130048
        %v797 = vsel %vm796, %v447, -inf
        %798 = vmax.xlane.f32.xlu0 %v797
        %v799 = vpop.xlane.xlu0 %798
        %v800 = vsel %vm796, %v450, -inf
        %801 = vmax.xlane.f32.xlu0 %v800
        %v802 = vpop.xlane.xlu0 %801
        %v803 = vsel %vm796, %v496, -inf
        %804 = vmax.xlane.f32.xlu0 %v803
        %v805 = vpop.xlane.xlu0 %804
        %v806 = vsel %vm796, %v499, -inf
        %807 = vmax.xlane.f32.xlu0 %v806
        %v808 = vpop.xlane.xlu0 %807
        %v809 = vsel %vm796, %v545, -inf
        %810 = vmax.xlane.f32.xlu0 %v809
        %v811 = vpop.xlane.xlu0 %810
        %v812 = vsel %vm796, %v548, -inf
        %813 = vmax.xlane.f32.xlu0 %v812
        %v814 = vpop.xlane.xlu0 %813
        %v815 = vsel %vm796, %v594, -inf
        %816 = vmax.xlane.f32.xlu0 %v815
        %v817 = vpop.xlane.xlu0 %816
        %v818 = vsel %vm796, %v597, -inf
        %819 = vmax.xlane.f32.xlu0 %v818
        %v820 = vpop.xlane.xlu0 %819
        %v821 = vsel %vm796, %v643, -inf
        %822 = vmax.xlane.f32.xlu0 %v821
        %v823 = vpop.xlane.xlu0 %822
        %v824 = vsel %vm796, %v646, -inf
        %825 = vmax.xlane.f32.xlu0 %v824
        %v826 = vpop.xlane.xlu0 %825
        %v827 = vsel %vm796, %v692, -inf
        %828 = vmax.xlane.f32.xlu0 %v827
        %v829 = vpop.xlane.xlu0 %828
        %v830 = vsel %vm796, %v695, -inf
        %831 = vmax.xlane.f32.xlu0 %v830
        %v832 = vpop.xlane.xlu0 %831
        %v833 = vsel %vm796, %v741, -inf
        %834 = vmax.xlane.f32.xlu0 %v833
        %v835 = vpop.xlane.xlu0 %834
        %v836 = vsel %vm796, %v744, -inf
        %837 = vmax.xlane.f32.xlu0 %v836
        %v838 = vpop.xlane.xlu0 %837
        %v839 = vsel %vm796, %v790, -inf
        %840 = vmax.xlane.f32.xlu0 %v839
        %v841 = vpop.xlane.xlu0 %840
        %v842 = vsel %vm796, %v793, -inf
        %843 = vmax.xlane.f32.xlu0 %v842
        %v844 = vpop.xlane.xlu0 %843
        %v845 = vsub.f32 %v447, %v799
        %v846 = vsub.f32 %v450, %v802
        %v847 = vsub.f32 %v496, %v805
        %v848 = vsub.f32 %v499, %v808
        %v849 = vsub.f32 %v545, %v811
        %v850 = vsub.f32 %v548, %v814
        %v851 = vsub.f32 %v594, %v817
        %v852 = vsub.f32 %v597, %v820
        %v853 = vsub.f32 %v643, %v823
        %v854 = vsub.f32 %v646, %v826
        %v855 = vsub.f32 %v692, %v829
        %v856 = vsub.f32 %v695, %v832
        %v857 = vsub.f32 %v741, %v835
        %v858 = vsub.f32 %v744, %v838
        %v859 = vsub.f32 %v790, %v841
        %v860 = vsub.f32 %v793, %v844
        %v861 = vmul.f32 %v845, 1.442695
        %v862 = vpow.pop %v861
        %v863 = vmul.f32 %v846, 1.442695
        %v864 = vpow.pop %v863
        %v865 = vmul.f32 %v847, 1.442695
        %v866 = vpow.pop %v865
        %v867 = vmul.f32 %v848, 1.442695
        %v868 = vpow.pop %v867
        %v869 = vmul.f32 %v849, 1.442695
        %v870 = vpow.pop %v869
        %v871 = vmul.f32 %v850, 1.442695
        %v872 = vpow.pop %v871
        %v873 = vmul.f32 %v851, 1.442695
        %v874 = vpow.pop %v873
        %v875 = vmul.f32 %v852, 1.442695
        %v876 = vpow.pop %v875
        %v877 = vmul.f32 %v853, 1.442695
        %v878 = vpow.pop %v877
        %v879 = vmul.f32 %v854, 1.442695
        %v880 = vpow.pop %v879
        %v881 = vmul.f32 %v855, 1.442695
        %v882 = vpow.pop %v881
        %v883 = vmul.f32 %v856, 1.442695
        %v884 = vpow.pop %v883
        %v885 = vmul.f32 %v857, 1.442695
        %v886 = vpow.pop %v885
        %v887 = vmul.f32 %v858, 1.442695
        %v888 = vpow.pop %v887
        %v889 = vmul.f32 %v859, 1.442695
        %v890 = vpow.pop %v889
        %v891 = vmul.f32 %v860, 1.442695
        %v892 = vpow.pop %v891
        %v893 = vsel %vm796, %v862, 0.0
        %894 = vadd.xlane.f32.xlu0 %v893
        %v895 = vpop.xlane.xlu0 %894
        %v896 = vsel %vm796, %v864, 0.0
        %897 = vadd.xlane.f32.xlu0 %v896
        %v898 = vpop.xlane.xlu0 %897
        %v899 = vsel %vm796, %v866, 0.0
        %900 = vadd.xlane.f32.xlu0 %v899
        %v901 = vpop.xlane.xlu0 %900
        %v902 = vsel %vm796, %v868, 0.0
        %903 = vadd.xlane.f32.xlu0 %v902
        %v904 = vpop.xlane.xlu0 %903
        %v905 = vsel %vm796, %v870, 0.0
        %906 = vadd.xlane.f32.xlu0 %v905
        %v907 = vpop.xlane.xlu0 %906
        %v908 = vsel %vm796, %v872, 0.0
        %909 = vadd.xlane.f32.xlu0 %v908
        %v910 = vpop.xlane.xlu0 %909
        %v911 = vsel %vm796, %v874, 0.0
        %912 = vadd.xlane.f32.xlu0 %v911
        %v913 = vpop.xlane.xlu0 %912
        %v914 = vsel %vm796, %v876, 0.0
        %915 = vadd.xlane.f32.xlu0 %v914
        %v916 = vpop.xlane.xlu0 %915
        %v917 = vsel %vm796, %v878, 0.0
        %918 = vadd.xlane.f32.xlu0 %v917
        %v919 = vpop.xlane.xlu0 %918
        %v920 = vsel %vm796, %v880, 0.0
        %921 = vadd.xlane.f32.xlu0 %v920
        %v922 = vpop.xlane.xlu0 %921
        %v923 = vsel %vm796, %v882, 0.0
        %924 = vadd.xlane.f32.xlu0 %v923
        %v925 = vpop.xlane.xlu0 %924
        %v926 = vsel %vm796, %v884, 0.0
        %927 = vadd.xlane.f32.xlu0 %v926
        %v928 = vpop.xlane.xlu0 %927
        %v929 = vsel %vm796, %v886, 0.0
        %930 = vadd.xlane.f32.xlu0 %v929
        %v931 = vpop.xlane.xlu0 %930
        %v932 = vsel %vm796, %v888, 0.0
        %933 = vadd.xlane.f32.xlu0 %v932
        %v934 = vpop.xlane.xlu0 %933
        %v935 = vsel %vm796, %v890, 0.0
        %936 = vadd.xlane.f32.xlu0 %v935
        %v937 = vpop.xlane.xlu0 %936
        %v938 = vsel %vm796, %v892, 0.0
        %939 = vadd.xlane.f32.xlu0 %v938
        %v940 = vpop.xlane.xlu0 %939
        %v941 = vpack.c.bf16 %v864, %v862
        %v942 = vpack.c.bf16 %v868, %v866
        %v943 = vpack.c.bf16 %v872, %v870
        %v944 = vpack.c.bf16 %v876, %v874
        %v945 = vpack.c.bf16 %v880, %v878
        %v946 = vpack.c.bf16 %v884, %v882
        %v947 = vpack.c.bf16 %v888, %v886
        %v948 = vpack.c.bf16 %v892, %v890
        %v950 = vsel %vm796, %v941, 0
        %952 = vmatprep.subr.bf16.mxu0 0
        %953 = vmatpush1.bf16.msra.mxu0 0
        %954 = vmatprep.subr.bf16.mxu0 0
        %955 = vmatpush1.bf16.msra.mxu0 0
        %956 = vmatprep.subr.bf16.mxu0 0
        %957 = vmatpush1.bf16.msra.mxu0 0
        %958 = vmatprep.subr.bf16.mxu0 0
        %959 = vmatpush1.bf16.msra.mxu0 0
        %960 = vmatprep.subr.bf16.mxu0 0
        %961 = vmatpush1.bf16.msra.mxu0 0
        %962 = vmatprep.subr.bf16.mxu0 0
        %963 = vmatpush1.bf16.msra.mxu0 0
        %964 = vmatprep.subr.bf16.mxu0 0
        %965 = vmatpush1.bf16.msra.mxu0 0
        %966 = vmatprep.subr.bf16.mxu0 0
        %967 = vmatpush1.bf16.msra.mxu0 %v350
        %968 = vmatprep.subr.bf16.mxu0 0
        %969 = vmatpush2.bf16.msra.mxu0 0
        %970 = vmatprep.subr.bf16.mxu0 0
        %971 = vmatpush2.bf16.msra.mxu0 0
        %972 = vmatprep.subr.bf16.mxu0 0
        %973 = vmatpush2.bf16.msra.mxu0 0
        %974 = vmatprep.subr.bf16.mxu0 0
        %975 = vmatpush2.bf16.msra.mxu0 0
        %976 = vmatprep.subr.bf16.mxu0 0
        %977 = vmatpush2.bf16.msra.mxu0 0
        %978 = vmatprep.subr.bf16.mxu0 0
        %979 = vmatpush2.bf16.msra.mxu0 0
        %980 = vmatprep.subr.bf16.mxu0 0
        %981 = vmatpush2.bf16.msra.mxu0 0
        %982 = vmatprep.subr.bf16.mxu0 0
        %983 = vmatpush2.bf16.msra.mxu0 0
        %984 = vmatprep.mubr.bf16.mxu0 0
        %985 = vmatmul.mubr.bf16.gmra.mxu0 %v950
        %v986 = vpop.f32.mrf.mxu0
        %v987 = vadd.f32 0.0, %v986
        %v988 = vpop.f32.mrf.mxu0
        %v989 = vpop.f32.mrf.mxu0
        %v990 = vadd.f32 0.0, %v989
        %v991 = vpop.f32.mrf.mxu0
        %992 = vdwg.mxu0
        %v994 = vsel %vm796, %v942, 0
        %996 = vmatprep.subr.bf16.mxu0 0
        %997 = vmatpush1.bf16.msra.mxu0 0
        %998 = vmatprep.subr.bf16.mxu0 0
        %999 = vmatpush1.bf16.msra.mxu0 0
        %1000 = vmatprep.subr.bf16.mxu0 0
        %1001 = vmatpush1.bf16.msra.mxu0 0
        %1002 = vmatprep.subr.bf16.mxu0 0
        %1003 = vmatpush1.bf16.msra.mxu0 0
        %1004 = vmatprep.subr.bf16.mxu0 0
        %1005 = vmatpush1.bf16.msra.mxu0 0
        %1006 = vmatprep.subr.bf16.mxu0 0
        %1007 = vmatpush1.bf16.msra.mxu0 0
        %1008 = vmatprep.subr.bf16.mxu0 0
        %1009 = vmatpush1.bf16.msra.mxu0 0
        %1010 = vmatprep.subr.bf16.mxu0 0
        %1011 = vmatpush1.bf16.msra.mxu0 %v383
        %1012 = vmatprep.subr.bf16.mxu0 0
        %1013 = vmatpush2.bf16.msra.mxu0 0
        %1014 = vmatprep.subr.bf16.mxu0 0
        %1015 = vmatpush2.bf16.msra.mxu0 0
        %1016 = vmatprep.subr.bf16.mxu0 0
        %1017 = vmatpush2.bf16.msra.mxu0 0
        %1018 = vmatprep.subr.bf16.mxu0 0
        %1019 = vmatpush2.bf16.msra.mxu0 0
        %1020 = vmatprep.subr.bf16.mxu0 0
        %1021 = vmatpush2.bf16.msra.mxu0 0
        %1022 = vmatprep.subr.bf16.mxu0 0
        %1023 = vmatpush2.bf16.msra.mxu0 0
        %1024 = vmatprep.subr.bf16.mxu0 0
        %1025 = vmatpush2.bf16.msra.mxu0 0
        %1026 = vmatprep.subr.bf16.mxu0 0
        %1027 = vmatpush2.bf16.msra.mxu0 0
        %1028 = vmatprep.mubr.bf16.mxu0 0
        %1029 = vmatmul.mubr.bf16.gmra.mxu0 %v994
        %v1030 = vpop.f32.mrf.mxu0
        %v1031 = vadd.f32 0.0, %v1030
        %v1032 = vpop.f32.mrf.mxu0
        %v1033 = vpop.f32.mrf.mxu0
        %v1034 = vadd.f32 0.0, %v1033
        %v1035 = vpop.f32.mrf.mxu0
        %1036 = vdwg.mxu0
        %v1038 = vsel %vm796, %v943, 0
        %1040 = vmatprep.subr.bf16.mxu0 0
        %1041 = vmatpush1.bf16.msra.mxu0 0
        %1042 = vmatprep.subr.bf16.mxu0 0
        %1043 = vmatpush1.bf16.msra.mxu0 0
        %1044 = vmatprep.subr.bf16.mxu0 0
        %1045 = vmatpush1.bf16.msra.mxu0 0
        %1046 = vmatprep.subr.bf16.mxu0 0
        %1047 = vmatpush1.bf16.msra.mxu0 0
        %1048 = vmatprep.subr.bf16.mxu0 0
        %1049 = vmatpush1.bf16.msra.mxu0 0
        %1050 = vmatprep.subr.bf16.mxu0 0
        %1051 = vmatpush1.bf16.msra.mxu0 0
        %1052 = vmatprep.subr.bf16.mxu0 0
        %1053 = vmatpush1.bf16.msra.mxu0 0
        %1054 = vmatprep.subr.bf16.mxu0 0
        %1055 = vmatpush1.bf16.msra.mxu0 %v386
        %1056 = vmatprep.subr.bf16.mxu0 0
        %1057 = vmatpush2.bf16.msra.mxu0 0
        %1058 = vmatprep.subr.bf16.mxu0 0
        %1059 = vmatpush2.bf16.msra.mxu0 0
        %1060 = vmatprep.subr.bf16.mxu0 0
        %1061 = vmatpush2.bf16.msra.mxu0 0
        %1062 = vmatprep.subr.bf16.mxu0 0
        %1063 = vmatpush2.bf16.msra.mxu0 0
        %1064 = vmatprep.subr.bf16.mxu0 0
        %1065 = vmatpush2.bf16.msra.mxu0 0
        %1066 = vmatprep.subr.bf16.mxu0 0
        %1067 = vmatpush2.bf16.msra.mxu0 0
        %1068 = vmatprep.subr.bf16.mxu0 0
        %1069 = vmatpush2.bf16.msra.mxu0 0
        %1070 = vmatprep.subr.bf16.mxu0 0
        %1071 = vmatpush2.bf16.msra.mxu0 0
        %1072 = vmatprep.mubr.bf16.mxu0 0
        %1073 = vmatmul.mubr.bf16.gmra.mxu0 %v1038
        %v1074 = vpop.f32.mrf.mxu0
        %v1075 = vadd.f32 0.0, %v1074
        %v1076 = vpop.f32.mrf.mxu0
        %v1077 = vpop.f32.mrf.mxu0
        %v1078 = vadd.f32 0.0, %v1077
        %v1079 = vpop.f32.mrf.mxu0
        %1080 = vdwg.mxu0
        %v1082 = vsel %vm796, %v944, 0
        %1084 = vmatprep.subr.bf16.mxu0 0
        %1085 = vmatpush1.bf16.msra.mxu0 0
        %1086 = vmatprep.subr.bf16.mxu0 0
        %1087 = vmatpush1.bf16.msra.mxu0 0
        %1088 = vmatprep.subr.bf16.mxu0 0
        %1089 = vmatpush1.bf16.msra.mxu0 0
        %1090 = vmatprep.subr.bf16.mxu0 0
        %1091 = vmatpush1.bf16.msra.mxu0 0
        %1092 = vmatprep.subr.bf16.mxu0 0
        %1093 = vmatpush1.bf16.msra.mxu0 0
        %1094 = vmatprep.subr.bf16.mxu0 0
        %1095 = vmatpush1.bf16.msra.mxu0 0
        %1096 = vmatprep.subr.bf16.mxu0 0
        %1097 = vmatpush1.bf16.msra.mxu0 0
        %1098 = vmatprep.subr.bf16.mxu0 0
        %1099 = vmatpush1.bf16.msra.mxu0 %v389
        %1100 = vmatprep.subr.bf16.mxu0 0
        %1101 = vmatpush2.bf16.msra.mxu0 0
        %1102 = vmatprep.subr.bf16.mxu0 0
        %1103 = vmatpush2.bf16.msra.mxu0 0
        %1104 = vmatprep.subr.bf16.mxu0 0
        %1105 = vmatpush2.bf16.msra.mxu0 0
        %1106 = vmatprep.subr.bf16.mxu0 0
        %1107 = vmatpush2.bf16.msra.mxu0 0
        %1108 = vmatprep.subr.bf16.mxu0 0
        %1109 = vmatpush2.bf16.msra.mxu0 0
        %1110 = vmatprep.subr.bf16.mxu0 0
        %1111 = vmatpush2.bf16.msra.mxu0 0
        %1112 = vmatprep.subr.bf16.mxu0 0
        %1113 = vmatpush2.bf16.msra.mxu0 0
        %1114 = vmatprep.subr.bf16.mxu0 0
        %1115 = vmatpush2.bf16.msra.mxu0 0
        %1116 = vmatprep.mubr.bf16.mxu0 0
        %1117 = vmatmul.mubr.bf16.gmra.mxu0 %v1082
        %v1118 = vpop.f32.mrf.mxu0
        %v1119 = vadd.f32 0.0, %v1118
        %v1120 = vpop.f32.mrf.mxu0
        %v1121 = vpop.f32.mrf.mxu0
        %v1122 = vadd.f32 0.0, %v1121
        %v1123 = vpop.f32.mrf.mxu0
        %1124 = vdwg.mxu0
        %v1126 = vsel %vm796, %v945, 0
        %1128 = vmatprep.subr.bf16.mxu0 0
        %1129 = vmatpush1.bf16.msra.mxu0 0
        %1130 = vmatprep.subr.bf16.mxu0 0
        %1131 = vmatpush1.bf16.msra.mxu0 0
        %1132 = vmatprep.subr.bf16.mxu0 0
        %1133 = vmatpush1.bf16.msra.mxu0 0
        %1134 = vmatprep.subr.bf16.mxu0 0
        %1135 = vmatpush1.bf16.msra.mxu0 0
        %1136 = vmatprep.subr.bf16.mxu0 0
        %1137 = vmatpush1.bf16.msra.mxu0 0
        %1138 = vmatprep.subr.bf16.mxu0 0
        %1139 = vmatpush1.bf16.msra.mxu0 0
        %1140 = vmatprep.subr.bf16.mxu0 0
        %1141 = vmatpush1.bf16.msra.mxu0 0
        %1142 = vmatprep.subr.bf16.mxu0 0
        %1143 = vmatpush1.bf16.msra.mxu0 %v392
        %1144 = vmatprep.subr.bf16.mxu0 0
        %1145 = vmatpush2.bf16.msra.mxu0 0
        %1146 = vmatprep.subr.bf16.mxu0 0
        %1147 = vmatpush2.bf16.msra.mxu0 0
        %1148 = vmatprep.subr.bf16.mxu0 0
        %1149 = vmatpush2.bf16.msra.mxu0 0
        %1150 = vmatprep.subr.bf16.mxu0 0
        %1151 = vmatpush2.bf16.msra.mxu0 0
        %1152 = vmatprep.subr.bf16.mxu0 0
        %1153 = vmatpush2.bf16.msra.mxu0 0
        %1154 = vmatprep.subr.bf16.mxu0 0
        %1155 = vmatpush2.bf16.msra.mxu0 0
        %1156 = vmatprep.subr.bf16.mxu0 0
        %1157 = vmatpush2.bf16.msra.mxu0 0
        %1158 = vmatprep.subr.bf16.mxu0 0
        %1159 = vmatpush2.bf16.msra.mxu0 0
        %1160 = vmatprep.mubr.bf16.mxu0 0
        %1161 = vmatmul.mubr.bf16.gmra.mxu0 %v1126
        %v1162 = vpop.f32.mrf.mxu0
        %v1163 = vadd.f32 0.0, %v1162
        %v1164 = vpop.f32.mrf.mxu0
        %v1165 = vpop.f32.mrf.mxu0
        %v1166 = vadd.f32 0.0, %v1165
        %v1167 = vpop.f32.mrf.mxu0
        %1168 = vdwg.mxu0
        %v1170 = vsel %vm796, %v946, 0
        %1172 = vmatprep.subr.bf16.mxu0 0
        %1173 = vmatpush1.bf16.msra.mxu0 0
        %1174 = vmatprep.subr.bf16.mxu0 0
        %1175 = vmatpush1.bf16.msra.mxu0 0
        %1176 = vmatprep.subr.bf16.mxu0 0
        %1177 = vmatpush1.bf16.msra.mxu0 0
        %1178 = vmatprep.subr.bf16.mxu0 0
        %1179 = vmatpush1.bf16.msra.mxu0 0
        %1180 = vmatprep.subr.bf16.mxu0 0
        %1181 = vmatpush1.bf16.msra.mxu0 0
        %1182 = vmatprep.subr.bf16.mxu0 0
        %1183 = vmatpush1.bf16.msra.mxu0 0
        %1184 = vmatprep.subr.bf16.mxu0 0
        %1185 = vmatpush1.bf16.msra.mxu0 0
        %1186 = vmatprep.subr.bf16.mxu0 0
        %1187 = vmatpush1.bf16.msra.mxu0 %v395
        %1188 = vmatprep.subr.bf16.mxu0 0
        %1189 = vmatpush2.bf16.msra.mxu0 0
        %1190 = vmatprep.subr.bf16.mxu0 0
        %1191 = vmatpush2.bf16.msra.mxu0 0
        %1192 = vmatprep.subr.bf16.mxu0 0
        %1193 = vmatpush2.bf16.msra.mxu0 0
        %1194 = vmatprep.subr.bf16.mxu0 0
        %1195 = vmatpush2.bf16.msra.mxu0 0
        %1196 = vmatprep.subr.bf16.mxu0 0
        %1197 = vmatpush2.bf16.msra.mxu0 0
        %1198 = vmatprep.subr.bf16.mxu0 0
        %1199 = vmatpush2.bf16.msra.mxu0 0
        %1200 = vmatprep.subr.bf16.mxu0 0
        %1201 = vmatpush2.bf16.msra.mxu0 0
        %1202 = vmatprep.subr.bf16.mxu0 0
        %1203 = vmatpush2.bf16.msra.mxu0 0
        %1204 = vmatprep.mubr.bf16.mxu0 0
        %1205 = vmatmul.mubr.bf16.gmra.mxu0 %v1170
        %v1206 = vpop.f32.mrf.mxu0
        %v1207 = vadd.f32 0.0, %v1206
        %v1208 = vpop.f32.mrf.mxu0
        %v1209 = vpop.f32.mrf.mxu0
        %v1210 = vadd.f32 0.0, %v1209
        %v1211 = vpop.f32.mrf.mxu0
        %1212 = vdwg.mxu0
        %v1214 = vsel %vm796, %v947, 0
        %1216 = vmatprep.subr.bf16.mxu0 0
        %1217 = vmatpush1.bf16.msra.mxu0 0
        %1218 = vmatprep.subr.bf16.mxu0 0
        %1219 = vmatpush1.bf16.msra.mxu0 0
        %1220 = vmatprep.subr.bf16.mxu0 0
        %1221 = vmatpush1.bf16.msra.mxu0 0
        %1222 = vmatprep.subr.bf16.mxu0 0
        %1223 = vmatpush1.bf16.msra.mxu0 0
        %1224 = vmatprep.subr.bf16.mxu0 0
        %1225 = vmatpush1.bf16.msra.mxu0 0
        %1226 = vmatprep.subr.bf16.mxu0 0
        %1227 = vmatpush1.bf16.msra.mxu0 0
        %1228 = vmatprep.subr.bf16.mxu0 0
        %1229 = vmatpush1.bf16.msra.mxu0 0
        %1230 = vmatprep.subr.bf16.mxu0 0
        %1231 = vmatpush1.bf16.msra.mxu0 %v398
        %1232 = vmatprep.subr.bf16.mxu0 0
        %1233 = vmatpush2.bf16.msra.mxu0 0
        %1234 = vmatprep.subr.bf16.mxu0 0
        %1235 = vmatpush2.bf16.msra.mxu0 0
        %1236 = vmatprep.subr.bf16.mxu0 0
        %1237 = vmatpush2.bf16.msra.mxu0 0
        %1238 = vmatprep.subr.bf16.mxu0 0
        %1239 = vmatpush2.bf16.msra.mxu0 0
        %1240 = vmatprep.subr.bf16.mxu0 0
        %1241 = vmatpush2.bf16.msra.mxu0 0
        %1242 = vmatprep.subr.bf16.mxu0 0
        %1243 = vmatpush2.bf16.msra.mxu0 0
        %1244 = vmatprep.subr.bf16.mxu0 0
        %1245 = vmatpush2.bf16.msra.mxu0 0
        %1246 = vmatprep.subr.bf16.mxu0 0
        %1247 = vmatpush2.bf16.msra.mxu0 0
        %1248 = vmatprep.mubr.bf16.mxu0 0
        %1249 = vmatmul.mubr.bf16.gmra.mxu0 %v1214
        %v1250 = vpop.f32.mrf.mxu0
        %v1251 = vadd.f32 0.0, %v1250
        %v1252 = vpop.f32.mrf.mxu0
        %v1253 = vpop.f32.mrf.mxu0
        %v1254 = vadd.f32 0.0, %v1253
        %v1255 = vpop.f32.mrf.mxu0
        %1256 = vdwg.mxu0
        %v1258 = vsel %vm796, %v948, 0
        %1260 = vmatprep.subr.bf16.mxu0 0
        %1261 = vmatpush1.bf16.msra.mxu0 0
        %1262 = vmatprep.subr.bf16.mxu0 0
        %1263 = vmatpush1.bf16.msra.mxu0 0
        %1264 = vmatprep.subr.bf16.mxu0 0
        %1265 = vmatpush1.bf16.msra.mxu0 0
        %1266 = vmatprep.subr.bf16.mxu0 0
        %1267 = vmatpush1.bf16.msra.mxu0 0
        %1268 = vmatprep.subr.bf16.mxu0 0
        %1269 = vmatpush1.bf16.msra.mxu0 0
        %1270 = vmatprep.subr.bf16.mxu0 0
        %1271 = vmatpush1.bf16.msra.mxu0 0
        %1272 = vmatprep.subr.bf16.mxu0 0
        %1273 = vmatpush1.bf16.msra.mxu0 0
        %1274 = vmatprep.subr.bf16.mxu0 0
        %1275 = vmatpush1.bf16.msra.mxu0 %v401
        %1276 = vmatprep.subr.bf16.mxu0 0
        %1277 = vmatpush2.bf16.msra.mxu0 0
        %1278 = vmatprep.subr.bf16.mxu0 0
        %1279 = vmatpush2.bf16.msra.mxu0 0
        %1280 = vmatprep.subr.bf16.mxu0 0
        %1281 = vmatpush2.bf16.msra.mxu0 0
        %1282 = vmatprep.subr.bf16.mxu0 0
        %1283 = vmatpush2.bf16.msra.mxu0 0
        %1284 = vmatprep.subr.bf16.mxu0 0
        %1285 = vmatpush2.bf16.msra.mxu0 0
        %1286 = vmatprep.subr.bf16.mxu0 0
        %1287 = vmatpush2.bf16.msra.mxu0 0
        %1288 = vmatprep.subr.bf16.mxu0 0
        %1289 = vmatpush2.bf16.msra.mxu0 0
        %1290 = vmatprep.subr.bf16.mxu0 0
        %1291 = vmatpush2.bf16.msra.mxu0 0
        %1292 = vmatprep.mubr.bf16.mxu0 0
        %1293 = vmatmul.mubr.bf16.gmra.mxu0 %v1258
        %v1294 = vpop.f32.mrf.mxu0
        %v1295 = vadd.f32 0.0, %v1294
        %v1296 = vpop.f32.mrf.mxu0
        %v1297 = vpop.f32.mrf.mxu0
        %v1298 = vadd.f32 0.0, %v1297
        %v1299 = vpop.f32.mrf.mxu0
        %1300 = vdwg.mxu0
        %v1301 = vrcp.pop %v895
        %v1302 = vrcp.pop %v898
        %v1303 = vrcp.pop %v901
        %v1304 = vrcp.pop %v904
        %v1305 = vrcp.pop %v907
        %v1306 = vrcp.pop %v910
        %v1307 = vrcp.pop %v913
        %v1308 = vrcp.pop %v916
        %v1309 = vrcp.pop %v919
        %v1310 = vrcp.pop %v922
        %v1311 = vrcp.pop %v925
        %v1312 = vrcp.pop %v928
        %v1313 = vrcp.pop %v931
        %v1314 = vrcp.pop %v934
        %v1315 = vrcp.pop %v937
        %v1316 = vrcp.pop %v940
        %v1317 = vmul.f32 %v987, %v1301
        %v1318 = vmul.f32 %v990, %v1302
        %v1319 = vmul.f32 %v1031, %v1303
        %v1320 = vmul.f32 %v1034, %v1304
        %v1321 = vmul.f32 %v1075, %v1305
        %v1322 = vmul.f32 %v1078, %v1306
        %v1323 = vmul.f32 %v1119, %v1307
        %v1324 = vmul.f32 %v1122, %v1308
        %v1325 = vmul.f32 %v1163, %v1309
        %v1326 = vmul.f32 %v1166, %v1310
        %v1327 = vmul.f32 %v1207, %v1311
        %v1328 = vmul.f32 %v1210, %v1312
        %v1329 = vmul.f32 %v1251, %v1313
        %v1330 = vmul.f32 %v1254, %v1314
        %v1331 = vmul.f32 %v1295, %v1315
        %v1332 = vmul.f32 %v1298, %v1316
        %v1333 = vpack.c.bf16 %v1318, %v1317
        %v1334 = vpack.c.bf16 %v1320, %v1319
        %v1335 = vpack.c.bf16 %v1322, %v1321
        %v1336 = vpack.c.bf16 %v1324, %v1323
        %v1337 = vpack.c.bf16 %v1326, %v1325
        %v1338 = vpack.c.bf16 %v1328, %v1327
        %v1339 = vpack.c.bf16 %v1330, %v1329
        %v1340 = vpack.c.bf16 %v1332, %v1331
        %1342 = vrot.lane.b32.xlu0 %v1334, 8
        %v1343 = vpop.permute.xlu0 %1342
        %1345 = vrot.lane.b32.xlu0 %v1335, 16
        %v1346 = vpop.permute.xlu0 %1345
        %1348 = vrot.lane.b32.xlu0 %v1336, 24
        %v1349 = vpop.permute.xlu0 %1348
        %1351 = vrot.lane.b32.xlu0 %v1337, 32
        %v1352 = vpop.permute.xlu0 %1351
        %1354 = vrot.lane.b32.xlu0 %v1338, 40
        %v1355 = vpop.permute.xlu0 %1354
        %1357 = vrot.lane.b32.xlu0 %v1339, 48
        %v1358 = vpop.permute.xlu0 %1357
        %1360 = vrot.lane.b32.xlu0 %v1340, 56
        %v1361 = vpop.permute.xlu0 %1360
        %v1364 = vsel %vm405, %v1333, %v1343
        %v1366 = vsel %vm796, %v1364, %v1346
        %vm1367 = vcmask 195584
        %v1369 = vsel %vm1367, %v1366, %v1349
        %vm1370 = vcmask 261120
        %v1372 = vsel %vm1370, %v1369, %v1352
        %vm1373 = vcmask 326656
        %v1375 = vsel %vm1373, %v1372, %v1355
        %vm1376 = vcmask 392192
        %v1378 = vsel %vm1376, %v1375, %v1358
        %vm1379 = vcmask 457728
        %v1381 = vsel %vm1379, %v1378, %v1361
        %v1382 = vld [vmem:[#allocation7] sm:$0xf]
        %v1383 = vld [vmem:[#allocation7 + $0x4] sm:$0xf]
        %v1384 = vld [vmem:[#allocation7 + $0x8] sm:$0xf]
        %v1385 = vld [vmem:[#allocation7 + $0xc] sm:$0xf]
        %v1386 = vld [vmem:[#allocation7 + $0x10] sm:$0xf]
        %v1387 = vld [vmem:[#allocation7 + $0x14] sm:$0xf]
        %v1388 = vld [vmem:[#allocation7 + $0x18] sm:$0xf]
        %v1389 = vld [vmem:[#allocation7 + $0x1c] sm:$0xf]
        %v1390 = vld [vmem:[%s3] sm:$0x1]
        %v1392 = vlaneseq
        %v1393 = vshrl.u32 %v1392, 7
        %v1394 = vsub.s32 0, %v1393
        %v1395 = vrot.slane %v1390, %v1394
        %v1405 = vunpack.c.l.b16 %v1382
        %v1406 = vunpack.c.l.b16 %v1383
        %v1407 = vunpack.c.l.b16 %v1384
        %v1408 = vunpack.c.l.b16 %v1385
        %v1409 = vunpack.c.l.b16 %v1386
        %v1410 = vunpack.c.l.b16 %v1387
        %v1411 = vunpack.c.l.b16 %v1388
        %v1412 = vunpack.c.l.b16 %v1389
        %v1413 = vpack.c.b16 %v1406, %v1405
        %v1414 = vpack.c.b16 %v1408, %v1407
        %v1415 = vpack.c.b16 %v1410, %v1409
        %v1416 = vpack.c.b16 %v1412, %v1411
        %v1421 = vsel %vm302, %v1381, 0
        %1423 = vmatprep.subr.bf16.mxu0 0
        %1424 = vmatpush1.bf16.msra.mxu0 0
        %1425 = vmatprep.subr.bf16.mxu0 0
        %1426 = vmatpush1.bf16.msra.mxu0 0
        %1427 = vmatprep.subr.bf16.mxu0 0
        %1428 = vmatpush1.bf16.msra.mxu0 0
        %1429 = vmatprep.subr.bf16.mxu0 0
        %1430 = vmatpush1.bf16.msra.mxu0 0
        %1431 = vmatprep.subr.bf16.mxu0 0
        %1432 = vmatpush1.bf16.msra.mxu0 %v1416
        %1433 = vmatprep.subr.bf16.mxu0 0
        %1434 = vmatpush1.bf16.msra.mxu0 %v1415
        %1435 = vmatprep.subr.bf16.mxu0 0
        %1436 = vmatpush1.bf16.msra.mxu0 %v1414
        %1437 = vmatprep.subr.bf16.mxu0 0
        %1438 = vmatpush1.bf16.msra.mxu0 %v1413
        %1439 = vmatprep.subr.bf16.mxu0 0
        %1440 = vmatpush2.bf16.msra.mxu0 0
        %1441 = vmatprep.subr.bf16.mxu0 0
        %1442 = vmatpush2.bf16.msra.mxu0 0
        %1443 = vmatprep.subr.bf16.mxu0 0
        %1444 = vmatpush2.bf16.msra.mxu0 0
        %1445 = vmatprep.subr.bf16.mxu0 0
        %1446 = vmatpush2.bf16.msra.mxu0 0
        %1447 = vmatprep.subr.bf16.mxu0 0
        %1448 = vmatpush2.bf16.msra.mxu0 0
        %1449 = vmatprep.subr.bf16.mxu0 0
        %1450 = vmatpush2.bf16.msra.mxu0 0
        %1451 = vmatprep.subr.bf16.mxu0 0
        %1452 = vmatpush2.bf16.msra.mxu0 0
        %1453 = vmatprep.subr.bf16.mxu0 0
        %1454 = vmatpush2.bf16.msra.mxu0 0
        %1455 = vmatprep.mubr.bf16.mxu0 0
        %1456 = vmatmul.mubr.bf16.gmra.mxu0 %v1421
        %v1457 = vpop.f32.mrf.mxu0
        %v1458 = vadd.f32 %v1395, %v1457
        %v1459 = vpop.f32.mrf.mxu0
        %v1460 = vpop.f32.mrf.mxu0
        %v1461 = vadd.f32 %v1395, %v1460
        %v1462 = vpop.f32.mrf.mxu0
        %1463 = vdwg.mxu0
        %1464 = vst.msk [vmem:[%s244] sm:$0xff] %vm302, %v1458
        %1465 = vst.msk [vmem:[%s244 + $0x8] sm:$0xff] %vm302, %v1461
        %s1466 = sand.u32 %s119, 1
        %s1467 = scalar_lea.sflag [#allocation4], %s1466
        %s1468 = sand.u32 %s119, 1
        %s1469 = smul.addr %s1468, 16
        %s1470 = scalar_lea.vmem [#allocation8], %s1469
        // Predicated region
        $region49: #{tpu_custom_call.1} parent=35 // pred_check
          %p1471 = pneg %p129
        $region50: #{tpu_custom_call.1} parent=35 // pred_check_branch
          %1473 = sbr.rel (%p1471) target = $region52
        $region51: #{tpu_custom_call.1} parent=35 // pred_region
          %s1475 = ssub.s32 256, 256
          %1476 = vsyncadd %s1467, %s1475
          %s1477 = smul.addr %s22, 2
          %s1478 = smul.addr %s1477, 128
          %s1479 = scalar_lea.hbm %s4, %s1478
          %s1480 = sshll.u32 %s1470, 4
          %s1481 = int_to_ptr.vmem [resolvable:$true] %s1480
          %1486 = dma.vmem_to_hbm [thread:$0]  %s1481, 256, %s1479, %s1467, 128, 128, 8
        $region52: #{tpu_custom_call.1} parent=35 // pred_fallthru
          _
      $region36: #{tpu_custom_call.1} parent=5 // pred_fallthru
        _
      %p1487 = scmp.le.s32.totalorder 2, %s17
      // Predicated region
      $region53: #{tpu_custom_call.1} parent=5 // pred_check
        %p1488 = pneg %p1487
      $region54: #{tpu_custom_call.1} parent=5 // pred_check_branch
        %1490 = sbr.rel (%p1488) target = $region56
      $region55: #{tpu_custom_call.1} parent=5 // pred_region
        %s1491 = ssub.s32 %s17, 2
        // Predicated region
        $region57: #{tpu_custom_call.1} parent=55 // pred_check
          %p1492 = pneg %p135
        $region58: #{tpu_custom_call.1} parent=55 // pred_check_branch
          %1494 = sbr.rel (%p1492) target = $region60
        $region59: #{tpu_custom_call.1} parent=55 // pred_region
          %s1495 = sand.u32 %s120, 1
          %s1496 = scalar_lea.sflag [#allocation4], %s1495
          %s1497 = sand.u32 %s120, 1
          %s1498 = smul.addr %s1497, 16
          %s1499 = scalar_lea.vmem [#allocation8], %s1498
          %1500 = dma.done %s1496, 256
        $region60: #{tpu_custom_call.1} parent=55 // pred_fallthru
          _
      $region56: #{tpu_custom_call.1} parent=5 // pred_fallthru
        _
    $region6: #{tpu_custom_call.1} parent=1 // loop_footer
      %s21 = sadd.s32 1, %s17
    $region7: #{tpu_custom_call.1} parent=1 // loop_footer_branch
      %16 = sbr.rel target = $region3
    $region8: #{tpu_custom_call.1} parent=1 // loop_exit
      _
    %1501 = vsyncpa [#allocation3], 1
    %s1502 = scalar_lea.sflag [#allocation3], 1
    %1503 = vsyncpa %s1502, 1
    %1504 = vsyncpa [#allocation6], 1
    %1505 = vsyncpa [#allocation4], 1
    %s1506 = scalar_lea.sflag [#allocation4], 1
    %1507 = vsyncpa %s1506, 1

// kernel: tpu_custom_call.1
$region0: #{tpu_custom_call.1}
  #allocation0 [shape = 'u32[]', space=smem, size = 0x4, offset = 0x4, fixed_abs, tag = 'smem constant byte address 0x4 - core index']
  #allocation1 [shape = 'u32[144,128]{1,0:T(1,128)}', space=vmem, size = 0x12000, scoped, tag = 'internal scratch']
  %s0 = inlined_call_operand.hbm [shape: bf16[2,16,64], index: 0, kind: input, shape index: {}]
  %s1 = inlined_call_operand.hbm [shape: bf16[64,192], index: 1, kind: input, shape index: {}]
  %s2 = inlined_call_operand.hbm [shape: bf16[64,64], index: 2, kind: input, shape index: {}]
  %s3 = inlined_call_operand.vmem [shape: f32[1,64], index: 3, kind: input, shape index: {}]
  %s4 = inlined_call_operand.hbm [shape: f32[2,16,64], index: 4, kind: output, shape index: {}]
  %s5 = sld [smem:[#allocation0]]
  $region61: #{tpu_custom_call.1} parent=0
    _
  %s7 = ssub.s32 1, %s5
  %s8 = scalar_select 0, %s7, %s5
  $region1: #{tpu_custom_call.1} parent=0
    #allocation2 [shape = 'u8[8192]{0}', space=vmem, size = 0x2000, scoped, tag = 'input window, operand 0']
    #allocation3 [shape = 's32[2]{0}', space=sflag, size = 0x8, scoped, tag = 'scoped memory for tpu_custom_call.1']
    #allocation4 [shape = 's32[2]{0}', space=sflag, size = 0x8, scoped, tag = 'scoped memory for tpu_custom_call.1']
    #allocation5 [shape = 'u8[32768]{0}', space=vmem, size = 0x8000, scoped, tag = 'input window, operand 1, single buffered']
    #allocation6 [shape = 's32[1]{0}', space=sflag, size = 0x4, scoped, tag = 'scoped memory for tpu_custom_call.1']
    #allocation7 [shape = 'u8[16384]{0}', space=vmem, size = 0x4000, scoped, tag = 'input window, operand 2, single buffered']
    #allocation8 [shape = 'u8[16384]{0}', space=vmem, size = 0x4000, scoped, tag = 'output window, operand 0']
    %9 = vsyncpa [#allocation3], 0
    %s10 = scalar_lea.sflag [#allocation3], 1
    %11 = vsyncpa %s10, 0
    %12 = vsyncpa [#allocation6], 0
    %13 = vsyncpa [#allocation4], 0
    %s14 = scalar_lea.sflag [#allocation4], 1
    %15 = vsyncpa %s14, 0
    loop: start=0, step=1, limit=4
    $region2: #{tpu_custom_call.1} parent=1 // loop_pre_header
      _
    $region3: #{tpu_custom_call.1} parent=1 // loop_header
      %s17 = sphi 0, %s21
      %p18 = scmp.ge.s32.totalorder %s17, 4
      %s27 = sphi 0, %s29
      %s30 = sphi 0, %s27
      %s31 = sphi 0, %s30
      %s47 = sphi 0, %s31
      %s51 = sphi 0, %s51
      %s53 = sphi 0, %s51
      %s54 = sphi 0, %s53
      %s68 = sphi 0, %s54
      %s72 = sphi 0, %s72
      %s74 = sphi 0, %s72
      %s75 = sphi 0, %s74
      %s89 = sphi 0, %s75
      %s93 = sphi 0, %s93
      %s95 = sphi 0, %s93
      %s96 = sphi 0, %s95
      %s110 = sphi 0, %s96
      %s116 = sphi 0, %s118
      %s119 = sphi 0, %s116
      %s120 = sphi 0, %s119
      %s136 = sphi 0, %s120
    $region4: #{tpu_custom_call.1} parent=1 // loop_header_branch
      %20 = sbr.rel (%p18) target = $region8
    $region5: #{tpu_custom_call.1} parent=1 // loop_body
      %s22 = ssub.s32 %s17, 1
      %s23 = ssub.s32 %s17, 2
      %s24 = sadd.s32 %s17, 1
      %s25 = ssub.s32 %s17, %s24
      %p26 = scmp.eq.s32.totalorder %s25, 0
      %s28 = sadd.s32 %s27, 1
      %s29 = scalar_select %p26, %s27, %s28
      %p32 = pneg %p26
      %p33 = scmp.eq.s32.totalorder %s17, 1
      %p34 = por %p32, %p33
      %p35 = scmp.ne.s32.totalorder %s27, %s30
      %p36 = scmp.eq.s32.totalorder %s17, 0
      %p37 = por %p35, %p36
      %p38 = scmp.ne.s32.totalorder %s27, %s30
      %p39 = scmp.eq.s32.totalorder %s22, 1
      %p40 = por %p38, %p39
      %p41 = scmp.ne.s32.totalorder %s30, %s31
      %p42 = scmp.eq.s32.totalorder %s22, 0
      %p43 = por %p41, %p42
      %p44 = scmp.ne.s32.totalorder %s30, %s31
      %p45 = scmp.eq.s32.totalorder %s23, 1
      %p46 = por %p44, %p45
      %p48 = scmp.ne.s32.totalorder %s31, %s47
      %p49 = scmp.eq.s32.totalorder %s23, 0
      %p50 = por %p48, %p49
      %s52 = sadd.s32 %s51, 1
      %p55 = scmp.eq.s32.totalorder %s17, 1
      %p56 = scmp.ne.s32.totalorder %s51, %s53
      %p57 = scmp.eq.s32.totalorder %s17, 0
      %p58 = por %p56, %p57
      %p59 = scmp.ne.s32.totalorder %s51, %s53
      %p60 = scmp.eq.s32.totalorder %s22, 1
      %p61 = por %p59, %p60
      %p62 = scmp.ne.s32.totalorder %s53, %s54
      %p63 = scmp.eq.s32.totalorder %s22, 0
      %p64 = por %p62, %p63
      %p65 = scmp.ne.s32.totalorder %s53, %s54
      %p66 = scmp.eq.s32.totalorder %s23, 1
      %p67 = por %p65, %p66
      %p69 = scmp.ne.s32.totalorder %s54, %s68
      %p70 = scmp.eq.s32.totalorder %s23, 0
      %p71 = por %p69, %p70
      %s73 = sadd.s32 %s72, 1
      %p76 = scmp.eq.s32.totalorder %s17, 1
      %p77 = scmp.ne.s32.totalorder %s72, %s74
      %p78 = scmp.eq.s32.totalorder %s17, 0
      %p79 = por %p77, %p78
      %p80 = scmp.ne.s32.totalorder %s72, %s74
      %p81 = scmp.eq.s32.totalorder %s22, 1
      %p82 = por %p80, %p81
      %p83 = scmp.ne.s32.totalorder %s74, %s75
      %p84 = scmp.eq.s32.totalorder %s22, 0
      %p85 = por %p83, %p84
      %p86 = scmp.ne.s32.totalorder %s74, %s75
      %p87 = scmp.eq.s32.totalorder %s23, 1
      %p88 = por %p86, %p87
      %p90 = scmp.ne.s32.totalorder %s75, %s89
      %p91 = scmp.eq.s32.totalorder %s23, 0
      %p92 = por %p90, %p91
      %s94 = sadd.s32 %s93, 1
      %p97 = scmp.eq.s32.totalorder %s17, 1
      %p98 = scmp.ne.s32.totalorder %s93, %s95
      %p99 = scmp.eq.s32.totalorder %s17, 0
      %p100 = por %p98, %p99
      %p101 = scmp.ne.s32.totalorder %s93, %s95
      %p102 = scmp.eq.s32.totalorder %s22, 1
      %p103 = por %p101, %p102
      %p104 = scmp.ne.s32.totalorder %s95, %s96
      %p105 = scmp.eq.s32.totalorder %s22, 0
      %p106 = por %p104, %p105
      %p107 = scmp.ne.s32.totalorder %s95, %s96
      %p108 = scmp.eq.s32.totalorder %s23, 1
      %p109 = por %p107, %p108
      %p111 = scmp.ne.s32.totalorder %s96, %s110
      %p112 = scmp.eq.s32.totalorder %s23, 0
      %p113 = por %p111, %p112
      %s114 = ssub.s32 %s17, %s24
      %p115 = scmp.eq.s32.totalorder %s114, 0
      %s117 = sadd.s32 %s116, 1
      %s118 = scalar_select %p115, %s116, %s117
      %p121 = pneg %p115
      %p122 = scmp.eq.s32.totalorder %s17, 1
      %p123 = por %p121, %p122
      %p124 = scmp.ne.s32.totalorder %s116, %s119
      %p125 = scmp.eq.s32.totalorder %s17, 0
      %p126 = por %p124, %p125
      %p127 = scmp.ne.s32.totalorder %s116, %s119
      %p128 = scmp.eq.s32.totalorder %s22, 1
      %p129 = por %p127, %p128
      %p130 = scmp.ne.s32.totalorder %s119, %s120
      %p131 = scmp.eq.s32.totalorder %s22, 0
      %p132 = por %p130, %p131
      %p133 = scmp.ne.s32.totalorder %s119, %s120
      %p134 = scmp.eq.s32.totalorder %s23, 1
      %p135 = por %p133, %p134
      %p137 = scmp.ne.s32.totalorder %s120, %s136
      %p138 = scmp.eq.s32.totalorder %s23, 0
      %p139 = por %p137, %p138
      %p140 = scmp.le.s32.totalorder 1, %s17
      %p141 = scmp.lt.s32.totalorder %s17, 3
      %p142 = pnand %p140, %p141
      %p143 = pneg %p142
      // Predicated region
      $region9: #{tpu_custom_call.1} parent=5 // pred_check
        _
      $region10: #{tpu_custom_call.1} parent=5 // pred_check_branch
        %145 = sbr.rel (%p142) target = $region12
      $region11: #{tpu_custom_call.1} parent=5 // pred_region
        %s146 = ssub.s32 %s17, 1
        // Predicated region
        $region13: #{tpu_custom_call.1} parent=11 // pred_check
          %p147 = pneg %p64
        $region14: #{tpu_custom_call.1} parent=11 // pred_check_branch
          %149 = sbr.rel (%p147) target = $region16
        $region15: #{tpu_custom_call.1} parent=11 // pred_region
          %s151 = ssub.s32 1024, 1024
          %152 = vsyncadd [#allocation6], %s151
          %s153 = sshll.u32 [#allocation5], 4
          %s154 = int_to_ptr.vmem [resolvable:$true] %s153
          %159 = dma.hbm_to_vmem [thread:$0]  %s1, 1024, %s154, [#allocation6], 128, 128, 8
        $region16: #{tpu_custom_call.1} parent=11 // pred_fallthru
          _
        // Predicated region
        $region17: #{tpu_custom_call.1} parent=11 // pred_check
          %p160 = pneg %p85
        $region18: #{tpu_custom_call.1} parent=11 // pred_check_branch
          %162 = sbr.rel (%p160) target = $region20
        $region19: #{tpu_custom_call.1} parent=11 // pred_region
          %s164 = ssub.s32 512, 512
          %165 = vsyncadd [#allocation6], %s164
          %s166 = sshll.u32 [#allocation7], 4
          %s167 = int_to_ptr.vmem [resolvable:$true] %s166
          %172 = dma.hbm_to_vmem [thread:$0]  %s2, 512, %s167, [#allocation6], 64, 64, 4
        $region20: #{tpu_custom_call.1} parent=11 // pred_fallthru
          _
        // Predicated region
        $region21: #{tpu_custom_call.1} parent=11 // pred_check
          %p173 = pneg %p106
        $region22: #{tpu_custom_call.1} parent=11 // pred_check_branch
          %175 = sbr.rel (%p173) target = $region24
        $region23: #{tpu_custom_call.1} parent=11 // pred_region
          _
        $region24: #{tpu_custom_call.1} parent=11 // pred_fallthru
          _
      $region12: #{tpu_custom_call.1} parent=5 // pred_fallthru
        _
      %p176 = scmp.lt.s32.totalorder %s17, 2
      // Predicated region
      $region25: #{tpu_custom_call.1} parent=5 // pred_check
        %p177 = pneg %p176
      $region26: #{tpu_custom_call.1} parent=5 // pred_check_branch
        %179 = sbr.rel (%p177) target = $region28
      $region27: #{tpu_custom_call.1} parent=5 // pred_region
        // Predicated region
        $region29: #{tpu_custom_call.1} parent=27 // pred_check
          %p180 = pneg %p37
        $region30: #{tpu_custom_call.1} parent=27 // pred_check_branch
          %182 = sbr.rel (%p180) target = $region32
        $region31: #{tpu_custom_call.1} parent=27 // pred_region
          %s183 = sand.u32 %s27, 1
          %s184 = scalar_lea.sflag [#allocation3], %s183
          %s185 = sand.u32 %s27, 1
          %s186 = smul.addr %s185, 8
          %s187 = scalar_lea.vmem [#allocation2], %s186
          %s189 = ssub.s32 128, 128
          %190 = vsyncadd %s184, %s189
          %s191 = smul.addr %s17, 2
          %s192 = smul.addr %s191, 64
          %s193 = scalar_lea.hbm %s0, %s192
          %s194 = sshll.u32 %s187, 4
          %s195 = int_to_ptr.vmem [resolvable:$true] %s194
          %200 = dma.hbm_to_vmem [thread:$0]  %s193, 128, %s195, %s184, 64, 64, 4
        $region32: #{tpu_custom_call.1} parent=27 // pred_fallthru
          _
      $region28: #{tpu_custom_call.1} parent=5 // pred_fallthru
        _
      %p201 = scmp.le.s32.totalorder 1, %s17
      %p202 = scmp.lt.s32.totalorder %s17, 3
      %p203 = pnand %p201, %p202
      %p204 = pneg %p203
      // Predicated region
      $region33: #{tpu_custom_call.1} parent=5 // pred_check
        _
      $region34: #{tpu_custom_call.1} parent=5 // pred_check_branch
        %206 = sbr.rel (%p203) target = $region36
      $region35: #{tpu_custom_call.1} parent=5 // pred_region
        %s207 = ssub.s32 %s17, 1
        %s208 = sand.u32 %s30, 1
        %s209 = scalar_lea.sflag [#allocation3], %s208
        %s210 = sand.u32 %s30, 1
        %s211 = smul.addr %s210, 8
        %s212 = scalar_lea.vmem [#allocation2], %s211
        // Predicated region
        $region37: #{tpu_custom_call.1} parent=35 // pred_check
          %p213 = pneg %p43
        $region38: #{tpu_custom_call.1} parent=35 // pred_check_branch
          %215 = sbr.rel (%p213) target = $region40
        $region39: #{tpu_custom_call.1} parent=35 // pred_region
          %216 = dma.done %s209, 128
        $region40: #{tpu_custom_call.1} parent=35 // pred_fallthru
          _
        // Predicated region
        $region41: #{tpu_custom_call.1} parent=35 // pred_check
          %p217 = pneg %p64
        $region42: #{tpu_custom_call.1} parent=35 // pred_check_branch
          %219 = sbr.rel (%p217) target = $region44
        $region43: #{tpu_custom_call.1} parent=35 // pred_region
          %220 = dma.done [#allocation6], 1024
        $region44: #{tpu_custom_call.1} parent=35 // pred_fallthru
          _
        // Predicated region
        $region45: #{tpu_custom_call.1} parent=35 // pred_check
          %p221 = pneg %p85
        $region46: #{tpu_custom_call.1} parent=35 // pred_check_branch
          %223 = sbr.rel (%p221) target = $region48
        $region47: #{tpu_custom_call.1} parent=35 // pred_region
          %224 = dma.done [#allocation6], 512
        $region48: #{tpu_custom_call.1} parent=35 // pred_fallthru
          _
        %s225 = sand.u32 %s30, 1
        %s226 = scalar_lea.sflag [#allocation3], %s225
        %s227 = sand.u32 %s30, 1
        %s228 = smul.addr %s227, 8
        %s229 = scalar_lea.vmem [#allocation2], %s228
        %p230 = pneg %p43
        %p231 = pneg %p40
        %p232 = pneg %p64
        %p233 = pneg %p61
        %p234 = pneg %p85
        %p235 = pneg %p82
        %p236 = pneg %p106
        %p237 = pneg %p103
        %p238 = pneg %p132
        %p239 = pneg %p129
        %s240 = sand.u32 %s119, 1
        %s241 = scalar_lea.sflag [#allocation4], %s240
        %s242 = sand.u32 %s119, 1
        %s243 = smul.addr %s242, 16
        %s244 = scalar_lea.vmem [#allocation8], %s243
        %v247 = vld [vmem:[%s212] sm:$0xf]
        %v248 = vld [vmem:[%s212 + $0x4] sm:$0xf]
        %v249 = vld [vmem:[#allocation5] sm:$0xff]
        %v250 = vld [vmem:[#allocation5 + $0x8] sm:$0xff]
        %v251 = vld [vmem:[#allocation5 + $0x10] sm:$0xff]
        %v252 = vld [vmem:[#allocation5 + $0x18] sm:$0xff]
        %v253 = vld [vmem:[#allocation5 + $0x20] sm:$0xff]
        %v254 = vld [vmem:[#allocation5 + $0x28] sm:$0xff]
        %v255 = vld [vmem:[#allocation5 + $0x30] sm:$0xff]
        %v256 = vld [vmem:[#allocation5 + $0x38] sm:$0xff]
        %v259 = vunpack.c.l.b16 %v247
        %v260 = vunpack.c.l.b16 %v248
        %v261 = vpack.c.b16 %v260, %v259
        %v270 = vunpack.c.l.b16 %v249
        %v271 = vunpack.c.h.b16 %v249
        %v272 = vunpack.c.l.b16 %v250
        %v273 = vunpack.c.h.b16 %v250
        %v274 = vunpack.c.l.b16 %v251
        %v275 = vunpack.c.h.b16 %v251
        %v276 = vunpack.c.l.b16 %v252
        %v277 = vunpack.c.h.b16 %v252
        %v278 = vunpack.c.l.b16 %v253
        %v279 = vunpack.c.h.b16 %v253
        %v280 = vunpack.c.l.b16 %v254
        %v281 = vunpack.c.h.b16 %v254
        %v282 = vunpack.c.l.b16 %v255
        %v283 = vunpack.c.h.b16 %v255
        %v284 = vunpack.c.l.b16 %v256
        %v285 = vunpack.c.h.b16 %v256
        %v286 = vpack.c.b16 %v272, %v270
        %v287 = vpack.c.b16 %v273, %v271
        %v288 = vpack.c.b16 %v276, %v274
        %v289 = vpack.c.b16 %v277, %v275
        %v290 = vpack.c.b16 %v280, %v278
        %v291 = vpack.c.b16 %v281, %v279
        %v292 = vpack.c.b16 %v284, %v282
        %v293 = vpack.c.b16 %v285, %v283
        %vm302 = vcmask 523264
        %v304 = vsel %vm302, %v261, 0
        %306 = vmatprep.subr.bf16.mxu0 0
        %307 = vmatpush1.bf16.msra.mxu0 0
        %308 = vmatprep.subr.bf16.mxu0 0
        %309 = vmatpush1.bf16.msra.mxu0 0
        %310 = vmatprep.subr.bf16.mxu0 0
        %311 = vmatpush1.bf16.msra.mxu0 0
        %312 = vmatprep.subr.bf16.mxu0 0
        %313 = vmatpush1.bf16.msra.mxu0 0
        %314 = vmatprep.subr.bf16.mxu0 %v293
        %315 = vmatpush1.bf16.msra.mxu0 %v292
        %316 = vmatprep.subr.bf16.mxu0 %v291
        %317 = vmatpush1.bf16.msra.mxu0 %v290
        %318 = vmatprep.subr.bf16.mxu0 %v289
        %319 = vmatpush1.bf16.msra.mxu0 %v288
        %320 = vmatprep.subr.bf16.mxu0 %v287
        %321 = vmatpush1.bf16.msra.mxu0 %v286
        %322 = vmatprep.subr.bf16.mxu0 0
        %323 = vmatpush2.bf16.msra.mxu0 0
        %324 = vmatprep.subr.bf16.mxu0 0
        %325 = vmatpush2.bf16.msra.mxu0 0
        %326 = vmatprep.subr.bf16.mxu0 0
        %327 = vmatpush2.bf16.msra.mxu0 0
        %328 = vmatprep.subr.bf16.mxu0 0
        %329 = vmatpush2.bf16.msra.mxu0 0
        %330 = vmatprep.subr.bf16.mxu0 0
        %331 = vmatpush2.bf16.msra.mxu0 0
        %332 = vmatprep.subr.bf16.mxu0 0
        %333 = vmatpush2.bf16.msra.mxu0 0
        %334 = vmatprep.subr.bf16.mxu0 0
        %335 = vmatpush2.bf16.msra.mxu0 0
        %336 = vmatprep.subr.bf16.mxu0 0
        %337 = vmatpush2.bf16.msra.mxu0 0
        %338 = vmatprep.mubr.bf16.mxu0 0
        %339 = vmatmul.mubr.bf16.gmra.mxu0 %v304
        %v340 = vpop.f32.mrf.mxu0
        %v341 = vadd.f32 0.0, %v340
        %v342 = vpop.f32.mrf.mxu0
        %v343 = vadd.f32 0.0, %v342
        %v344 = vpop.f32.mrf.mxu0
        %v345 = vadd.f32 0.0, %v344
        %v346 = vpop.f32.mrf.mxu0
        %v347 = vadd.f32 0.0, %v346
        %348 = vdwg.mxu0
        %v349 = vpack.c.bf16 %v345, %v341
        %v350 = vpack.c.bf16 %v347, %v343
        %352 = vrot.lane.b32.xlu0 %v349, 120
        %v353 = vpop.permute.xlu0 %352
        %355 = vrot.lane.b32.xlu0 %v349, 112
        %v356 = vpop.permute.xlu0 %355
        %358 = vrot.lane.b32.xlu0 %v349, 104
        %v359 = vpop.permute.xlu0 %358
        %361 = vrot.lane.b32.xlu0 %v349, 96
        %v362 = vpop.permute.xlu0 %361
        %364 = vrot.lane.b32.xlu0 %v349, 88
        %v365 = vpop.permute.xlu0 %364
        %367 = vrot.lane.b32.xlu0 %v349, 80
        %v368 = vpop.permute.xlu0 %367
        %370 = vrot.lane.b32.xlu0 %v349, 72
        %v371 = vpop.permute.xlu0 %370
        %v373 = vmul.bf16 %v349, 1052065461
        %v374 = vmul.bf16 %v353, 1052065461
        %v375 = vmul.bf16 %v356, 1052065461
        %v376 = vmul.bf16 %v359, 1052065461
        %v377 = vmul.bf16 %v362, 1052065461
        %v378 = vmul.bf16 %v365, 1052065461
        %v379 = vmul.bf16 %v368, 1052065461
        %v380 = vmul.bf16 %v371, 1052065461
        %382 = vrot.lane.b32.xlu0 %v350, 120
        %v383 = vpop.permute.xlu0 %382
        %385 = vrot.lane.b32.xlu0 %v350, 112
        %v386 = vpop.permute.xlu0 %385
        %388 = vrot.lane.b32.xlu0 %v350, 104
        %v389 = vpop.permute.xlu0 %388
        %391 = vrot.lane.b32.xlu0 %v350, 96
        %v392 = vpop.permute.xlu0 %391
        %394 = vrot.lane.b32.xlu0 %v350, 88
        %v395 = vpop.permute.xlu0 %394
        %397 = vrot.lane.b32.xlu0 %v350, 80
        %v398 = vpop.permute.xlu0 %397
        %400 = vrot.lane.b32.xlu0 %v350, 72
        %v401 = vpop.permute.xlu0 %400
        %403 = vrot.lane.b32.xlu0 %v349, 64
        %v404 = vpop.permute.xlu0 %403
        %vm405 = vcmask 64512
        %v407 = vsel %vm405, %v373, 0
        %v410 = vsel %vm405, %v404, 0
        %412 = vmatprep.subr.bf16.mxu0 0
        %413 = vmatpush1.bf16.xpose.msra.mxu0 0
        %414 = vmatprep.subr.bf16.mxu0 0
        %415 = vmatpush1.bf16.xpose.msra.mxu0 0
        %416 = vmatprep.subr.bf16.mxu0 0
        %417 = vmatpush1.bf16.xpose.msra.mxu0 0
        %418 = vmatprep.subr.bf16.mxu0 0
        %419 = vmatpush1.bf16.xpose.msra.mxu0 0
        %420 = vmatprep.subr.bf16.mxu0 0
        %421 = vmatpush1.bf16.xpose.msra.mxu0 0
        %422 = vmatprep.subr.bf16.mxu0 0
        %423 = vmatpush1.bf16.xpose.msra.mxu0 0
        %424 = vmatprep.subr.bf16.mxu0 0
        %425 = vmatpush1.bf16.xpose.msra.mxu0 0
        %426 = vmatprep.subr.bf16.mxu0 0
        %427 = vmatpush1.bf16.xpose.msra.mxu0 %v410
        %428 = vmatprep.subr.bf16.mxu0 0
        %429 = vmatpush2.bf16.xpose.msra.mxu0 0
        %430 = vmatprep.subr.bf16.mxu0 0
        %431 = vmatpush2.bf16.xpose.msra.mxu0 0
        %432 = vmatprep.subr.bf16.mxu0 0
        %433 = vmatpush2.bf16.xpose.msra.mxu0 0
        %434 = vmatprep.subr.bf16.mxu0 0
        %435 = vmatpush2.bf16.xpose.msra.mxu0 0
        %436 = vmatprep.subr.bf16.mxu0 0
        %437 = vmatpush2.bf16.xpose.msra.mxu0 0
        %438 = vmatprep.subr.bf16.mxu0 0
        %439 = vmatpush2.bf16.xpose.msra.mxu0 0
        %440 = vmatprep.subr.bf16.mxu0 0
        %441 = vmatpush2.bf16.xpose.msra.mxu0 0
        %442 = vmatprep.subr.bf16.mxu0 0
        %443 = vmatpush2.bf16.xpose.msra.mxu0 0
        %444 = vmatprep.mubr.bf16.mxu0 0
        %445 = vmatmul.mubr.bf16.gmra.mxu0 %v407
        %v446 = vpop.f32.mrf.mxu0
        %v447 = vadd.f32 0.0, %v446
        %v448 = vpop.f32.mrf.mxu0
        %v449 = vpop.f32.mrf.mxu0
        %v450 = vadd.f32 0.0, %v449
        %v451 = vpop.f32.mrf.mxu0
        %452 = vdwg.mxu0
        %453 = vrot.lane.b32.xlu0 %v353, 64
        %v454 = vpop.permute.xlu0 %453
        %v456 = vsel %vm405, %v374, 0
        %v459 = vsel %vm405, %v454, 0
        %461 = vmatprep.subr.bf16.mxu0 0
        %462 = vmatpush1.bf16.xpose.msra.mxu0 0
        %463 = vmatprep.subr.bf16.mxu0 0
        %464 = vmatpush1.bf16.xpose.msra.mxu0 0
        %465 = vmatprep.subr.bf16.mxu0 0
        %466 = vmatpush1.bf16.xpose.msra.mxu0 0
        %467 = vmatprep.subr.bf16.mxu0 0
        %468 = vmatpush1.bf16.xpose.msra.mxu0 0
        %469 = vmatprep.subr.bf16.mxu0 0
        %470 = vmatpush1.bf16.xpose.msra.mxu0 0
        %471 = vmatprep.subr.bf16.mxu0 0
        %472 = vmatpush1.bf16.xpose.msra.mxu0 0
        %473 = vmatprep.subr.bf16.mxu0 0
        %474 = vmatpush1.bf16.xpose.msra.mxu0 0
        %475 = vmatprep.subr.bf16.mxu0 0
        %476 = vmatpush1.bf16.xpose.msra.mxu0 %v459
        %477 = vmatprep.subr.bf16.mxu0 0
        %478 = vmatpush2.bf16.xpose.msra.mxu0 0
        %479 = vmatprep.subr.bf16.mxu0 0
        %480 = vmatpush2.bf16.xpose.msra.mxu0 0
        %481 = vmatprep.subr.bf16.mxu0 0
        %482 = vmatpush2.bf16.xpose.msra.mxu0 0
        %483 = vmatprep.subr.bf16.mxu0 0
        %484 = vmatpush2.bf16.xpose.msra.mxu0 0
        %485 = vmatprep.subr.bf16.mxu0 0
        %486 = vmatpush2.bf16.xpose.msra.mxu0 0
        %487 = vmatprep.subr.bf16.mxu0 0
        %488 = vmatpush2.bf16.xpose.msra.mxu0 0
        %489 = vmatprep.subr.bf16.mxu0 0
        %490 = vmatpush2.bf16.xpose.msra.mxu0 0
        %491 = vmatprep.subr.bf16.mxu0 0
        %492 = vmatpush2.bf16.xpose.msra.mxu0 0
        %493 = vmatprep.mubr.bf16.mxu0 0
        %494 = vmatmul.mubr.bf16.gmra.mxu0 %v456
        %v495 = vpop.f32.mrf.mxu0
        %v496 = vadd.f32 0.0, %v495
        %v497 = vpop.f32.mrf.mxu0
        %v498 = vpop.f32.mrf.mxu0
        %v499 = vadd.f32 0.0, %v498
        %v500 = vpop.f32.mrf.mxu0
        %501 = vdwg.mxu0
        %502 = vrot.lane.b32.xlu0 %v356, 64
        %v503 = vpop.permute.xlu0 %502
        %v505 = vsel %vm405, %v375, 0
        %v508 = vsel %vm405, %v503, 0
        %510 = vmatprep.subr.bf16.mxu0 0
        %511 = vmatpush1.bf16.xpose.msra.mxu0 0
        %512 = vmatprep.subr.bf16.mxu0 0
        %513 = vmatpush1.bf16.xpose.msra.mxu0 0
        %514 = vmatprep.subr.bf16.mxu0 0
        %515 = vmatpush1.bf16.xpose.msra.mxu0 0
        %516 = vmatprep.subr.bf16.mxu0 0
        %517 = vmatpush1.bf16.xpose.msra.mxu0 0
        %518 = vmatprep.subr.bf16.mxu0 0
        %519 = vmatpush1.bf16.xpose.msra.mxu0 0
        %520 = vmatprep.subr.bf16.mxu0 0
        %521 = vmatpush1.bf16.xpose.msra.mxu0 0
        %522 = vmatprep.subr.bf16.mxu0 0
        %523 = vmatpush1.bf16.xpose.msra.mxu0 0
        %524 = vmatprep.subr.bf16.mxu0 0
        %525 = vmatpush1.bf16.xpose.msra.mxu0 %v508
        %526 = vmatprep.subr.bf16.mxu0 0
        %527 = vmatpush2.bf16.xpose.msra.mxu0 0
        %528 = vmatprep.subr.bf16.mxu0 0
        %529 = vmatpush2.bf16.xpose.msra.mxu0 0
        %530 = vmatprep.subr.bf16.mxu0 0
        %531 = vmatpush2.bf16.xpose.msra.mxu0 0
        %532 = vmatprep.subr.bf16.mxu0 0
        %533 = vmatpush2.bf16.xpose.msra.mxu0 0
        %534 = vmatprep.subr.bf16.mxu0 0
        %535 = vmatpush2.bf16.xpose.msra.mxu0 0
        %536 = vmatprep.subr.bf16.mxu0 0
        %537 = vmatpush2.bf16.xpose.msra.mxu0 0
        %538 = vmatprep.subr.bf16.mxu0 0
        %539 = vmatpush2.bf16.xpose.msra.mxu0 0
        %540 = vmatprep.subr.bf16.mxu0 0
        %541 = vmatpush2.bf16.xpose.msra.mxu0 0
        %542 = vmatprep.mubr.bf16.mxu0 0
        %543 = vmatmul.mubr.bf16.gmra.mxu0 %v505
        %v544 = vpop.f32.mrf.mxu0
        %v545 = vadd.f32 0.0, %v544
        %v546 = vpop.f32.mrf.mxu0
        %v547 = vpop.f32.mrf.mxu0
        %v548 = vadd.f32 0.0, %v547
        %v549 = vpop.f32.mrf.mxu0
        %550 = vdwg.mxu0
        %551 = vrot.lane.b32.xlu0 %v359, 64
        %v552 = vpop.permute.xlu0 %551
        %v554 = vsel %vm405, %v376, 0
        %v557 = vsel %vm405, %v552, 0
        %559 = vmatprep.subr.bf16.mxu0 0
        %560 = vmatpush1.bf16.xpose.msra.mxu0 0
        %561 = vmatprep.subr.bf16.mxu0 0
        %562 = vmatpush1.bf16.xpose.msra.mxu0 0
        %563 = vmatprep.subr.bf16.mxu0 0
        %564 = vmatpush1.bf16.xpose.msra.mxu0 0
        %565 = vmatprep.subr.bf16.mxu0 0
        %566 = vmatpush1.bf16.xpose.msra.mxu0 0
        %567 = vmatprep.subr.bf16.mxu0 0
        %568 = vmatpush1.bf16.xpose.msra.mxu0 0
        %569 = vmatprep.subr.bf16.mxu0 0
        %570 = vmatpush1.bf16.xpose.msra.mxu0 0
        %571 = vmatprep.subr.bf16.mxu0 0
        %572 = vmatpush1.bf16.xpose.msra.mxu0 0
        %573 = vmatprep.subr.bf16.mxu0 0
        %574 = vmatpush1.bf16.xpose.msra.mxu0 %v557
        %575 = vmatprep.subr.bf16.mxu0 0
        %576 = vmatpush2.bf16.xpose.msra.mxu0 0
        %577 = vmatprep.subr.bf16.mxu0 0
        %578 = vmatpush2.bf16.xpose.msra.mxu0 0
        %579 = vmatprep.subr.bf16.mxu0 0
        %580 = vmatpush2.bf16.xpose.msra.mxu0 0
        %581 = vmatprep.subr.bf16.mxu0 0
        %582 = vmatpush2.bf16.xpose.msra.mxu0 0
        %583 = vmatprep.subr.bf16.mxu0 0
        %584 = vmatpush2.bf16.xpose.msra.mxu0 0
        %585 = vmatprep.subr.bf16.mxu0 0
        %586 = vmatpush2.bf16.xpose.msra.mxu0 0
        %587 = vmatprep.subr.bf16.mxu0 0
        %588 = vmatpush2.bf16.xpose.msra.mxu0 0
        %589 = vmatprep.subr.bf16.mxu0 0
        %590 = vmatpush2.bf16.xpose.msra.mxu0 0
        %591 = vmatprep.mubr.bf16.mxu0 0
        %592 = vmatmul.mubr.bf16.gmra.mxu0 %v554
        %v593 = vpop.f32.mrf.mxu0
        %v594 = vadd.f32 0.0, %v593
        %v595 = vpop.f32.mrf.mxu0
        %v596 = vpop.f32.mrf.mxu0
        %v597 = vadd.f32 0.0, %v596
        %v598 = vpop.f32.mrf.mxu0
        %599 = vdwg.mxu0
        %600 = vrot.lane.b32.xlu0 %v362, 64
        %v601 = vpop.permute.xlu0 %600
        %v603 = vsel %vm405, %v377, 0
        %v606 = vsel %vm405, %v601, 0
        %608 = vmatprep.subr.bf16.mxu0 0
        %609 = vmatpush1.bf16.xpose.msra.mxu0 0
        %610 = vmatprep.subr.bf16.mxu0 0
        %611 = vmatpush1.bf16.xpose.msra.mxu0 0
        %612 = vmatprep.subr.bf16.mxu0 0
        %613 = vmatpush1.bf16.xpose.msra.mxu0 0
        %614 = vmatprep.subr.bf16.mxu0 0
        %615 = vmatpush1.bf16.xpose.msra.mxu0 0
        %616 = vmatprep.subr.bf16.mxu0 0
        %617 = vmatpush1.bf16.xpose.msra.mxu0 0
        %618 = vmatprep.subr.bf16.mxu0 0
        %619 = vmatpush1.bf16.xpose.msra.mxu0 0
        %620 = vmatprep.subr.bf16.mxu0 0
        %621 = vmatpush1.bf16.xpose.msra.mxu0 0
        %622 = vmatprep.subr.bf16.mxu0 0
        %623 = vmatpush1.bf16.xpose.msra.mxu0 %v606
        %624 = vmatprep.subr.bf16.mxu0 0
        %625 = vmatpush2.bf16.xpose.msra.mxu0 0
        %626 = vmatprep.subr.bf16.mxu0 0
        %627 = vmatpush2.bf16.xpose.msra.mxu0 0
        %628 = vmatprep.subr.bf16.mxu0 0
        %629 = vmatpush2.bf16.xpose.msra.mxu0 0
        %630 = vmatprep.subr.bf16.mxu0 0
        %631 = vmatpush2.bf16.xpose.msra.mxu0 0
        %632 = vmatprep.subr.bf16.mxu0 0
        %633 = vmatpush2.bf16.xpose.msra.mxu0 0
        %634 = vmatprep.subr.bf16.mxu0 0
        %635 = vmatpush2.bf16.xpose.msra.mxu0 0
        %636 = vmatprep.subr.bf16.mxu0 0
        %637 = vmatpush2.bf16.xpose.msra.mxu0 0
        %638 = vmatprep.subr.bf16.mxu0 0
        %639 = vmatpush2.bf16.xpose.msra.mxu0 0
        %640 = vmatprep.mubr.bf16.mxu0 0
        %641 = vmatmul.mubr.bf16.gmra.mxu0 %v603
        %v642 = vpop.f32.mrf.mxu0
        %v643 = vadd.f32 0.0, %v642
        %v644 = vpop.f32.mrf.mxu0
        %v645 = vpop.f32.mrf.mxu0
        %v646 = vadd.f32 0.0, %v645
        %v647 = vpop.f32.mrf.mxu0
        %648 = vdwg.mxu0
        %649 = vrot.lane.b32.xlu0 %v365, 64
        %v650 = vpop.permute.xlu0 %649
        %v652 = vsel %vm405, %v378, 0
        %v655 = vsel %vm405, %v650, 0
        %657 = vmatprep.subr.bf16.mxu0 0
        %658 = vmatpush1.bf16.xpose.msra.mxu0 0
        %659 = vmatprep.subr.bf16.mxu0 0
        %660 = vmatpush1.bf16.xpose.msra.mxu0 0
        %661 = vmatprep.subr.bf16.mxu0 0
        %662 = vmatpush1.bf16.xpose.msra.mxu0 0
        %663 = vmatprep.subr.bf16.mxu0 0
        %664 = vmatpush1.bf16.xpose.msra.mxu0 0
        %665 = vmatprep.subr.bf16.mxu0 0
        %666 = vmatpush1.bf16.xpose.msra.mxu0 0
        %667 = vmatprep.subr.bf16.mxu0 0
        %668 = vmatpush1.bf16.xpose.msra.mxu0 0
        %669 = vmatprep.subr.bf16.mxu0 0
        %670 = vmatpush1.bf16.xpose.msra.mxu0 0
        %671 = vmatprep.subr.bf16.mxu0 0
        %672 = vmatpush1.bf16.xpose.msra.mxu0 %v655
        %673 = vmatprep.subr.bf16.mxu0 0
        %674 = vmatpush2.bf16.xpose.msra.mxu0 0
        %675 = vmatprep.subr.bf16.mxu0 0
        %676 = vmatpush2.bf16.xpose.msra.mxu0 0
        %677 = vmatprep.subr.bf16.mxu0 0
        %678 = vmatpush2.bf16.xpose.msra.mxu0 0
        %679 = vmatprep.subr.bf16.mxu0 0
        %680 = vmatpush2.bf16.xpose.msra.mxu0 0
        %681 = vmatprep.subr.bf16.mxu0 0
        %682 = vmatpush2.bf16.xpose.msra.mxu0 0
        %683 = vmatprep.subr.bf16.mxu0 0
        %684 = vmatpush2.bf16.xpose.msra.mxu0 0
        %685 = vmatprep.subr.bf16.mxu0 0
        %686 = vmatpush2.bf16.xpose.msra.mxu0 0
        %687 = vmatprep.subr.bf16.mxu0 0
        %688 = vmatpush2.bf16.xpose.msra.mxu0 0
        %689 = vmatprep.mubr.bf16.mxu0 0
        %690 = vmatmul.mubr.bf16.gmra.mxu0 %v652
        %v691 = vpop.f32.mrf.mxu0
        %v692 = vadd.f32 0.0, %v691
        %v693 = vpop.f32.mrf.mxu0
        %v694 = vpop.f32.mrf.mxu0
        %v695 = vadd.f32 0.0, %v694
        %v696 = vpop.f32.mrf.mxu0
        %697 = vdwg.mxu0
        %698 = vrot.lane.b32.xlu0 %v368, 64
        %v699 = vpop.permute.xlu0 %698
        %v701 = vsel %vm405, %v379, 0
        %v704 = vsel %vm405, %v699, 0
        %706 = vmatprep.subr.bf16.mxu0 0
        %707 = vmatpush1.bf16.xpose.msra.mxu0 0
        %708 = vmatprep.subr.bf16.mxu0 0
        %709 = vmatpush1.bf16.xpose.msra.mxu0 0
        %710 = vmatprep.subr.bf16.mxu0 0
        %711 = vmatpush1.bf16.xpose.msra.mxu0 0
        %712 = vmatprep.subr.bf16.mxu0 0
        %713 = vmatpush1.bf16.xpose.msra.mxu0 0
        %714 = vmatprep.subr.bf16.mxu0 0
        %715 = vmatpush1.bf16.xpose.msra.mxu0 0
        %716 = vmatprep.subr.bf16.mxu0 0
        %717 = vmatpush1.bf16.xpose.msra.mxu0 0
        %718 = vmatprep.subr.bf16.mxu0 0
        %719 = vmatpush1.bf16.xpose.msra.mxu0 0
        %720 = vmatprep.subr.bf16.mxu0 0
        %721 = vmatpush1.bf16.xpose.msra.mxu0 %v704
        %722 = vmatprep.subr.bf16.mxu0 0
        %723 = vmatpush2.bf16.xpose.msra.mxu0 0
        %724 = vmatprep.subr.bf16.mxu0 0
        %725 = vmatpush2.bf16.xpose.msra.mxu0 0
        %726 = vmatprep.subr.bf16.mxu0 0
        %727 = vmatpush2.bf16.xpose.msra.mxu0 0
        %728 = vmatprep.subr.bf16.mxu0 0
        %729 = vmatpush2.bf16.xpose.msra.mxu0 0
        %730 = vmatprep.subr.bf16.mxu0 0
        %731 = vmatpush2.bf16.xpose.msra.mxu0 0
        %732 = vmatprep.subr.bf16.mxu0 0
        %733 = vmatpush2.bf16.xpose.msra.mxu0 0
        %734 = vmatprep.subr.bf16.mxu0 0
        %735 = vmatpush2.bf16.xpose.msra.mxu0 0
        %736 = vmatprep.subr.bf16.mxu0 0
        %737 = vmatpush2.bf16.xpose.msra.mxu0 0
        %738 = vmatprep.mubr.bf16.mxu0 0
        %739 = vmatmul.mubr.bf16.gmra.mxu0 %v701
        %v740 = vpop.f32.mrf.mxu0
        %v741 = vadd.f32 0.0, %v740
        %v742 = vpop.f32.mrf.mxu0
        %v743 = vpop.f32.mrf.mxu0
        %v744 = vadd.f32 0.0, %v743
        %v745 = vpop.f32.mrf.mxu0
        %746 = vdwg.mxu0
        %747 = vrot.lane.b32.xlu0 %v371, 64
        %v748 = vpop.permute.xlu0 %747
        %v750 = vsel %vm405, %v380, 0
        %v753 = vsel %vm405, %v748, 0
        %755 = vmatprep.subr.bf16.mxu0 0
        %756 = vmatpush1.bf16.xpose.msra.mxu0 0
        %757 = vmatprep.subr.bf16.mxu0 0
        %758 = vmatpush1.bf16.xpose.msra.mxu0 0
        %759 = vmatprep.subr.bf16.mxu0 0
        %760 = vmatpush1.bf16.xpose.msra.mxu0 0
        %761 = vmatprep.subr.bf16.mxu0 0
        %762 = vmatpush1.bf16.xpose.msra.mxu0 0
        %763 = vmatprep.subr.bf16.mxu0 0
        %764 = vmatpush1.bf16.xpose.msra.mxu0 0
        %765 = vmatprep.subr.bf16.mxu0 0
        %766 = vmatpush1.bf16.xpose.msra.mxu0 0
        %767 = vmatprep.subr.bf16.mxu0 0
        %768 = vmatpush1.bf16.xpose.msra.mxu0 0
        %769 = vmatprep.subr.bf16.mxu0 0
        %770 = vmatpush1.bf16.xpose.msra.mxu0 %v753
        %771 = vmatprep.subr.bf16.mxu0 0
        %772 = vmatpush2.bf16.xpose.msra.mxu0 0
        %773 = vmatprep.subr.bf16.mxu0 0
        %774 = vmatpush2.bf16.xpose.msra.mxu0 0
        %775 = vmatprep.subr.bf16.mxu0 0
        %776 = vmatpush2.bf16.xpose.msra.mxu0 0
        %777 = vmatprep.subr.bf16.mxu0 0
        %778 = vmatpush2.bf16.xpose.msra.mxu0 0
        %779 = vmatprep.subr.bf16.mxu0 0
        %780 = vmatpush2.bf16.xpose.msra.mxu0 0
        %781 = vmatprep.subr.bf16.mxu0 0
        %782 = vmatpush2.bf16.xpose.msra.mxu0 0
        %783 = vmatprep.subr.bf16.mxu0 0
        %784 = vmatpush2.bf16.xpose.msra.mxu0 0
        %785 = vmatprep.subr.bf16.mxu0 0
        %786 = vmatpush2.bf16.xpose.msra.mxu0 0
        %787 = vmatprep.mubr.bf16.mxu0 0
        %788 = vmatmul.mubr.bf16.gmra.mxu0 %v750
        %v789 = vpop.f32.mrf.mxu0
        %v790 = vadd.f32 0.0, %v789
        %v791 = vpop.f32.mrf.mxu0
        %v792 = vpop.f32.mrf.mxu0
        %v793 = vadd.f32 0.0, %v792
        %v794 = vpop.f32.mrf.mxu0
        %795 = vdwg.mxu0
        %vm796 = vcmask 130048
        %v797 = vsel %vm796, %v447, -inf
        %798 = vmax.xlane.f32.xlu0 %v797
        %v799 = vpop.xlane.xlu0 %798
        %v800 = vsel %vm796, %v450, -inf
        %801 = vmax.xlane.f32.xlu0 %v800
        %v802 = vpop.xlane.xlu0 %801
        %v803 = vsel %vm796, %v496, -inf
        %804 = vmax.xlane.f32.xlu0 %v803
        %v805 = vpop.xlane.xlu0 %804
        %v806 = vsel %vm796, %v499, -inf
        %807 = vmax.xlane.f32.xlu0 %v806
        %v808 = vpop.xlane.xlu0 %807
        %v809 = vsel %vm796, %v545, -inf
        %810 = vmax.xlane.f32.xlu0 %v809
        %v811 = vpop.xlane.xlu0 %810
        %v812 = vsel %vm796, %v548, -inf
        %813 = vmax.xlane.f32.xlu0 %v812
        %v814 = vpop.xlane.xlu0 %813
        %v815 = vsel %vm796, %v594, -inf
        %816 = vmax.xlane.f32.xlu0 %v815
        %v817 = vpop.xlane.xlu0 %816
        %v818 = vsel %vm796, %v597, -inf
        %819 = vmax.xlane.f32.xlu0 %v818
        %v820 = vpop.xlane.xlu0 %819
        %v821 = vsel %vm796, %v643, -inf
        %822 = vmax.xlane.f32.xlu0 %v821
        %v823 = vpop.xlane.xlu0 %822
        %v824 = vsel %vm796, %v646, -inf
        %825 = vmax.xlane.f32.xlu0 %v824
        %v826 = vpop.xlane.xlu0 %825
        %v827 = vsel %vm796, %v692, -inf
        %828 = vmax.xlane.f32.xlu0 %v827
        %v829 = vpop.xlane.xlu0 %828
        %v830 = vsel %vm796, %v695, -inf
        %831 = vmax.xlane.f32.xlu0 %v830
        %v832 = vpop.xlane.xlu0 %831
        %v833 = vsel %vm796, %v741, -inf
        %834 = vmax.xlane.f32.xlu0 %v833
        %v835 = vpop.xlane.xlu0 %834
        %v836 = vsel %vm796, %v744, -inf
        %837 = vmax.xlane.f32.xlu0 %v836
        %v838 = vpop.xlane.xlu0 %837
        %v839 = vsel %vm796, %v790, -inf
        %840 = vmax.xlane.f32.xlu0 %v839
        %v841 = vpop.xlane.xlu0 %840
        %v842 = vsel %vm796, %v793, -inf
        %843 = vmax.xlane.f32.xlu0 %v842
        %v844 = vpop.xlane.xlu0 %843
        %v845 = vsub.f32 %v447, %v799
        %v846 = vsub.f32 %v450, %v802
        %v847 = vsub.f32 %v496, %v805
        %v848 = vsub.f32 %v499, %v808
        %v849 = vsub.f32 %v545, %v811
        %v850 = vsub.f32 %v548, %v814
        %v851 = vsub.f32 %v594, %v817
        %v852 = vsub.f32 %v597, %v820
        %v853 = vsub.f32 %v643, %v823
        %v854 = vsub.f32 %v646, %v826
        %v855 = vsub.f32 %v692, %v829
        %v856 = vsub.f32 %v695, %v832
        %v857 = vsub.f32 %v741, %v835
        %v858 = vsub.f32 %v744, %v838
        %v859 = vsub.f32 %v790, %v841
        %v860 = vsub.f32 %v793, %v844
        %v861 = vmul.f32 %v845, 1.442695
        %v862 = vpow.pop %v861
        %v863 = vmul.f32 %v846, 1.442695
        %v864 = vpow.pop %v863
        %v865 = vmul.f32 %v847, 1.442695
        %v866 = vpow.pop %v865
        %v867 = vmul.f32 %v848, 1.442695
        %v868 = vpow.pop %v867
        %v869 = vmul.f32 %v849, 1.442695
        %v870 = vpow.pop %v869
        %v871 = vmul.f32 %v850, 1.442695
        %v872 = vpow.pop %v871
        %v873 = vmul.f32 %v851, 1.442695
        %v874 = vpow.pop %v873
        %v875 = vmul.f32 %v852, 1.442695
        %v876 = vpow.pop %v875
        %v877 = vmul.f32 %v853, 1.442695
        %v878 = vpow.pop %v877
        %v879 = vmul.f32 %v854, 1.442695
        %v880 = vpow.pop %v879
        %v881 = vmul.f32 %v855, 1.442695
        %v882 = vpow.pop %v881
        %v883 = vmul.f32 %v856, 1.442695
        %v884 = vpow.pop %v883
        %v885 = vmul.f32 %v857, 1.442695
        %v886 = vpow.pop %v885
        %v887 = vmul.f32 %v858, 1.442695
        %v888 = vpow.pop %v887
        %v889 = vmul.f32 %v859, 1.442695
        %v890 = vpow.pop %v889
        %v891 = vmul.f32 %v860, 1.442695
        %v892 = vpow.pop %v891
        %v893 = vsel %vm796, %v862, 0.0
        %894 = vadd.xlane.f32.xlu0 %v893
        %v895 = vpop.xlane.xlu0 %894
        %v896 = vsel %vm796, %v864, 0.0
        %897 = vadd.xlane.f32.xlu0 %v896
        %v898 = vpop.xlane.xlu0 %897
        %v899 = vsel %vm796, %v866, 0.0
        %900 = vadd.xlane.f32.xlu0 %v899
        %v901 = vpop.xlane.xlu0 %900
        %v902 = vsel %vm796, %v868, 0.0
        %903 = vadd.xlane.f32.xlu0 %v902
        %v904 = vpop.xlane.xlu0 %903
        %v905 = vsel %vm796, %v870, 0.0
        %906 = vadd.xlane.f32.xlu0 %v905
        %v907 = vpop.xlane.xlu0 %906
        %v908 = vsel %vm796, %v872, 0.0
        %909 = vadd.xlane.f32.xlu0 %v908
        %v910 = vpop.xlane.xlu0 %909
        %v911 = vsel %vm796, %v874, 0.0
        %912 = vadd.xlane.f32.xlu0 %v911
        %v913 = vpop.xlane.xlu0 %912
        %v914 = vsel %vm796, %v876, 0.0
        %915 = vadd.xlane.f32.xlu0 %v914
        %v916 = vpop.xlane.xlu0 %915
        %v917 = vsel %vm796, %v878, 0.0
        %918 = vadd.xlane.f32.xlu0 %v917
        %v919 = vpop.xlane.xlu0 %918
        %v920 = vsel %vm796, %v880, 0.0
        %921 = vadd.xlane.f32.xlu0 %v920
        %v922 = vpop.xlane.xlu0 %921
        %v923 = vsel %vm796, %v882, 0.0
        %924 = vadd.xlane.f32.xlu0 %v923
        %v925 = vpop.xlane.xlu0 %924
        %v926 = vsel %vm796, %v884, 0.0
        %927 = vadd.xlane.f32.xlu0 %v926
        %v928 = vpop.xlane.xlu0 %927
        %v929 = vsel %vm796, %v886, 0.0
        %930 = vadd.xlane.f32.xlu0 %v929
        %v931 = vpop.xlane.xlu0 %930
        %v932 = vsel %vm796, %v888, 0.0
        %933 = vadd.xlane.f32.xlu0 %v932
        %v934 = vpop.xlane.xlu0 %933
        %v935 = vsel %vm796, %v890, 0.0
        %936 = vadd.xlane.f32.xlu0 %v935
        %v937 = vpop.xlane.xlu0 %936
        %v938 = vsel %vm796, %v892, 0.0
        %939 = vadd.xlane.f32.xlu0 %v938
        %v940 = vpop.xlane.xlu0 %939
        %v941 = vpack.c.bf16 %v864, %v862
        %v942 = vpack.c.bf16 %v868, %v866
        %v943 = vpack.c.bf16 %v872, %v870
        %v944 = vpack.c.bf16 %v876, %v874
        %v945 = vpack.c.bf16 %v880, %v878
        %v946 = vpack.c.bf16 %v884, %v882
        %v947 = vpack.c.bf16 %v888, %v886
        %v948 = vpack.c.bf16 %v892, %v890
        %v950 = vsel %vm796, %v941, 0
        %952 = vmatprep.subr.bf16.mxu0 0
        %953 = vmatpush1.bf16.msra.mxu0 0
        %954 = vmatprep.subr.bf16.mxu0 0
        %955 = vmatpush1.bf16.msra.mxu0 0
        %956 = vmatprep.subr.bf16.mxu0 0
        %957 = vmatpush1.bf16.msra.mxu0 0
        %958 = vmatprep.subr.bf16.mxu0 0
        %959 = vmatpush1.bf16.msra.mxu0 0
        %960 = vmatprep.subr.bf16.mxu0 0
        %961 = vmatpush1.bf16.msra.mxu0 0
        %962 = vmatprep.subr.bf16.mxu0 0
        %963 = vmatpush1.bf16.msra.mxu0 0
        %964 = vmatprep.subr.bf16.mxu0 0
        %965 = vmatpush1.bf16.msra.mxu0 0
        %966 = vmatprep.subr.bf16.mxu0 0
        %967 = vmatpush1.bf16.msra.mxu0 %v350
        %968 = vmatprep.subr.bf16.mxu0 0
        %969 = vmatpush2.bf16.msra.mxu0 0
        %970 = vmatprep.subr.bf16.mxu0 0
        %971 = vmatpush2.bf16.msra.mxu0 0
        %972 = vmatprep.subr.bf16.mxu0 0
        %973 = vmatpush2.bf16.msra.mxu0 0
        %974 = vmatprep.subr.bf16.mxu0 0
        %975 = vmatpush2.bf16.msra.mxu0 0
        %976 = vmatprep.subr.bf16.mxu0 0
        %977 = vmatpush2.bf16.msra.mxu0 0
        %978 = vmatprep.subr.bf16.mxu0 0
        %979 = vmatpush2.bf16.msra.mxu0 0
        %980 = vmatprep.subr.bf16.mxu0 0
        %981 = vmatpush2.bf16.msra.mxu0 0
        %982 = vmatprep.subr.bf16.mxu0 0
        %983 = vmatpush2.bf16.msra.mxu0 0
        %984 = vmatprep.mubr.bf16.mxu0 0
        %985 = vmatmul.mubr.bf16.gmra.mxu0 %v950
        %v986 = vpop.f32.mrf.mxu0
        %v987 = vadd.f32 0.0, %v986
        %v988 = vpop.f32.mrf.mxu0
        %v989 = vpop.f32.mrf.mxu0
        %v990 = vadd.f32 0.0, %v989
        %v991 = vpop.f32.mrf.mxu0
        %992 = vdwg.mxu0
        %v994 = vsel %vm796, %v942, 0
        %996 = vmatprep.subr.bf16.mxu0 0
        %997 = vmatpush1.bf16.msra.mxu0 0
        %998 = vmatprep.subr.bf16.mxu0 0
        %999 = vmatpush1.bf16.msra.mxu0 0
        %1000 = vmatprep.subr.bf16.mxu0 0
        %1001 = vmatpush1.bf16.msra.mxu0 0
        %1002 = vmatprep.subr.bf16.mxu0 0
        %1003 = vmatpush1.bf16.msra.mxu0 0
        %1004 = vmatprep.subr.bf16.mxu0 0
        %1005 = vmatpush1.bf16.msra.mxu0 0
        %1006 = vmatprep.subr.bf16.mxu0 0
        %1007 = vmatpush1.bf16.msra.mxu0 0
        %1008 = vmatprep.subr.bf16.mxu0 0
        %1009 = vmatpush1.bf16.msra.mxu0 0
        %1010 = vmatprep.subr.bf16.mxu0 0
        %1011 = vmatpush1.bf16.msra.mxu0 %v383
        %1012 = vmatprep.subr.bf16.mxu0 0
        %1013 = vmatpush2.bf16.msra.mxu0 0
        %1014 = vmatprep.subr.bf16.mxu0 0
        %1015 = vmatpush2.bf16.msra.mxu0 0
        %1016 = vmatprep.subr.bf16.mxu0 0
        %1017 = vmatpush2.bf16.msra.mxu0 0
        %1018 = vmatprep.subr.bf16.mxu0 0
        %1019 = vmatpush2.bf16.msra.mxu0 0
        %1020 = vmatprep.subr.bf16.mxu0 0
        %1021 = vmatpush2.bf16.msra.mxu0 0
        %1022 = vmatprep.subr.bf16.mxu0 0
        %1023 = vmatpush2.bf16.msra.mxu0 0
        %1024 = vmatprep.subr.bf16.mxu0 0
        %1025 = vmatpush2.bf16.msra.mxu0 0
        %1026 = vmatprep.subr.bf16.mxu0 0
        %1027 = vmatpush2.bf16.msra.mxu0 0
        %1028 = vmatprep.mubr.bf16.mxu0 0
        %1029 = vmatmul.mubr.bf16.gmra.mxu0 %v994
        %v1030 = vpop.f32.mrf.mxu0
        %v1031 = vadd.f32 0.0, %v1030
        %v1032 = vpop.f32.mrf.mxu0
        %v1033 = vpop.f32.mrf.mxu0
        %v1034 = vadd.f32 0.0, %v1033
        %v1035 = vpop.f32.mrf.mxu0
        %1036 = vdwg.mxu0
        %v1038 = vsel %vm796, %v943, 0
        %1040 = vmatprep.subr.bf16.mxu0 0
        %1041 = vmatpush1.bf16.msra.mxu0 0
        %1042 = vmatprep.subr.bf16.mxu0 0
        %1043 = vmatpush1.bf16.msra.mxu0 0
        %1044 = vmatprep.subr.bf16.mxu0 0
        %1045 = vmatpush1.bf16.msra.mxu0 0
        %1046 = vmatprep.subr.bf16.mxu0 0
        %1047 = vmatpush1.bf16.msra.mxu0 0
        %1048 = vmatprep.subr.bf16.mxu0 0
        %1049 = vmatpush1.bf16.msra.mxu0 0
        %1050 = vmatprep.subr.bf16.mxu0 0
        %1051 = vmatpush1.bf16.msra.mxu0 0
        %1052 = vmatprep.subr.bf16.mxu0 0
        %1053 = vmatpush1.bf16.msra.mxu0 0
        %1054 = vmatprep.subr.bf16.mxu0 0
        %1055 = vmatpush1.bf16.msra.mxu0 %v386
        %1056 = vmatprep.subr.bf16.mxu0 0
        %1057 = vmatpush2.bf16.msra.mxu0 0
        %1058 = vmatprep.subr.bf16.mxu0 0
        %1059 = vmatpush2.bf16.msra.mxu0 0
        %1060 = vmatprep.subr.bf16.mxu0 0
        %1061 = vmatpush2.bf16.msra.mxu0 0
        %1062 = vmatprep.subr.bf16.mxu0 0
        %1063 = vmatpush2.bf16.msra.mxu0 0
        %1064 = vmatprep.subr.bf16.mxu0 0
        %1065 = vmatpush2.bf16.msra.mxu0 0
        %1066 = vmatprep.subr.bf16.mxu0 0
        %1067 = vmatpush2.bf16.msra.mxu0 0
        %1068 = vmatprep.subr.bf16.mxu0 0
        %1069 = vmatpush2.bf16.msra.mxu0 0
        %1070 = vmatprep.subr.bf16.mxu0 0
        %1071 = vmatpush2.bf16.msra.mxu0 0
        %1072 = vmatprep.mubr.bf16.mxu0 0
        %1073 = vmatmul.mubr.bf16.gmra.mxu0 %v1038
        %v1074 = vpop.f32.mrf.mxu0
        %v1075 = vadd.f32 0.0, %v1074
        %v1076 = vpop.f32.mrf.mxu0
        %v1077 = vpop.f32.mrf.mxu0
        %v1078 = vadd.f32 0.0, %v1077
        %v1079 = vpop.f32.mrf.mxu0
        %1080 = vdwg.mxu0
        %v1082 = vsel %vm796, %v944, 0
        %1084 = vmatprep.subr.bf16.mxu0 0
        %1085 = vmatpush1.bf16.msra.mxu0 0
        %1086 = vmatprep.subr.bf16.mxu0 0
        %1087 = vmatpush1.bf16.msra.mxu0 0
        %1088 = vmatprep.subr.bf16.mxu0 0
        %1089 = vmatpush1.bf16.msra.mxu0 0
        %1090 = vmatprep.subr.bf16.mxu0 0
        %1091 = vmatpush1.bf16.msra.mxu0 0
        %1092 = vmatprep.subr.bf16.mxu0 0
        %1093 = vmatpush1.bf16.msra.mxu0 0
        %1094 = vmatprep.subr.bf16.mxu0 0
        %1095 = vmatpush1.bf16.msra.mxu0 0
        %1096 = vmatprep.subr.bf16.mxu0 0
        %1097 = vmatpush1.bf16.msra.mxu0 0
        %1098 = vmatprep.subr.bf16.mxu0 0
        %1099 = vmatpush1.bf16.msra.mxu0 %v389
        %1100 = vmatprep.subr.bf16.mxu0 0
        %1101 = vmatpush2.bf16.msra.mxu0 0
        %1102 = vmatprep.subr.bf16.mxu0 0
        %1103 = vmatpush2.bf16.msra.mxu0 0
        %1104 = vmatprep.subr.bf16.mxu0 0
        %1105 = vmatpush2.bf16.msra.mxu0 0
        %1106 = vmatprep.subr.bf16.mxu0 0
        %1107 = vmatpush2.bf16.msra.mxu0 0
        %1108 = vmatprep.subr.bf16.mxu0 0
        %1109 = vmatpush2.bf16.msra.mxu0 0
        %1110 = vmatprep.subr.bf16.mxu0 0
        %1111 = vmatpush2.bf16.msra.mxu0 0
        %1112 = vmatprep.subr.bf16.mxu0 0
        %1113 = vmatpush2.bf16.msra.mxu0 0
        %1114 = vmatprep.subr.bf16.mxu0 0
        %1115 = vmatpush2.bf16.msra.mxu0 0
        %1116 = vmatprep.mubr.bf16.mxu0 0
        %1117 = vmatmul.mubr.bf16.gmra.mxu0 %v1082
        %v1118 = vpop.f32.mrf.mxu0
        %v1119 = vadd.f32 0.0, %v1118
        %v1120 = vpop.f32.mrf.mxu0
        %v1121 = vpop.f32.mrf.mxu0
        %v1122 = vadd.f32 0.0, %v1121
        %v1123 = vpop.f32.mrf.mxu0
        %1124 = vdwg.mxu0
        %v1126 = vsel %vm796, %v945, 0
        %1128 = vmatprep.subr.bf16.mxu0 0
        %1129 = vmatpush1.bf16.msra.mxu0 0
        %1130 = vmatprep.subr.bf16.mxu0 0
        %1131 = vmatpush1.bf16.msra.mxu0 0
        %1132 = vmatprep.subr.bf16.mxu0 0
        %1133 = vmatpush1.bf16.msra.mxu0 0
        %1134 = vmatprep.subr.bf16.mxu0 0
        %1135 = vmatpush1.bf16.msra.mxu0 0
        %1136 = vmatprep.subr.bf16.mxu0 0
        %1137 = vmatpush1.bf16.msra.mxu0 0
        %1138 = vmatprep.subr.bf16.mxu0 0
        %1139 = vmatpush1.bf16.msra.mxu0 0
        %1140 = vmatprep.subr.bf16.mxu0 0
        %1141 = vmatpush1.bf16.msra.mxu0 0
        %1142 = vmatprep.subr.bf16.mxu0 0
        %1143 = vmatpush1.bf16.msra.mxu0 %v392
        %1144 = vmatprep.subr.bf16.mxu0 0
        %1145 = vmatpush2.bf16.msra.mxu0 0
        %1146 = vmatprep.subr.bf16.mxu0 0
        %1147 = vmatpush2.bf16.msra.mxu0 0
        %1148 = vmatprep.subr.bf16.mxu0 0
        %1149 = vmatpush2.bf16.msra.mxu0 0
        %1150 = vmatprep.subr.bf16.mxu0 0
        %1151 = vmatpush2.bf16.msra.mxu0 0
        %1152 = vmatprep.subr.bf16.mxu0 0
        %1153 = vmatpush2.bf16.msra.mxu0 0
        %1154 = vmatprep.subr.bf16.mxu0 0
        %1155 = vmatpush2.bf16.msra.mxu0 0
        %1156 = vmatprep.subr.bf16.mxu0 0
        %1157 = vmatpush2.bf16.msra.mxu0 0
        %1158 = vmatprep.subr.bf16.mxu0 0
        %1159 = vmatpush2.bf16.msra.mxu0 0
        %1160 = vmatprep.mubr.bf16.mxu0 0
        %1161 = vmatmul.mubr.bf16.gmra.mxu0 %v1126
        %v1162 = vpop.f32.mrf.mxu0
        %v1163 = vadd.f32 0.0, %v1162
        %v1164 = vpop.f32.mrf.mxu0
        %v1165 = vpop.f32.mrf.mxu0
        %v1166 = vadd.f32 0.0, %v1165
        %v1167 = vpop.f32.mrf.mxu0
        %1168 = vdwg.mxu0
        %v1170 = vsel %vm796, %v946, 0
        %1172 = vmatprep.subr.bf16.mxu0 0
        %1173 = vmatpush1.bf16.msra.mxu0 0
        %1174 = vmatprep.subr.bf16.mxu0 0
        %1175 = vmatpush1.bf16.msra.mxu0 0
        %1176 = vmatprep.subr.bf16.mxu0 0
        %1177 = vmatpush1.bf16.msra.mxu0 0
        %1178 = vmatprep.subr.bf16.mxu0 0
        %1179 = vmatpush1.bf16.msra.mxu0 0
        %1180 = vmatprep.subr.bf16.mxu0 0
        %1181 = vmatpush1.bf16.msra.mxu0 0
        %1182 = vmatprep.subr.bf16.mxu0 0
        %1183 = vmatpush1.bf16.msra.mxu0 0
        %1184 = vmatprep.subr.bf16.mxu0 0
        %1185 = vmatpush1.bf16.msra.mxu0 0
        %1186 = vmatprep.subr.bf16.mxu0 0
        %1187 = vmatpush1.bf16.msra.mxu0 %v395
        %1188 = vmatprep.subr.bf16.mxu0 0
        %1189 = vmatpush2.bf16.msra.mxu0 0
        %1190 = vmatprep.subr.bf16.mxu0 0
        %1191 = vmatpush2.bf16.msra.mxu0 0
        %1192 = vmatprep.subr.bf16.mxu0 0
        %1193 = vmatpush2.bf16.msra.mxu0 0
        %1194 = vmatprep.subr.bf16.mxu0 0
        %1195 = vmatpush2.bf16.msra.mxu0 0
        %1196 = vmatprep.subr.bf16.mxu0 0
        %1197 = vmatpush2.bf16.msra.mxu0 0
        %1198 = vmatprep.subr.bf16.mxu0 0
        %1199 = vmatpush2.bf16.msra.mxu0 0
        %1200 = vmatprep.subr.bf16.mxu0 0
        %1201 = vmatpush2.bf16.msra.mxu0 0
        %1202 = vmatprep.subr.bf16.mxu0 0
        %1203 = vmatpush2.bf16.msra.mxu0 0
        %1204 = vmatprep.mubr.bf16.mxu0 0
        %1205 = vmatmul.mubr.bf16.gmra.mxu0 %v1170
        %v1206 = vpop.f32.mrf.mxu0
        %v1207 = vadd.f32 0.0, %v1206
        %v1208 = vpop.f32.mrf.mxu0
        %v1209 = vpop.f32.mrf.mxu0
        %v1210 = vadd.f32 0.0, %v1209
        %v1211 = vpop.f32.mrf.mxu0
        %1212 = vdwg.mxu0
        %v1214 = vsel %vm796, %v947, 0
        %1216 = vmatprep.subr.bf16.mxu0 0
        %1217 = vmatpush1.bf16.msra.mxu0 0
        %1218 = vmatprep.subr.bf16.mxu0 0
        %1219 = vmatpush1.bf16.msra.mxu0 0
        %1220 = vmatprep.subr.bf16.mxu0 0
        %1221 = vmatpush1.bf16.msra.mxu0 0
        %1222 = vmatprep.subr.bf16.mxu0 0
        %1223 = vmatpush1.bf16.msra.mxu0 0
        %1224 = vmatprep.subr.bf16.mxu0 0
        %1225 = vmatpush1.bf16.msra.mxu0 0
        %1226 = vmatprep.subr.bf16.mxu0 0
        %1227 = vmatpush1.bf16.msra.mxu0 0
        %1228 = vmatprep.subr.bf16.mxu0 0
        %1229 = vmatpush1.bf16.msra.mxu0 0
        %1230 = vmatprep.subr.bf16.mxu0 0
        %1231 = vmatpush1.bf16.msra.mxu0 %v398
        %1232 = vmatprep.subr.bf16.mxu0 0
        %1233 = vmatpush2.bf16.msra.mxu0 0
        %1234 = vmatprep.subr.bf16.mxu0 0
        %1235 = vmatpush2.bf16.msra.mxu0 0
        %1236 = vmatprep.subr.bf16.mxu0 0
        %1237 = vmatpush2.bf16.msra.mxu0 0
        %1238 = vmatprep.subr.bf16.mxu0 0
        %1239 = vmatpush2.bf16.msra.mxu0 0
        %1240 = vmatprep.subr.bf16.mxu0 0
        %1241 = vmatpush2.bf16.msra.mxu0 0
        %1242 = vmatprep.subr.bf16.mxu0 0
        %1243 = vmatpush2.bf16.msra.mxu0 0
        %1244 = vmatprep.subr.bf16.mxu0 0
        %1245 = vmatpush2.bf16.msra.mxu0 0
        %1246 = vmatprep.subr.bf16.mxu0 0
        %1247 = vmatpush2.bf16.msra.mxu0 0
        %1248 = vmatprep.mubr.bf16.mxu0 0
        %1249 = vmatmul.mubr.bf16.gmra.mxu0 %v1214
        %v1250 = vpop.f32.mrf.mxu0
        %v1251 = vadd.f32 0.0, %v1250
        %v1252 = vpop.f32.mrf.mxu0
        %v1253 = vpop.f32.mrf.mxu0
        %v1254 = vadd.f32 0.0, %v1253
        %v1255 = vpop.f32.mrf.mxu0
        %1256 = vdwg.mxu0
        %v1258 = vsel %vm796, %v948, 0
        %1260 = vmatprep.subr.bf16.mxu0 0
        %1261 = vmatpush1.bf16.msra.mxu0 0
        %1262 = vmatprep.subr.bf16.mxu0 0
        %1263 = vmatpush1.bf16.msra.mxu0 0
        %1264 = vmatprep.subr.bf16.mxu0 0
        %1265 = vmatpush1.bf16.msra.mxu0 0
        %1266 = vmatprep.subr.bf16.mxu0 0
        %1267 = vmatpush1.bf16.msra.mxu0 0
        %1268 = vmatprep.subr.bf16.mxu0 0
        %1269 = vmatpush1.bf16.msra.mxu0 0
        %1270 = vmatprep.subr.bf16.mxu0 0
        %1271 = vmatpush1.bf16.msra.mxu0 0
        %1272 = vmatprep.subr.bf16.mxu0 0
        %1273 = vmatpush1.bf16.msra.mxu0 0
        %1274 = vmatprep.subr.bf16.mxu0 0
        %1275 = vmatpush1.bf16.msra.mxu0 %v401
        %1276 = vmatprep.subr.bf16.mxu0 0
        %1277 = vmatpush2.bf16.msra.mxu0 0
        %1278 = vmatprep.subr.bf16.mxu0 0
        %1279 = vmatpush2.bf16.msra.mxu0 0
        %1280 = vmatprep.subr.bf16.mxu0 0
        %1281 = vmatpush2.bf16.msra.mxu0 0
        %1282 = vmatprep.subr.bf16.mxu0 0
        %1283 = vmatpush2.bf16.msra.mxu0 0
        %1284 = vmatprep.subr.bf16.mxu0 0
        %1285 = vmatpush2.bf16.msra.mxu0 0
        %1286 = vmatprep.subr.bf16.mxu0 0
        %1287 = vmatpush2.bf16.msra.mxu0 0
        %1288 = vmatprep.subr.bf16.mxu0 0
        %1289 = vmatpush2.bf16.msra.mxu0 0
        %1290 = vmatprep.subr.bf16.mxu0 0
        %1291 = vmatpush2.bf16.msra.mxu0 0
        %1292 = vmatprep.mubr.bf16.mxu0 0
        %1293 = vmatmul.mubr.bf16.gmra.mxu0 %v1258
        %v1294 = vpop.f32.mrf.mxu0
        %v1295 = vadd.f32 0.0, %v1294
        %v1296 = vpop.f32.mrf.mxu0
        %v1297 = vpop.f32.mrf.mxu0
        %v1298 = vadd.f32 0.0, %v1297
        %v1299 = vpop.f32.mrf.mxu0
        %1300 = vdwg.mxu0
        %v1301 = vrcp.pop %v895
        %v1302 = vrcp.pop %v898
        %v1303 = vrcp.pop %v901
        %v1304 = vrcp.pop %v904
        %v1305 = vrcp.pop %v907
        %v1306 = vrcp.pop %v910
        %v1307 = vrcp.pop %v913
        %v1308 = vrcp.pop %v916
        %v1309 = vrcp.pop %v919
        %v1310 = vrcp.pop %v922
        %v1311 = vrcp.pop %v925
        %v1312 = vrcp.pop %v928
        %v1313 = vrcp.pop %v931
        %v1314 = vrcp.pop %v934
        %v1315 = vrcp.pop %v937
        %v1316 = vrcp.pop %v940
        %v1317 = vmul.f32 %v987, %v1301
        %v1318 = vmul.f32 %v990, %v1302
        %v1319 = vmul.f32 %v1031, %v1303
        %v1320 = vmul.f32 %v1034, %v1304
        %v1321 = vmul.f32 %v1075, %v1305
        %v1322 = vmul.f32 %v1078, %v1306
        %v1323 = vmul.f32 %v1119, %v1307
        %v1324 = vmul.f32 %v1122, %v1308
        %v1325 = vmul.f32 %v1163, %v1309
        %v1326 = vmul.f32 %v1166, %v1310
        %v1327 = vmul.f32 %v1207, %v1311
        %v1328 = vmul.f32 %v1210, %v1312
        %v1329 = vmul.f32 %v1251, %v1313
        %v1330 = vmul.f32 %v1254, %v1314
        %v1331 = vmul.f32 %v1295, %v1315
        %v1332 = vmul.f32 %v1298, %v1316
        %v1333 = vpack.c.bf16 %v1318, %v1317
        %v1334 = vpack.c.bf16 %v1320, %v1319
        %v1335 = vpack.c.bf16 %v1322, %v1321
        %v1336 = vpack.c.bf16 %v1324, %v1323
        %v1337 = vpack.c.bf16 %v1326, %v1325
        %v1338 = vpack.c.bf16 %v1328, %v1327
        %v1339 = vpack.c.bf16 %v1330, %v1329
        %v1340 = vpack.c.bf16 %v1332, %v1331
        %1342 = vrot.lane.b32.xlu0 %v1334, 8
        %v1343 = vpop.permute.xlu0 %1342
        %1345 = vrot.lane.b32.xlu0 %v1335, 16
        %v1346 = vpop.permute.xlu0 %1345
        %1348 = vrot.lane.b32.xlu0 %v1336, 24
        %v1349 = vpop.permute.xlu0 %1348
        %1351 = vrot.lane.b32.xlu0 %v1337, 32
        %v1352 = vpop.permute.xlu0 %1351
        %1354 = vrot.lane.b32.xlu0 %v1338, 40
        %v1355 = vpop.permute.xlu0 %1354
        %1357 = vrot.lane.b32.xlu0 %v1339, 48
        %v1358 = vpop.permute.xlu0 %1357
        %1360 = vrot.lane.b32.xlu0 %v1340, 56
        %v1361 = vpop.permute.xlu0 %1360
        %v1364 = vsel %vm405, %v1333, %v1343
        %v1366 = vsel %vm796, %v1364, %v1346
        %vm1367 = vcmask 195584
        %v1369 = vsel %vm1367, %v1366, %v1349
        %vm1370 = vcmask 261120
        %v1372 = vsel %vm1370, %v1369, %v1352
        %vm1373 = vcmask 326656
        %v1375 = vsel %vm1373, %v1372, %v1355
        %vm1376 = vcmask 392192
        %v1378 = vsel %vm1376, %v1375, %v1358
        %vm1379 = vcmask 457728
        %v1381 = vsel %vm1379, %v1378, %v1361
        %v1382 = vld [vmem:[#allocation7] sm:$0xf]
        %v1383 = vld [vmem:[#allocation7 + $0x4] sm:$0xf]
        %v1384 = vld [vmem:[#allocation7 + $0x8] sm:$0xf]
        %v1385 = vld [vmem:[#allocation7 + $0xc] sm:$0xf]
        %v1386 = vld [vmem:[#allocation7 + $0x10] sm:$0xf]
        %v1387 = vld [vmem:[#allocation7 + $0x14] sm:$0xf]
        %v1388 = vld [vmem:[#allocation7 + $0x18] sm:$0xf]
        %v1389 = vld [vmem:[#allocation7 + $0x1c] sm:$0xf]
        %v1390 = vld [vmem:[%s3] sm:$0x1]
        %v1392 = vlaneseq
        %v1393 = vshrl.u32 %v1392, 7
        %v1394 = vsub.s32 0, %v1393
        %v1395 = vrot.slane %v1390, %v1394
        %v1405 = vunpack.c.l.b16 %v1382
        %v1406 = vunpack.c.l.b16 %v1383
        %v1407 = vunpack.c.l.b16 %v1384
        %v1408 = vunpack.c.l.b16 %v1385
        %v1409 = vunpack.c.l.b16 %v1386
        %v1410 = vunpack.c.l.b16 %v1387
        %v1411 = vunpack.c.l.b16 %v1388
        %v1412 = vunpack.c.l.b16 %v1389
        %v1413 = vpack.c.b16 %v1406, %v1405
        %v1414 = vpack.c.b16 %v1408, %v1407
        %v1415 = vpack.c.b16 %v1410, %v1409
        %v1416 = vpack.c.b16 %v1412, %v1411
        %v1421 = vsel %vm302, %v1381, 0
        %1423 = vmatprep.subr.bf16.mxu0 0
        %1424 = vmatpush1.bf16.msra.mxu0 0
        %1425 = vmatprep.subr.bf16.mxu0 0
        %1426 = vmatpush1.bf16.msra.mxu0 0
        %1427 = vmatprep.subr.bf16.mxu0 0
        %1428 = vmatpush1.bf16.msra.mxu0 0
        %1429 = vmatprep.subr.bf16.mxu0 0
        %1430 = vmatpush1.bf16.msra.mxu0 0
        %1431 = vmatprep.subr.bf16.mxu0 0
        %1432 = vmatpush1.bf16.msra.mxu0 %v1416
        %1433 = vmatprep.subr.bf16.mxu0 0
        %1434 = vmatpush1.bf16.msra.mxu0 %v1415
        %1435 = vmatprep.subr.bf16.mxu0 0
        %1436 = vmatpush1.bf16.msra.mxu0 %v1414
        %1437 = vmatprep.subr.bf16.mxu0 0
        %1438 = vmatpush1.bf16.msra.mxu0 %v1413
        %1439 = vmatprep.subr.bf16.mxu0 0
        %1440 = vmatpush2.bf16.msra.mxu0 0
        %1441 = vmatprep.subr.bf16.mxu0 0
        %1442 = vmatpush2.bf16.msra.mxu0 0
        %1443 = vmatprep.subr.bf16.mxu0 0
        %1444 = vmatpush2.bf16.msra.mxu0 0
        %1445 = vmatprep.subr.bf16.mxu0 0
        %1446 = vmatpush2.bf16.msra.mxu0 0
        %1447 = vmatprep.subr.bf16.mxu0 0
        %1448 = vmatpush2.bf16.msra.mxu0 0
        %1449 = vmatprep.subr.bf16.mxu0 0
        %1450 = vmatpush2.bf16.msra.mxu0 0
        %1451 = vmatprep.subr.bf16.mxu0 0
        %1452 = vmatpush2.bf16.msra.mxu0 0
        %1453 = vmatprep.subr.bf16.mxu0 0
        %1454 = vmatpush2.bf16.msra.mxu0 0
        %1455 = vmatprep.mubr.bf16.mxu0 0
        %1456 = vmatmul.mubr.bf16.gmra.mxu0 %v1421
        %v1457 = vpop.f32.mrf.mxu0
        %v1458 = vadd.f32 %v1395, %v1457
        %v1459 = vpop.f32.mrf.mxu0
        %v1460 = vpop.f32.mrf.mxu0
        %v1461 = vadd.f32 %v1395, %v1460
        %v1462 = vpop.f32.mrf.mxu0
        %1463 = vdwg.mxu0
        %1464 = vst.msk [vmem:[%s244] sm:$0xff] %vm302, %v1458
        %1465 = vst.msk [vmem:[%s244 + $0x8] sm:$0xff] %vm302, %v1461
        %s1466 = sand.u32 %s119, 1
        %s1467 = scalar_lea.sflag [#allocation4], %s1466
        %s1468 = sand.u32 %s119, 1
        %s1469 = smul.addr %s1468, 16
        %s1470 = scalar_lea.vmem [#allocation8], %s1469
        // Predicated region
        $region49: #{tpu_custom_call.1} parent=35 // pred_check
          %p1471 = pneg %p129
        $region50: #{tpu_custom_call.1} parent=35 // pred_check_branch
          %1473 = sbr.rel (%p1471) target = $region52
        $region51: #{tpu_custom_call.1} parent=35 // pred_region
          %s1475 = ssub.s32 256, 256
          %1476 = vsyncadd %s1467, %s1475
          %s1477 = smul.addr %s22, 2
          %s1478 = smul.addr %s1477, 128
          %s1479 = scalar_lea.hbm %s4, %s1478
          %s1480 = sshll.u32 %s1470, 4
          %s1481 = int_to_ptr.vmem [resolvable:$true] %s1480
          %1486 = dma.vmem_to_hbm [thread:$0]  %s1481, 256, %s1479, %s1467, 128, 128, 8
        $region52: #{tpu_custom_call.1} parent=35 // pred_fallthru
          _
      $region36: #{tpu_custom_call.1} parent=5 // pred_fallthru
        _
      %p1487 = scmp.le.s32.totalorder 2, %s17
      // Predicated region
      $region53: #{tpu_custom_call.1} parent=5 // pred_check
        %p1488 = pneg %p1487
      $region54: #{tpu_custom_call.1} parent=5 // pred_check_branch
        %1490 = sbr.rel (%p1488) target = $region56
      $region55: #{tpu_custom_call.1} parent=5 // pred_region
        %s1491 = ssub.s32 %s17, 2
        // Predicated region
        $region57: #{tpu_custom_call.1} parent=55 // pred_check
          %p1492 = pneg %p135
        $region58: #{tpu_custom_call.1} parent=55 // pred_check_branch
          %1494 = sbr.rel (%p1492) target = $region60
        $region59: #{tpu_custom_call.1} parent=55 // pred_region
          %s1495 = sand.u32 %s120, 1
          %s1496 = scalar_lea.sflag [#allocation4], %s1495
          %s1497 = sand.u32 %s120, 1
          %s1498 = smul.addr %s1497, 16
          %s1499 = scalar_lea.vmem [#allocation8], %s1498
          %1500 = dma.done %s1496, 256
        $region60: #{tpu_custom_call.1} parent=55 // pred_fallthru
          _
      $region56: #{tpu_custom_call.1} parent=5 // pred_fallthru
        _
    $region6: #{tpu_custom_call.1} parent=1 // loop_footer
      %s21 = sadd.s32 1, %s17
    $region7: #{tpu_custom_call.1} parent=1 // loop_footer_branch
      %16 = sbr.rel target = $region3
    $region8: #{tpu_custom_call.1} parent=1 // loop_exit
      _
    %1501 = vsyncpa [#allocation3], 1
    %s1502 = scalar_lea.sflag [#allocation3], 1
    %1503 = vsyncpa %s1502, 1
    %1504 = vsyncpa [#allocation6], 1
    %1505 = vsyncpa [#allocation4], 1
    %s1506 = scalar_lea.sflag [#allocation4], 1
    %1507 = vsyncpa %s1506, 1

</llo_original>
